<compile_context>
chip_gen: v7x
topology: tpu7x:2x2x1
jax: 0.10.0
libtpu: 0.0.40
codegen_flags: <defaults>
</compile_context>

<pallas_src>
import jax
import jax.numpy as jnp
from jax.experimental import pallas as pl
from jax.experimental.pallas import tpu as pltpu

BN_EPS = 1e-5
OUT_LANES = 128            # lane-padded output width; column 0 is the real output


def _round_up(x, m):
    return (x + m - 1) // m * m


def mlp_kernel(ids_ref, emb_ref, w1_ref, w2_ref, w3_ref, wtail_ref, bias_ref, o_ref):
    """One batch tile: embedding gather + 7 dense layers + sigmoid, fully fused."""
    ids = ids_ref[...]                       # (TB, S) int32 token ids
    emb = emb_ref[...]                       # (V, E)  bf16 embedding table
    TB, S = ids.shape
    V, E = emb.shape

    # ---- Embedding gather via one-hot matmul (bf16 MXU path, exact gather) ----
    # x[:, i*E:(i+1)*E] = emb[ids[:, i]]; built once, then a single layer-1 dot.
    # NOTE: out-of-range ids yield a zero embedding (torch nn.Embedding would error).
    iota_v = jax.lax.broadcasted_iota(jnp.int32, (TB, V), 1)
    parts = []
    for i in range(S):                       # S is small & static -> unrolled
        onehot = (ids[:, i:i + 1] == iota_v).astype(jnp.bfloat16)         # (TB, V)
        parts.append(jnp.dot(onehot, emb, preferred_element_type=jnp.float32))
    x = jnp.concatenate(parts, axis=1)       # (TB, S*E) f32 (values exactly bf16)

    # ---- Packed biases: static, lane-aligned views of the (8, 1024) f32 slab ----
    b1 = bias_ref[0:1, :]                    # (1, 1024)
    b2 = bias_ref[1:2, :512]
    b3 = bias_ref[2:3, :256]                 # BN1 folded in
    b4 = bias_ref[3:4, :128]
    b5 = bias_ref[4:5, :128]                 # BN2 folded in, 64 -> 128 lane-pad
    b6 = bias_ref[5:6, :128]                 # 16 -> 128 lane-pad
    bo = bias_ref[6:7, :128]                 # 1  -> 128 lane-pad

    # ---- Packed tail weights: static 16-sublane-aligned row views (bf16) ----
    w4 = wtail_ref[0:256, :]                 # (256, 128)
    w5 = wtail_ref[256:384, :]               # (128, 128)  BN2 folded, 64 -> 128 pad
    w6 = wtail_ref[384:512, :]               # (128, 128)  16 -> 128 pad
    wo = wtail_ref[512:640, :]               # (128, 128)  1  -> 128 pad

    def dense(h_f32, w_bf16, b_f32):
        return jnp.dot(h_f32.astype(jnp.bfloat16), w_bf16,
                       preferred_element_type=jnp.float32) + b_f32

    h = jnp.tanh(dense(x, w1_ref[...], b1))  # (TB, 1024)
    h = jnp.tanh(dense(h, w2_ref[...], b2))  # (TB, 512)
    # batchnorm1 (eval) folded into w3/b3, batchnorm2 (eval) folded into w5/b5,
    # dropout(p=0.3) is identity in eval mode.
    h = jnp.tanh(dense(h, w3_ref[...], b3))  # (TB, 256)
    h = jnp.tanh(dense(h, w4, b4))           # (TB, 128)
    h = jnp.tanh(dense(h, w5, b5))           # (TB, 128)  cols >= 64 are exactly 0
    h = jnp.tanh(dense(h, w6, b6))           # (TB, 128)  cols >= 16 are exactly 0
    logits = dense(h, wo, bo)                # (TB, 128)  col 0 holds the real logit
    o_ref[...] = jax.nn.sigmoid(logits)      # full-128-lane unmasked store


def init_params(key, input_size, vocab_size, embedding_size):
    """PyTorch-like f32 parameters (Linear weights stored as (in, out))."""
    dims = [input_size * embedding_size, 1024, 512, 256, 128, 64, 16, 1]
    keys = jax.random.split(key, 2 * (len(dims) - 1) + 1)
    params = {}
    params["emb"] = jax.random.normal(
        keys[0], (vocab_size, embedding_size), jnp.float32) * 0.1
    for li in range(len(dims) - 1):
        fan_in, fan_out = dims[li], dims[li + 1]
        scale = 1.0 / jnp.sqrt(jnp.float32(fan_in))
        params[f"w{li + 1}"] = jax.random.uniform(
            keys[1 + 2 * li], (fan_in, fan_out), jnp.float32, -scale, scale)
        params[f"b{li + 1}"] = jax.random.uniform(
            keys[2 + 2 * li], (1, fan_out), jnp.float32, -scale, scale)
    # BatchNorm params / running stats (PyTorch defaults).
    params["g1"] = jnp.ones((1, 512), jnp.float32)
    params["be1"] = jnp.zeros((1, 512), jnp.float32)
    params["rm1"] = jnp.zeros((1, 512), jnp.float32)
    params["rv1"] = jnp.ones((1, 512), jnp.float32)
    params["g2"] = jnp.ones((1, 128), jnp.float32)
    params["be2"] = jnp.zeros((1, 128), jnp.float32)
    params["rm2"] = jnp.zeros((1, 128), jnp.float32)
    params["rv2"] = jnp.ones((1, 128), jnp.float32)
    return params


def prepare_kernel_params(params, eps=BN_EPS):
    """Fold eval-mode BatchNorms forward into layer_3 / layer_5, lane-pad the
    narrow tail, pack biases + tail weights into single slabs, cast to bf16."""
    # BN(t) = a*t + c with a = gamma * rsqrt(var + eps), c = beta - mean * a.
    a1 = params["g1"] * jax.lax.rsqrt(params["rv1"] + eps)      # (1, 512)
    c1 = params["be1"] - params["rm1"] * a1
    a2 = params["g2"] * jax.lax.rsqrt(params["rv2"] + eps)      # (1, 128)
    c2 = params["be2"] - params["rm2"] * a2

    # layer_3(BN1(t)) = t @ (a1[:,None]*W3) + (c1 @ W3 + b3); same for layer_5/BN2.
    w3 = params["w3"] * a1.reshape(-1, 1)                       # (512, 256)
    b3 = params["b3"] + c1 @ params["w3"]                       # (1, 256)
    w5 = params["w5"] * a2.reshape(-1, 1)                       # (128, 64)
    b5 = params["b5"] + c2 @ params["w5"]                       # (1, 64)

    # Lane-pad the narrow tail to 128 lanes (zero pads are exact).
    w5p = jnp.zeros((128, 128), jnp.float32).at[:, :64].set(w5)
    w6p = jnp.zeros((128, 128), jnp.float32).at[:64, :16].set(params["w6"])
    wop = jnp.zeros((128, 128), jnp.float32).at[:16, :1].set(params["w7"])

    # Pack w4 / w5 / w6 / w_out into one (640, 128) slab (one DMA instead of 4).
    wtail = jnp.concatenate([params["w4"], w5p, w6p, wop], axis=0)

    # Pack the 7 biases into one (8, 1024) f32 slab (one DMA instead of 7).
    bias = jnp.zeros((8, 1024), jnp.float32)
    bias = bias.at[0, :1024].set(params["b1"][0])
    bias = bias.at[1, :512].set(params["b2"][0])
    bias = bias.at[2, :256].set(b3[0])
    bias = bias.at[3, :128].set(params["b4"][0])
    bias = bias.at[4, :64].set(b5[0])
    bias = bias.at[5, :16].set(params["b6"][0])
    bias = bias.at[6, :1].set(params["b7"][0])

    bf16 = lambda a: a.astype(jnp.bfloat16)
    return dict(
        emb=bf16(params["emb"]),     # (V, E)     bf16
        w1=bf16(params["w1"]),       # (S*E, 1024) bf16
        w2=bf16(params["w2"]),       # (1024, 512) bf16
        w3=bf16(w3),                 # (512, 256)  bf16 (BN1 folded)
        wtail=bf16(wtail),           # (640, 128)  bf16 (w4|w5|w6|w_out)
        bias=bias,                   # (8, 1024)   f32 packed biases
    )


def feedforward_nn_forward(inputs, kparams, *, tile_b=None):
    """inputs: (B, input_size) int token ids -> (B, 1) float32 probabilities."""
    ids = inputs.astype(jnp.int32)
    B, S = ids.shape
    if tile_b is None:
        tile_b = min(256, _round_up(max(B, 1), 8))
    Bp = _round_up(B, tile_b)
    if Bp != B:
        ids = jnp.pad(ids, ((0, Bp - B), (0, 0)))
    grid = (Bp // tile_b,)

    emb, w1, w2, w3 = kparams["emb"], kparams["w1"], kparams["w2"], kparams["w3"]
    wtail, bias = kparams["wtail"], kparams["bias"]
    V, E = emb.shape

    # Weight operands: full-shape blocks with constant index_map -> VMEM-resident,
    # DMA'd once per call (Pallas skips re-fetch when the block index is unchanged).
    def resident(arr):
        return pl.BlockSpec(arr.shape, lambda i: (0, 0))

    flops_per_row = 2 * (S * V * E + S * E * 1024 + 1024 * 512 + 512 * 256
                         + 256 * 128 + 128 * 128 + 128 * 128 + 128 * 128)
    weight_bytes = sum(int(a.size) * a.dtype.itemsize
                       for a in (emb, w1, w2, w3, wtail, bias))
    cost = pl.CostEstimate(
        flops=Bp * flops_per_row,
        transcendentals=Bp * (1024 + 512 + 256 + 128 + 128 + 128 + 128),
        bytes_accessed=weight_bytes + Bp * (S * 4 + OUT_LANES * 4),
    )

    out = pl.pallas_call(
        mlp_kernel,
        out_shape=jax.ShapeDtypeStruct((Bp, OUT_LANES), jnp.float32),
        grid=grid,
        in_specs=[
            pl.BlockSpec((tile_b, S), lambda i: (i, 0)),   # ids: tiled over batch
            resident(emb), resident(w1), resident(w2),
            resident(w3), resident(wtail), resident(bias),
        ],
        out_specs=pl.BlockSpec((tile_b, OUT_LANES), lambda i: (i, 0)),
        compiler_params=pltpu.CompilerParams(
            dimension_semantics=("parallel",),             # v7x: use both TCs
        ),
        cost_estimate=cost,
    )(ids, emb, w1, w2, w3, wtail, bias)
    return out[:B, :1]                       # real probability is column 0


def reference_forward(params, inputs, eps=BN_EPS):
    """Pure-JAX f32 eval-mode reference matching the PyTorch module."""
    B = inputs.shape[0]
    x = params["emb"][inputs].reshape(B, -1)
    t = jnp.tanh
    x = t(x @ params["w1"] + params["b1"])
    x = t(x @ params["w2"] + params["b2"])
    x = (x - params["rm1"]) * jax.lax.rsqrt(params["rv1"] + eps) * params["g1"] + params["be1"]
    x = t(x @ params["w3"] + params["b3"])
    x = t(x @ params["w4"] + params["b4"])
    x = (x - params["rm2"]) * jax.lax.rsqrt(params["rv2"] + eps) * params["g2"] + params["be2"]
    x = t(x @ params["w5"] + params["b5"])
    x = t(x @ params["w6"] + params["b6"])
    x = x @ params["w7"] + params["b7"]
    return jax.nn.sigmoid(x)


if __name__ == "__main__":
    input_size = 8
    vocab_size = 100
    embedding_size = 32
    batch = 8

    key = jax.random.PRNGKey(0)
    k_params, k_inputs = jax.random.split(key)

    params = init_params(k_params, input_size, vocab_size, embedding_size)
    kparams = prepare_kernel_params(params)
    inputs = jax.random.randint(k_inputs, (batch, input_size), 0, vocab_size,
                                dtype=jnp.int32)

    fwd = jax.jit(lambda ids: feedforward_nn_forward(ids, kparams))
    out = fwd(inputs)
    jax.block_until_ready(out)

    assert out.shape == (batch, 1) and out.dtype == jnp.float32
    assert bool(jnp.all((out >= 0.0) & (out <= 1.0)))

    ref = reference_forward(params, inputs)
    max_err = float(jnp.max(jnp.abs(out - ref)))
    assert max_err < 5e-2, f"mismatch vs f32 reference: {max_err}"

    print("KERNEL_OK")
</pallas_src>

<mosaic_0001>
module attributes {stable_mosaic.version = 11 : i64} {
  func.func @mlp_kernel(%arg0: i32, %arg1: memref<8x8xi32, #tpu.memory_space<vmem>>, %arg2: memref<100x32xbf16, #tpu.memory_space<vmem>>, %arg3: memref<256x1024xbf16, #tpu.memory_space<vmem>>, %arg4: memref<1024x512xbf16, #tpu.memory_space<vmem>>, %arg5: memref<512x256xbf16, #tpu.memory_space<vmem>>, %arg6: memref<640x128xbf16, #tpu.memory_space<vmem>>, %arg7: memref<8x1024xf32, #tpu.memory_space<vmem>>, %arg8: memref<8x128xf32, #tpu.memory_space<vmem>>) attributes {dimension_semantics = [#tpu.dimension_semantics<parallel>], iteration_bounds = array<i64: 1>, scalar_prefetch = 0 : i64, scratch_operands = 0 : i64, tpu.core_type = #tpu.core_type<tc>, window_params = [{transform_indices = @transform_0, window_bounds = array<i64: 8, 8>}, {pipeline_mode = #tpu.pipeline_mode<synchronous>, transform_indices = @transform_1, window_bounds = array<i64: 100, 32>}, {pipeline_mode = #tpu.pipeline_mode<synchronous>, transform_indices = @transform_2, window_bounds = array<i64: 256, 1024>}, {pipeline_mode = #tpu.pipeline_mode<synchronous>, transform_indices = @transform_3, window_bounds = array<i64: 1024, 512>}, {pipeline_mode = #tpu.pipeline_mode<synchronous>, transform_indices = @transform_4, window_bounds = array<i64: 512, 256>}, {pipeline_mode = #tpu.pipeline_mode<synchronous>, transform_indices = @transform_5, window_bounds = array<i64: 640, 128>}, {pipeline_mode = #tpu.pipeline_mode<synchronous>, transform_indices = @transform_6, window_bounds = array<i64: 8, 1024>}, {transform_indices = @transform_7, window_bounds = array<i64: 8, 128>}]} {
    %c0 = arith.constant 0 : index
    %c0_0 = arith.constant 0 : index
    %0 = vector.load %arg1[%c0, %c0_0] : memref<8x8xi32, #tpu.memory_space<vmem>>, vector<8x8xi32>
    %c0_1 = arith.constant 0 : index
    %c0_2 = arith.constant 0 : index
    %1 = vector.load %arg2[%c0_1, %c0_2] : memref<100x32xbf16, #tpu.memory_space<vmem>>, vector<100x32xbf16>
    %2 = tpu.iota {dimensions = array<i32: 1>} : vector<8x100xi32>
    %3 = vector.extract_strided_slice %0 {offsets = [0, 0], sizes = [8, 1], strides = [1, 1]} : vector<8x8xi32> to vector<8x1xi32>
    %4 = vector.broadcast %3 : vector<8x1xi32> to vector<8x100xi32>
    %5 = arith.cmpi eq, %4, %2 : vector<8x100xi32>
    %6 = arith.extui %5 : vector<8x100xi1> to vector<8x100xi32>
    %7 = arith.sitofp %6 : vector<8x100xi32> to vector<8x100xf32>
    %8 = arith.truncf %7 : vector<8x100xf32> to vector<8x100xbf16>
    %cst = arith.constant dense<0.000000e+00> : vector<8x32xf32>
    %9 = tpu.matmul %8, %1, %cst {dimension_numbers = #tpu.dot_dimension_numbers<[1], [0], [0], [1], [0, 0, 1, 1], [], []>} : vector<8x100xbf16>, vector<100x32xbf16>, vector<8x32xf32> -> vector<8x32xf32>
    %10 = vector.extract_strided_slice %0 {offsets = [0, 1], sizes = [8, 1], strides = [1, 1]} : vector<8x8xi32> to vector<8x1xi32>
    %11 = vector.broadcast %10 : vector<8x1xi32> to vector<8x100xi32>
    %12 = arith.cmpi eq, %11, %2 : vector<8x100xi32>
    %13 = arith.extui %12 : vector<8x100xi1> to vector<8x100xi32>
    %14 = arith.sitofp %13 : vector<8x100xi32> to vector<8x100xf32>
    %15 = arith.truncf %14 : vector<8x100xf32> to vector<8x100xbf16>
    %cst_3 = arith.constant dense<0.000000e+00> : vector<8x32xf32>
    %16 = tpu.matmul %15, %1, %cst_3 {dimension_numbers = #tpu.dot_dimension_numbers<[1], [0], [0], [1], [0, 0, 1, 1], [], []>} : vector<8x100xbf16>, vector<100x32xbf16>, vector<8x32xf32> -> vector<8x32xf32>
    %17 = vector.extract_strided_slice %0 {offsets = [0, 2], sizes = [8, 1], strides = [1, 1]} : vector<8x8xi32> to vector<8x1xi32>
    %18 = vector.broadcast %17 : vector<8x1xi32> to vector<8x100xi32>
    %19 = arith.cmpi eq, %18, %2 : vector<8x100xi32>
    %20 = arith.extui %19 : vector<8x100xi1> to vector<8x100xi32>
    %21 = arith.sitofp %20 : vector<8x100xi32> to vector<8x100xf32>
    %22 = arith.truncf %21 : vector<8x100xf32> to vector<8x100xbf16>
    %cst_4 = arith.constant dense<0.000000e+00> : vector<8x32xf32>
    %23 = tpu.matmul %22, %1, %cst_4 {dimension_numbers = #tpu.dot_dimension_numbers<[1], [0], [0], [1], [0, 0, 1, 1], [], []>} : vector<8x100xbf16>, vector<100x32xbf16>, vector<8x32xf32> -> vector<8x32xf32>
    %24 = vector.extract_strided_slice %0 {offsets = [0, 3], sizes = [8, 1], strides = [1, 1]} : vector<8x8xi32> to vector<8x1xi32>
    %25 = vector.broadcast %24 : vector<8x1xi32> to vector<8x100xi32>
    %26 = arith.cmpi eq, %25, %2 : vector<8x100xi32>
    %27 = arith.extui %26 : vector<8x100xi1> to vector<8x100xi32>
    %28 = arith.sitofp %27 : vector<8x100xi32> to vector<8x100xf32>
    %29 = arith.truncf %28 : vector<8x100xf32> to vector<8x100xbf16>
    %cst_5 = arith.constant dense<0.000000e+00> : vector<8x32xf32>
    %30 = tpu.matmul %29, %1, %cst_5 {dimension_numbers = #tpu.dot_dimension_numbers<[1], [0], [0], [1], [0, 0, 1, 1], [], []>} : vector<8x100xbf16>, vector<100x32xbf16>, vector<8x32xf32> -> vector<8x32xf32>
    %31 = vector.extract_strided_slice %0 {offsets = [0, 4], sizes = [8, 1], strides = [1, 1]} : vector<8x8xi32> to vector<8x1xi32>
    %32 = vector.broadcast %31 : vector<8x1xi32> to vector<8x100xi32>
    %33 = arith.cmpi eq, %32, %2 : vector<8x100xi32>
    %34 = arith.extui %33 : vector<8x100xi1> to vector<8x100xi32>
    %35 = arith.sitofp %34 : vector<8x100xi32> to vector<8x100xf32>
    %36 = arith.truncf %35 : vector<8x100xf32> to vector<8x100xbf16>
    %cst_6 = arith.constant dense<0.000000e+00> : vector<8x32xf32>
    %37 = tpu.matmul %36, %1, %cst_6 {dimension_numbers = #tpu.dot_dimension_numbers<[1], [0], [0], [1], [0, 0, 1, 1], [], []>} : vector<8x100xbf16>, vector<100x32xbf16>, vector<8x32xf32> -> vector<8x32xf32>
    %38 = vector.extract_strided_slice %0 {offsets = [0, 5], sizes = [8, 1], strides = [1, 1]} : vector<8x8xi32> to vector<8x1xi32>
    %39 = vector.broadcast %38 : vector<8x1xi32> to vector<8x100xi32>
    %40 = arith.cmpi eq, %39, %2 : vector<8x100xi32>
    %41 = arith.extui %40 : vector<8x100xi1> to vector<8x100xi32>
    %42 = arith.sitofp %41 : vector<8x100xi32> to vector<8x100xf32>
    %43 = arith.truncf %42 : vector<8x100xf32> to vector<8x100xbf16>
    %cst_7 = arith.constant dense<0.000000e+00> : vector<8x32xf32>
    %44 = tpu.matmul %43, %1, %cst_7 {dimension_numbers = #tpu.dot_dimension_numbers<[1], [0], [0], [1], [0, 0, 1, 1], [], []>} : vector<8x100xbf16>, vector<100x32xbf16>, vector<8x32xf32> -> vector<8x32xf32>
    %45 = vector.extract_strided_slice %0 {offsets = [0, 6], sizes = [8, 1], strides = [1, 1]} : vector<8x8xi32> to vector<8x1xi32>
    %46 = vector.broadcast %45 : vector<8x1xi32> to vector<8x100xi32>
    %47 = arith.cmpi eq, %46, %2 : vector<8x100xi32>
    %48 = arith.extui %47 : vector<8x100xi1> to vector<8x100xi32>
    %49 = arith.sitofp %48 : vector<8x100xi32> to vector<8x100xf32>
    %50 = arith.truncf %49 : vector<8x100xf32> to vector<8x100xbf16>
    %cst_8 = arith.constant dense<0.000000e+00> : vector<8x32xf32>
    %51 = tpu.matmul %50, %1, %cst_8 {dimension_numbers = #tpu.dot_dimension_numbers<[1], [0], [0], [1], [0, 0, 1, 1], [], []>} : vector<8x100xbf16>, vector<100x32xbf16>, vector<8x32xf32> -> vector<8x32xf32>
    %52 = vector.extract_strided_slice %0 {offsets = [0, 7], sizes = [8, 1], strides = [1, 1]} : vector<8x8xi32> to vector<8x1xi32>
    %53 = vector.broadcast %52 : vector<8x1xi32> to vector<8x100xi32>
    %54 = arith.cmpi eq, %53, %2 : vector<8x100xi32>
    %55 = arith.extui %54 : vector<8x100xi1> to vector<8x100xi32>
    %56 = arith.sitofp %55 : vector<8x100xi32> to vector<8x100xf32>
    %57 = arith.truncf %56 : vector<8x100xf32> to vector<8x100xbf16>
    %cst_9 = arith.constant dense<0.000000e+00> : vector<8x32xf32>
    %58 = tpu.matmul %57, %1, %cst_9 {dimension_numbers = #tpu.dot_dimension_numbers<[1], [0], [0], [1], [0, 0, 1, 1], [], []>} : vector<8x100xbf16>, vector<100x32xbf16>, vector<8x32xf32> -> vector<8x32xf32>
    %59 = tpu.concatenate %9, %16, %23, %30, %37, %44, %51, %58 in 1 : vector<8x32xf32>, vector<8x32xf32>, vector<8x32xf32>, vector<8x32xf32>, vector<8x32xf32>, vector<8x32xf32>, vector<8x32xf32>, vector<8x32xf32> -> vector<8x256xf32>
    %c0_10 = arith.constant 0 : index
    %c0_11 = arith.constant 0 : index
    %60 = vector.load %arg7[%c0_10, %c0_11] : memref<8x1024xf32, #tpu.memory_space<vmem>>, vector<1x1024xf32>
    %c1 = arith.constant 1 : index
    %c0_12 = arith.constant 0 : index
    %61 = vector.load %arg7[%c1, %c0_12] : memref<8x1024xf32, #tpu.memory_space<vmem>>, vector<1x512xf32>
    %c2 = arith.constant 2 : index
    %c0_13 = arith.constant 0 : index
    %62 = vector.load %arg7[%c2, %c0_13] : memref<8x1024xf32, #tpu.memory_space<vmem>>, vector<1x256xf32>
    %c3 = arith.constant 3 : index
    %c0_14 = arith.constant 0 : index
    %63 = vector.load %arg7[%c3, %c0_14] : memref<8x1024xf32, #tpu.memory_space<vmem>>, vector<1x128xf32>
    %c4 = arith.constant 4 : index
    %c0_15 = arith.constant 0 : index
    %64 = vector.load %arg7[%c4, %c0_15] : memref<8x1024xf32, #tpu.memory_space<vmem>>, vector<1x128xf32>
    %c5 = arith.constant 5 : index
    %c0_16 = arith.constant 0 : index
    %65 = vector.load %arg7[%c5, %c0_16] : memref<8x1024xf32, #tpu.memory_space<vmem>>, vector<1x128xf32>
    %c6 = arith.constant 6 : index
    %c0_17 = arith.constant 0 : index
    %66 = vector.load %arg7[%c6, %c0_17] : memref<8x1024xf32, #tpu.memory_space<vmem>>, vector<1x128xf32>
    %c0_18 = arith.constant 0 : index
    %c0_19 = arith.constant 0 : index
    %67 = vector.load %arg6[%c0_18, %c0_19] : memref<640x128xbf16, #tpu.memory_space<vmem>>, vector<256x128xbf16>
    %c256 = arith.constant 256 : index
    %c0_20 = arith.constant 0 : index
    %68 = vector.load %arg6[%c256, %c0_20] : memref<640x128xbf16, #tpu.memory_space<vmem>>, vector<128x128xbf16>
    %c384 = arith.constant 384 : index
    %c0_21 = arith.constant 0 : index
    %69 = vector.load %arg6[%c384, %c0_21] : memref<640x128xbf16, #tpu.memory_space<vmem>>, vector<128x128xbf16>
    %c512 = arith.constant 512 : index
    %c0_22 = arith.constant 0 : index
    %70 = vector.load %arg6[%c512, %c0_22] : memref<640x128xbf16, #tpu.memory_space<vmem>>, vector<128x128xbf16>
    %c0_23 = arith.constant 0 : index
    %c0_24 = arith.constant 0 : index
    %71 = vector.load %arg3[%c0_23, %c0_24] : memref<256x1024xbf16, #tpu.memory_space<vmem>>, vector<256x1024xbf16>
    %72 = arith.truncf %59 : vector<8x256xf32> to vector<8x256xbf16>
    %cst_25 = arith.constant dense<0.000000e+00> : vector<8x1024xf32>
    %73 = tpu.matmul %72, %71, %cst_25 {dimension_numbers = #tpu.dot_dimension_numbers<[1], [0], [0], [1], [0, 0, 1, 1], [], []>} : vector<8x256xbf16>, vector<256x1024xbf16>, vector<8x1024xf32> -> vector<8x1024xf32>
    %74 = vector.broadcast %60 : vector<1x1024xf32> to vector<8x1024xf32>
    %75 = arith.addf %73, %74 : vector<8x1024xf32>
    %76 = math.tanh %75 : vector<8x1024xf32>
    %c0_26 = arith.constant 0 : index
    %c0_27 = arith.constant 0 : index
    %77 = vector.load %arg4[%c0_26, %c0_27] : memref<1024x512xbf16, #tpu.memory_space<vmem>>, vector<1024x512xbf16>
    %78 = arith.truncf %76 : vector<8x1024xf32> to vector<8x1024xbf16>
    %cst_28 = arith.constant dense<0.000000e+00> : vector<8x512xf32>
    %79 = tpu.matmul %78, %77, %cst_28 {dimension_numbers = #tpu.dot_dimension_numbers<[1], [0], [0], [1], [0, 0, 1, 1], [], []>} : vector<8x1024xbf16>, vector<1024x512xbf16>, vector<8x512xf32> -> vector<8x512xf32>
    %80 = vector.broadcast %61 : vector<1x512xf32> to vector<8x512xf32>
    %81 = arith.addf %79, %80 : vector<8x512xf32>
    %82 = math.tanh %81 : vector<8x512xf32>
    %c0_29 = arith.constant 0 : index
    %c0_30 = arith.constant 0 : index
    %83 = vector.load %arg5[%c0_29, %c0_30] : memref<512x256xbf16, #tpu.memory_space<vmem>>, vector<512x256xbf16>
    %84 = arith.truncf %82 : vector<8x512xf32> to vector<8x512xbf16>
    %cst_31 = arith.constant dense<0.000000e+00> : vector<8x256xf32>
    %85 = tpu.matmul %84, %83, %cst_31 {dimension_numbers = #tpu.dot_dimension_numbers<[1], [0], [0], [1], [0, 0, 1, 1], [], []>} : vector<8x512xbf16>, vector<512x256xbf16>, vector<8x256xf32> -> vector<8x256xf32>
    %86 = vector.broadcast %62 : vector<1x256xf32> to vector<8x256xf32>
    %87 = arith.addf %85, %86 : vector<8x256xf32>
    %88 = math.tanh %87 : vector<8x256xf32>
    %89 = arith.truncf %88 : vector<8x256xf32> to vector<8x256xbf16>
    %cst_32 = arith.constant dense<0.000000e+00> : vector<8x128xf32>
    %90 = tpu.matmul %89, %67, %cst_32 {dimension_numbers = #tpu.dot_dimension_numbers<[1], [0], [0], [1], [0, 0, 1, 1], [], []>} : vector<8x256xbf16>, vector<256x128xbf16>, vector<8x128xf32> -> vector<8x128xf32>
    %91 = vector.broadcast %63 : vector<1x128xf32> to vector<8x128xf32>
    %92 = arith.addf %90, %91 : vector<8x128xf32>
    %93 = math.tanh %92 : vector<8x128xf32>
    %94 = arith.truncf %93 : vector<8x128xf32> to vector<8x128xbf16>
    %cst_33 = arith.constant dense<0.000000e+00> : vector<8x128xf32>
    %95 = tpu.matmul %94, %68, %cst_33 {dimension_numbers = #tpu.dot_dimension_numbers<[1], [0], [0], [1], [0, 0, 1, 1], [], []>} : vector<8x128xbf16>, vector<128x128xbf16>, vector<8x128xf32> -> vector<8x128xf32>
    %96 = vector.broadcast %64 : vector<1x128xf32> to vector<8x128xf32>
    %97 = arith.addf %95, %96 : vector<8x128xf32>
    %98 = math.tanh %97 : vector<8x128xf32>
    %99 = arith.truncf %98 : vector<8x128xf32> to vector<8x128xbf16>
    %cst_34 = arith.constant dense<0.000000e+00> : vector<8x128xf32>
    %100 = tpu.matmul %99, %69, %cst_34 {dimension_numbers = #tpu.dot_dimension_numbers<[1], [0], [0], [1], [0, 0, 1, 1], [], []>} : vector<8x128xbf16>, vector<128x128xbf16>, vector<8x128xf32> -> vector<8x128xf32>
    %101 = vector.broadcast %65 : vector<1x128xf32> to vector<8x128xf32>
    %102 = arith.addf %100, %101 : vector<8x128xf32>
    %103 = math.tanh %102 : vector<8x128xf32>
    %104 = arith.truncf %103 : vector<8x128xf32> to vector<8x128xbf16>
    %cst_35 = arith.constant dense<0.000000e+00> : vector<8x128xf32>
    %105 = tpu.matmul %104, %70, %cst_35 {dimension_numbers = #tpu.dot_dimension_numbers<[1], [0], [0], [1], [0, 0, 1, 1], [], []>} : vector<8x128xbf16>, vector<128x128xbf16>, vector<8x128xf32> -> vector<8x128xf32>
    %106 = vector.broadcast %66 : vector<1x128xf32> to vector<8x128xf32>
    %107 = arith.addf %105, %106 : vector<8x128xf32>
    %108 = arith.negf %107 : vector<8x128xf32>
    %109 = math.exp %108 : vector<8x128xf32>
    %cst_36 = arith.constant 1.000000e+00 : f32
    %110 = vector.broadcast %cst_36 : f32 to vector<8x128xf32>
    %111 = arith.addf %110, %109 : vector<8x128xf32>
    %112 = arith.divf %110, %111 : vector<8x128xf32>
    %c0_37 = arith.constant 0 : index
    %c0_38 = arith.constant 0 : index
    %113 = vector.load %arg8[%c0_37, %c0_38] : memref<8x128xf32, #tpu.memory_space<vmem>>, vector<8x128xf32>
    tpu.vector_store %arg8[%c0_37, %c0_38], %112 {strides = array<i32>} : memref<8x128xf32, #tpu.memory_space<vmem>>, vector<8x128xf32>,
    return
  }
  func.func @transform_0(%arg0: i32) -> (i32, i32) {
    %c0_i32 = arith.constant 0 : i32
    %c0_i32_0 = arith.constant 0 : i32
    return %arg0, %c0_i32 : i32, i32
  }
  func.func @transform_1(%arg0: i32) -> (i32, i32) {
    %c0_i32 = arith.constant 0 : i32
    %c0_i32_0 = arith.constant 0 : i32
    %c0_i32_1 = arith.constant 0 : i32
    return %c0_i32, %c0_i32_0 : i32, i32
  }
  func.func @transform_2(%arg0: i32) -> (i32, i32) {
    %c0_i32 = arith.constant 0 : i32
    %c0_i32_0 = arith.constant 0 : i32
    %c0_i32_1 = arith.constant 0 : i32
    return %c0_i32, %c0_i32_0 : i32, i32
  }
  func.func @transform_3(%arg0: i32) -> (i32, i32) {
    %c0_i32 = arith.constant 0 : i32
    %c0_i32_0 = arith.constant 0 : i32
    %c0_i32_1 = arith.constant 0 : i32
    return %c0_i32, %c0_i32_0 : i32, i32
  }
  func.func @transform_4(%arg0: i32) -> (i32, i32) {
    %c0_i32 = arith.constant 0 : i32
    %c0_i32_0 = arith.constant 0 : i32
    %c0_i32_1 = arith.constant 0 : i32
    return %c0_i32, %c0_i32_0 : i32, i32
  }
  func.func @transform_5(%arg0: i32) -> (i32, i32) {
    %c0_i32 = arith.constant 0 : i32
    %c0_i32_0 = arith.constant 0 : i32
    %c0_i32_1 = arith.constant 0 : i32
    return %c0_i32, %c0_i32_0 : i32, i32
  }
  func.func @transform_6(%arg0: i32) -> (i32, i32) {
    %c0_i32 = arith.constant 0 : i32
    %c0_i32_0 = arith.constant 0 : i32
    %c0_i32_1 = arith.constant 0 : i32
    return %c0_i32, %c0_i32_0 : i32, i32
  }
  func.func @transform_7(%arg0: i32) -> (i32, i32) {
    %c0_i32 = arith.constant 0 : i32
    %c0_i32_0 = arith.constant 0 : i32
    return %arg0, %c0_i32 : i32, i32
  }
}

</mosaic_0001>

<llo_original>
// kernel: _lambda_.1
$region0: #{_lambda_.1}
  #allocation0 [shape = 'u32[]', space=smem, size = 0x4, offset = 0x4, fixed_abs, tag = 'smem constant byte address 0x4 - core index']
  #allocation1 [shape = 'u32[144,128]{1,0:T(1,128)}', space=vmem, size = 0x12000, scoped, tag = 'internal scratch']
  %s0 = inlined_call_operand.vmem [shape: s32[8,8], index: 0, kind: input, shape index: {}]
  %s1 = inlined_call_operand.vmem [shape: bf16[100,32], index: 1, kind: input, shape index: {}]
  %s2 = inlined_call_operand.vmem [shape: bf16[256,1024], index: 2, kind: input, shape index: {}]
  %s3 = inlined_call_operand.vmem [shape: bf16[1024,512], index: 3, kind: input, shape index: {}]
  %s4 = inlined_call_operand.vmem [shape: bf16[512,256], index: 4, kind: input, shape index: {}]
  %s5 = inlined_call_operand.vmem [shape: bf16[640,128], index: 5, kind: input, shape index: {}]
  %s6 = inlined_call_operand.vmem [shape: f32[8,1024], index: 6, kind: input, shape index: {}]
  %s7 = inlined_call_operand.vmem [shape: f32[8,128], index: 7, kind: output, shape index: {}]
  %s8 = sld [smem:[#allocation0]]
  $region38: #{_lambda_.1} parent=0
    _
  %s10 = ssub.s32 1, %s8
  %s11 = scalar_select 0, %s10, %s8
  // Predicated region
  $region2: #{_lambda_.1} parent=0 // pred_check
    _
  $region3: #{_lambda_.1} parent=0 // pred_check_branch
    %13 = sbr.rel (0) target = $region5
  $region4: #{_lambda_.1} parent=0 // pred_region
    _
  $region5: #{_lambda_.1} parent=0 // pred_fallthru
    _
  // Predicated region
  $region6: #{_lambda_.1} parent=0 // pred_check
    _
  $region7: #{_lambda_.1} parent=0 // pred_check_branch
    %15 = sbr.rel (0) target = $region9
  $region8: #{_lambda_.1} parent=0 // pred_region
    _
  $region9: #{_lambda_.1} parent=0 // pred_fallthru
    _
  // Predicated region
  $region10: #{_lambda_.1} parent=0 // pred_check
    _
  $region11: #{_lambda_.1} parent=0 // pred_check_branch
    %17 = sbr.rel (0) target = $region13
  $region12: #{_lambda_.1} parent=0 // pred_region
    _
  $region13: #{_lambda_.1} parent=0 // pred_fallthru
    _
  // Predicated region
  $region14: #{_lambda_.1} parent=0 // pred_check
    _
  $region15: #{_lambda_.1} parent=0 // pred_check_branch
    %19 = sbr.rel (0) target = $region17
  $region16: #{_lambda_.1} parent=0 // pred_region
    _
  $region17: #{_lambda_.1} parent=0 // pred_fallthru
    _
  // Predicated region
  $region18: #{_lambda_.1} parent=0 // pred_check
    _
  $region19: #{_lambda_.1} parent=0 // pred_check_branch
    %21 = sbr.rel (0) target = $region21
  $region20: #{_lambda_.1} parent=0 // pred_region
    _
  $region21: #{_lambda_.1} parent=0 // pred_fallthru
    _
  // Predicated region
  $region22: #{_lambda_.1} parent=0 // pred_check
    _
  $region23: #{_lambda_.1} parent=0 // pred_check_branch
    %23 = sbr.rel (0) target = $region25
  $region24: #{_lambda_.1} parent=0 // pred_region
    _
  $region25: #{_lambda_.1} parent=0 // pred_fallthru
    _
  // Predicated region
  $region26: #{_lambda_.1} parent=0 // pred_check
    _
  $region27: #{_lambda_.1} parent=0 // pred_check_branch
    %25 = sbr.rel (0) target = $region29
  $region28: #{_lambda_.1} parent=0 // pred_region
    _
  $region29: #{_lambda_.1} parent=0 // pred_fallthru
    _
  %v27 = vld [vmem:[%s0] sm:$0xff]
  %v28 = vld [vmem:[%s1] sm:$0xf]
  %v29 = vld [vmem:[%s1 + $0x4] sm:$0xf]
  %v30 = vld [vmem:[%s1 + $0x8] sm:$0xf]
  %v31 = vld [vmem:[%s1 + $0xc] sm:$0xf]
  %v32 = vld [vmem:[%s1 + $0x10] sm:$0xf]
  %v33 = vld [vmem:[%s1 + $0x14] sm:$0xf]
  %v34 = vld [vmem:[%s1 + $0x18] sm:$0xf]
  %v35 = vld [vmem:[%s1 + $0x1c] sm:$0xf]
  %v36 = vld [vmem:[%s1 + $0x20] sm:$0xf]
  %v37 = vld [vmem:[%s1 + $0x24] sm:$0xf]
  %v38 = vld [vmem:[%s1 + $0x28] sm:$0xf]
  %v39 = vld [vmem:[%s1 + $0x2c] sm:$0xf]
  %v40 = vld [vmem:[%s1 + $0x30] sm:$0x3]
  %v41 = vlaneseq
  %v42 = vand.u32 %v41, 127
  %43 = vset.pattern.permute.xlu0 0
  %44 = vperm.xlu0 %43, %v27
  %v45 = vpop.permute.xlu0 %44
  %vm46 = vcmp.eq.s32.totalorder %v45, %v42
  %v47 = vsel %vm46, 1, 0
  %v48 = vcvt.s32.f32 %v47
  %v49 = vpack.c.bf16 %v48, %v48
  %v63 = vunpack.c.l.b16 %v28
  %v64 = vunpack.c.l.b16 %v29
  %v65 = vunpack.c.l.b16 %v30
  %v66 = vunpack.c.l.b16 %v31
  %v67 = vunpack.c.l.b16 %v32
  %v68 = vunpack.c.l.b16 %v33
  %v69 = vunpack.c.l.b16 %v34
  %v70 = vunpack.c.l.b16 %v35
  %v71 = vunpack.c.l.b16 %v36
  %v72 = vunpack.c.l.b16 %v37
  %v73 = vunpack.c.l.b16 %v38
  %v74 = vunpack.c.l.b16 %v39
  %v75 = vunpack.c.l.b16 %v40
  %v76 = vpack.c.b16 %v64, %v63
  %v77 = vpack.c.b16 %v66, %v65
  %v78 = vpack.c.b16 %v68, %v67
  %v79 = vpack.c.b16 %v70, %v69
  %v80 = vpack.c.b16 %v72, %v71
  %v81 = vpack.c.b16 %v74, %v73
  %v82 = vpack.c.b16 %v75, %v75
  %vm89 = vcmask 818176
  %v91 = vsel %vm89, %v49, 0
  %vm93 = vcmask 1041408
  %v95 = vsel %vm93, %v82, 0
  %97 = vmatprep.subr.bf16.mxu0 0
  %98 = vmatpush1.bf16.msra.mxu0 %v76
  %99 = vmatprep.subr.bf16.mxu0 0
  %100 = vmatpush1.bf16.msra.mxu0 %v77
  %101 = vmatprep.subr.bf16.mxu0 0
  %102 = vmatpush1.bf16.msra.mxu0 %v78
  %103 = vmatprep.subr.bf16.mxu0 0
  %104 = vmatpush1.bf16.msra.mxu0 %v79
  %105 = vmatprep.subr.bf16.mxu0 0
  %106 = vmatpush1.bf16.msra.mxu0 %v80
  %107 = vmatprep.subr.bf16.mxu0 0
  %108 = vmatpush1.bf16.msra.mxu0 %v81
  %109 = vmatprep.subr.bf16.mxu0 0
  %110 = vmatpush1.bf16.msra.mxu0 %v95
  %111 = vmatprep.subr.bf16.mxu0 0
  %112 = vmatpush1.bf16.msra.mxu0 0
  %113 = vmatprep.subr.bf16.mxu0 0
  %114 = vmatpush1.bf16.msra.mxu0 0
  %115 = vmatprep.subr.bf16.mxu0 0
  %116 = vmatpush1.bf16.msra.mxu0 0
  %117 = vmatprep.subr.bf16.mxu0 0
  %118 = vmatpush1.bf16.msra.mxu0 0
  %119 = vmatprep.subr.bf16.mxu0 0
  %120 = vmatpush1.bf16.msra.mxu0 0
  %121 = vmatprep.subr.bf16.mxu0 0
  %122 = vmatpush1.bf16.msra.mxu0 0
  %123 = vmatprep.subr.bf16.mxu0 0
  %124 = vmatpush1.bf16.msra.mxu0 0
  %125 = vmatprep.subr.bf16.mxu0 0
  %126 = vmatpush1.bf16.msra.mxu0 0
  %127 = vmatprep.subr.bf16.mxu0 0
  %128 = vmatpush1.bf16.msra.mxu0 0
  %129 = vmatprep.mubr.bf16.mxu0 0
  %130 = vmatmul.mubr.bf16.gmra.mrb[0].mxu0 %v91
  %v131 = vpop.f32.mrb[0].mxu0
  %v132 = vadd.f32 0.0, %v131
  %v133 = vpop.f32.mrb[0].mxu0
  %v134 = vpop.f32.mrb[0].mxu0
  %v135 = vpop.f32.mrb[0].mxu0
  %136 = vdwg.mxu0
  %137 = vset.pattern.permute.xlu0 1
  %138 = vperm.xlu0 %137, %v27
  %v139 = vpop.permute.xlu0 %138
  %vm140 = vcmp.eq.s32.totalorder %v139, %v42
  %v141 = vsel %vm140, 1, 0
  %v142 = vcvt.s32.f32 %v141
  %v143 = vpack.c.bf16 %v142, %v142
  %v145 = vsel %vm89, %v143, 0
  %147 = vmatprep.subr.bf16.mxu0 0
  %148 = vmatpush1.bf16.msra.mxu0 %v76
  %149 = vmatprep.subr.bf16.mxu0 0
  %150 = vmatpush1.bf16.msra.mxu0 %v77
  %151 = vmatprep.subr.bf16.mxu0 0
  %152 = vmatpush1.bf16.msra.mxu0 %v78
  %153 = vmatprep.subr.bf16.mxu0 0
  %154 = vmatpush1.bf16.msra.mxu0 %v79
  %155 = vmatprep.subr.bf16.mxu0 0
  %156 = vmatpush1.bf16.msra.mxu0 %v80
  %157 = vmatprep.subr.bf16.mxu0 0
  %158 = vmatpush1.bf16.msra.mxu0 %v81
  %159 = vmatprep.subr.bf16.mxu0 0
  %160 = vmatpush1.bf16.msra.mxu0 %v95
  %161 = vmatprep.subr.bf16.mxu0 0
  %162 = vmatpush1.bf16.msra.mxu0 0
  %163 = vmatprep.subr.bf16.mxu0 0
  %164 = vmatpush1.bf16.msra.mxu0 0
  %165 = vmatprep.subr.bf16.mxu0 0
  %166 = vmatpush1.bf16.msra.mxu0 0
  %167 = vmatprep.subr.bf16.mxu0 0
  %168 = vmatpush1.bf16.msra.mxu0 0
  %169 = vmatprep.subr.bf16.mxu0 0
  %170 = vmatpush1.bf16.msra.mxu0 0
  %171 = vmatprep.subr.bf16.mxu0 0
  %172 = vmatpush1.bf16.msra.mxu0 0
  %173 = vmatprep.subr.bf16.mxu0 0
  %174 = vmatpush1.bf16.msra.mxu0 0
  %175 = vmatprep.subr.bf16.mxu0 0
  %176 = vmatpush1.bf16.msra.mxu0 0
  %177 = vmatprep.subr.bf16.mxu0 0
  %178 = vmatpush1.bf16.msra.mxu0 0
  %179 = vmatprep.mubr.bf16.mxu0 0
  %180 = vmatmul.mubr.bf16.gmra.mrb[0].mxu0 %v145
  %v181 = vpop.f32.mrb[0].mxu0
  %v182 = vadd.f32 0.0, %v181
  %v183 = vpop.f32.mrb[0].mxu0
  %v184 = vpop.f32.mrb[0].mxu0
  %v185 = vpop.f32.mrb[0].mxu0
  %186 = vdwg.mxu0
  %187 = vset.pattern.permute.xlu0 2
  %188 = vperm.xlu0 %187, %v27
  %v189 = vpop.permute.xlu0 %188
  %vm190 = vcmp.eq.s32.totalorder %v189, %v42
  %v191 = vsel %vm190, 1, 0
  %v192 = vcvt.s32.f32 %v191
  %v193 = vpack.c.bf16 %v192, %v192
  %v195 = vsel %vm89, %v193, 0
  %197 = vmatprep.subr.bf16.mxu0 0
  %198 = vmatpush1.bf16.msra.mxu0 %v76
  %199 = vmatprep.subr.bf16.mxu0 0
  %200 = vmatpush1.bf16.msra.mxu0 %v77
  %201 = vmatprep.subr.bf16.mxu0 0
  %202 = vmatpush1.bf16.msra.mxu0 %v78
  %203 = vmatprep.subr.bf16.mxu0 0
  %204 = vmatpush1.bf16.msra.mxu0 %v79
  %205 = vmatprep.subr.bf16.mxu0 0
  %206 = vmatpush1.bf16.msra.mxu0 %v80
  %207 = vmatprep.subr.bf16.mxu0 0
  %208 = vmatpush1.bf16.msra.mxu0 %v81
  %209 = vmatprep.subr.bf16.mxu0 0
  %210 = vmatpush1.bf16.msra.mxu0 %v95
  %211 = vmatprep.subr.bf16.mxu0 0
  %212 = vmatpush1.bf16.msra.mxu0 0
  %213 = vmatprep.subr.bf16.mxu0 0
  %214 = vmatpush1.bf16.msra.mxu0 0
  %215 = vmatprep.subr.bf16.mxu0 0
  %216 = vmatpush1.bf16.msra.mxu0 0
  %217 = vmatprep.subr.bf16.mxu0 0
  %218 = vmatpush1.bf16.msra.mxu0 0
  %219 = vmatprep.subr.bf16.mxu0 0
  %220 = vmatpush1.bf16.msra.mxu0 0
  %221 = vmatprep.subr.bf16.mxu0 0
  %222 = vmatpush1.bf16.msra.mxu0 0
  %223 = vmatprep.subr.bf16.mxu0 0
  %224 = vmatpush1.bf16.msra.mxu0 0
  %225 = vmatprep.subr.bf16.mxu0 0
  %226 = vmatpush1.bf16.msra.mxu0 0
  %227 = vmatprep.subr.bf16.mxu0 0
  %228 = vmatpush1.bf16.msra.mxu0 0
  %229 = vmatprep.mubr.bf16.mxu0 0
  %230 = vmatmul.mubr.bf16.gmra.mrb[0].mxu0 %v195
  %v231 = vpop.f32.mrb[0].mxu0
  %v232 = vadd.f32 0.0, %v231
  %v233 = vpop.f32.mrb[0].mxu0
  %v234 = vpop.f32.mrb[0].mxu0
  %v235 = vpop.f32.mrb[0].mxu0
  %236 = vdwg.mxu0
  %237 = vset.pattern.permute.xlu0 3
  %238 = vperm.xlu0 %237, %v27
  %v239 = vpop.permute.xlu0 %238
  %vm240 = vcmp.eq.s32.totalorder %v239, %v42
  %v241 = vsel %vm240, 1, 0
  %v242 = vcvt.s32.f32 %v241
  %v243 = vpack.c.bf16 %v242, %v242
  %v245 = vsel %vm89, %v243, 0
  %247 = vmatprep.subr.bf16.mxu0 0
  %248 = vmatpush1.bf16.msra.mxu0 %v76
  %249 = vmatprep.subr.bf16.mxu0 0
  %250 = vmatpush1.bf16.msra.mxu0 %v77
  %251 = vmatprep.subr.bf16.mxu0 0
  %252 = vmatpush1.bf16.msra.mxu0 %v78
  %253 = vmatprep.subr.bf16.mxu0 0
  %254 = vmatpush1.bf16.msra.mxu0 %v79
  %255 = vmatprep.subr.bf16.mxu0 0
  %256 = vmatpush1.bf16.msra.mxu0 %v80
  %257 = vmatprep.subr.bf16.mxu0 0
  %258 = vmatpush1.bf16.msra.mxu0 %v81
  %259 = vmatprep.subr.bf16.mxu0 0
  %260 = vmatpush1.bf16.msra.mxu0 %v95
  %261 = vmatprep.subr.bf16.mxu0 0
  %262 = vmatpush1.bf16.msra.mxu0 0
  %263 = vmatprep.subr.bf16.mxu0 0
  %264 = vmatpush1.bf16.msra.mxu0 0
  %265 = vmatprep.subr.bf16.mxu0 0
  %266 = vmatpush1.bf16.msra.mxu0 0
  %267 = vmatprep.subr.bf16.mxu0 0
  %268 = vmatpush1.bf16.msra.mxu0 0
  %269 = vmatprep.subr.bf16.mxu0 0
  %270 = vmatpush1.bf16.msra.mxu0 0
  %271 = vmatprep.subr.bf16.mxu0 0
  %272 = vmatpush1.bf16.msra.mxu0 0
  %273 = vmatprep.subr.bf16.mxu0 0
  %274 = vmatpush1.bf16.msra.mxu0 0
  %275 = vmatprep.subr.bf16.mxu0 0
  %276 = vmatpush1.bf16.msra.mxu0 0
  %277 = vmatprep.subr.bf16.mxu0 0
  %278 = vmatpush1.bf16.msra.mxu0 0
  %279 = vmatprep.mubr.bf16.mxu0 0
  %280 = vmatmul.mubr.bf16.gmra.mrb[0].mxu0 %v245
  %v281 = vpop.f32.mrb[0].mxu0
  %v282 = vadd.f32 0.0, %v281
  %v283 = vpop.f32.mrb[0].mxu0
  %v284 = vpop.f32.mrb[0].mxu0
  %v285 = vpop.f32.mrb[0].mxu0
  %286 = vdwg.mxu0
  %287 = vset.pattern.permute.xlu0 4
  %288 = vperm.xlu0 %287, %v27
  %v289 = vpop.permute.xlu0 %288
  %vm290 = vcmp.eq.s32.totalorder %v289, %v42
  %v291 = vsel %vm290, 1, 0
  %v292 = vcvt.s32.f32 %v291
  %v293 = vpack.c.bf16 %v292, %v292
  %v295 = vsel %vm89, %v293, 0
  %297 = vmatprep.subr.bf16.mxu0 0
  %298 = vmatpush1.bf16.msra.mxu0 %v76
  %299 = vmatprep.subr.bf16.mxu0 0
  %300 = vmatpush1.bf16.msra.mxu0 %v77
  %301 = vmatprep.subr.bf16.mxu0 0
  %302 = vmatpush1.bf16.msra.mxu0 %v78
  %303 = vmatprep.subr.bf16.mxu0 0
  %304 = vmatpush1.bf16.msra.mxu0 %v79
  %305 = vmatprep.subr.bf16.mxu0 0
  %306 = vmatpush1.bf16.msra.mxu0 %v80
  %307 = vmatprep.subr.bf16.mxu0 0
  %308 = vmatpush1.bf16.msra.mxu0 %v81
  %309 = vmatprep.subr.bf16.mxu0 0
  %310 = vmatpush1.bf16.msra.mxu0 %v95
  %311 = vmatprep.subr.bf16.mxu0 0
  %312 = vmatpush1.bf16.msra.mxu0 0
  %313 = vmatprep.subr.bf16.mxu0 0
  %314 = vmatpush1.bf16.msra.mxu0 0
  %315 = vmatprep.subr.bf16.mxu0 0
  %316 = vmatpush1.bf16.msra.mxu0 0
  %317 = vmatprep.subr.bf16.mxu0 0
  %318 = vmatpush1.bf16.msra.mxu0 0
  %319 = vmatprep.subr.bf16.mxu0 0
  %320 = vmatpush1.bf16.msra.mxu0 0
  %321 = vmatprep.subr.bf16.mxu0 0
  %322 = vmatpush1.bf16.msra.mxu0 0
  %323 = vmatprep.subr.bf16.mxu0 0
  %324 = vmatpush1.bf16.msra.mxu0 0
  %325 = vmatprep.subr.bf16.mxu0 0
  %326 = vmatpush1.bf16.msra.mxu0 0
  %327 = vmatprep.subr.bf16.mxu0 0
  %328 = vmatpush1.bf16.msra.mxu0 0
  %329 = vmatprep.mubr.bf16.mxu0 0
  %330 = vmatmul.mubr.bf16.gmra.mrb[0].mxu0 %v295
  %v331 = vpop.f32.mrb[0].mxu0
  %v332 = vadd.f32 0.0, %v331
  %v333 = vpop.f32.mrb[0].mxu0
  %v334 = vpop.f32.mrb[0].mxu0
  %v335 = vpop.f32.mrb[0].mxu0
  %336 = vdwg.mxu0
  %337 = vset.pattern.permute.xlu0 5
  %338 = vperm.xlu0 %337, %v27
  %v339 = vpop.permute.xlu0 %338
  %vm340 = vcmp.eq.s32.totalorder %v339, %v42
  %v341 = vsel %vm340, 1, 0
  %v342 = vcvt.s32.f32 %v341
  %v343 = vpack.c.bf16 %v342, %v342
  %v345 = vsel %vm89, %v343, 0
  %347 = vmatprep.subr.bf16.mxu0 0
  %348 = vmatpush1.bf16.msra.mxu0 %v76
  %349 = vmatprep.subr.bf16.mxu0 0
  %350 = vmatpush1.bf16.msra.mxu0 %v77
  %351 = vmatprep.subr.bf16.mxu0 0
  %352 = vmatpush1.bf16.msra.mxu0 %v78
  %353 = vmatprep.subr.bf16.mxu0 0
  %354 = vmatpush1.bf16.msra.mxu0 %v79
  %355 = vmatprep.subr.bf16.mxu0 0
  %356 = vmatpush1.bf16.msra.mxu0 %v80
  %357 = vmatprep.subr.bf16.mxu0 0
  %358 = vmatpush1.bf16.msra.mxu0 %v81
  %359 = vmatprep.subr.bf16.mxu0 0
  %360 = vmatpush1.bf16.msra.mxu0 %v95
  %361 = vmatprep.subr.bf16.mxu0 0
  %362 = vmatpush1.bf16.msra.mxu0 0
  %363 = vmatprep.subr.bf16.mxu0 0
  %364 = vmatpush1.bf16.msra.mxu0 0
  %365 = vmatprep.subr.bf16.mxu0 0
  %366 = vmatpush1.bf16.msra.mxu0 0
  %367 = vmatprep.subr.bf16.mxu0 0
  %368 = vmatpush1.bf16.msra.mxu0 0
  %369 = vmatprep.subr.bf16.mxu0 0
  %370 = vmatpush1.bf16.msra.mxu0 0
  %371 = vmatprep.subr.bf16.mxu0 0
  %372 = vmatpush1.bf16.msra.mxu0 0
  %373 = vmatprep.subr.bf16.mxu0 0
  %374 = vmatpush1.bf16.msra.mxu0 0
  %375 = vmatprep.subr.bf16.mxu0 0
  %376 = vmatpush1.bf16.msra.mxu0 0
  %377 = vmatprep.subr.bf16.mxu0 0
  %378 = vmatpush1.bf16.msra.mxu0 0
  %379 = vmatprep.mubr.bf16.mxu0 0
  %380 = vmatmul.mubr.bf16.gmra.mrb[0].mxu0 %v345
  %v381 = vpop.f32.mrb[0].mxu0
  %v382 = vadd.f32 0.0, %v381
  %v383 = vpop.f32.mrb[0].mxu0
  %v384 = vpop.f32.mrb[0].mxu0
  %v385 = vpop.f32.mrb[0].mxu0
  %386 = vdwg.mxu0
  %387 = vset.pattern.permute.xlu0 6
  %388 = vperm.xlu0 %387, %v27
  %v389 = vpop.permute.xlu0 %388
  %vm390 = vcmp.eq.s32.totalorder %v389, %v42
  %v391 = vsel %vm390, 1, 0
  %v392 = vcvt.s32.f32 %v391
  %v393 = vpack.c.bf16 %v392, %v392
  %v395 = vsel %vm89, %v393, 0
  %397 = vmatprep.subr.bf16.mxu0 0
  %398 = vmatpush1.bf16.msra.mxu0 %v76
  %399 = vmatprep.subr.bf16.mxu0 0
  %400 = vmatpush1.bf16.msra.mxu0 %v77
  %401 = vmatprep.subr.bf16.mxu0 0
  %402 = vmatpush1.bf16.msra.mxu0 %v78
  %403 = vmatprep.subr.bf16.mxu0 0
  %404 = vmatpush1.bf16.msra.mxu0 %v79
  %405 = vmatprep.subr.bf16.mxu0 0
  %406 = vmatpush1.bf16.msra.mxu0 %v80
  %407 = vmatprep.subr.bf16.mxu0 0
  %408 = vmatpush1.bf16.msra.mxu0 %v81
  %409 = vmatprep.subr.bf16.mxu0 0
  %410 = vmatpush1.bf16.msra.mxu0 %v95
  %411 = vmatprep.subr.bf16.mxu0 0
  %412 = vmatpush1.bf16.msra.mxu0 0
  %413 = vmatprep.subr.bf16.mxu0 0
  %414 = vmatpush1.bf16.msra.mxu0 0
  %415 = vmatprep.subr.bf16.mxu0 0
  %416 = vmatpush1.bf16.msra.mxu0 0
  %417 = vmatprep.subr.bf16.mxu0 0
  %418 = vmatpush1.bf16.msra.mxu0 0
  %419 = vmatprep.subr.bf16.mxu0 0
  %420 = vmatpush1.bf16.msra.mxu0 0
  %421 = vmatprep.subr.bf16.mxu0 0
  %422 = vmatpush1.bf16.msra.mxu0 0
  %423 = vmatprep.subr.bf16.mxu0 0
  %424 = vmatpush1.bf16.msra.mxu0 0
  %425 = vmatprep.subr.bf16.mxu0 0
  %426 = vmatpush1.bf16.msra.mxu0 0
  %427 = vmatprep.subr.bf16.mxu0 0
  %428 = vmatpush1.bf16.msra.mxu0 0
  %429 = vmatprep.mubr.bf16.mxu0 0
  %430 = vmatmul.mubr.bf16.gmra.mrb[0].mxu0 %v395
  %v431 = vpop.f32.mrb[0].mxu0
  %v432 = vadd.f32 0.0, %v431
  %v433 = vpop.f32.mrb[0].mxu0
  %v434 = vpop.f32.mrb[0].mxu0
  %v435 = vpop.f32.mrb[0].mxu0
  %436 = vdwg.mxu0
  %437 = vset.pattern.permute.xlu0 7
  %438 = vperm.xlu0 %437, %v27
  %v439 = vpop.permute.xlu0 %438
  %vm440 = vcmp.eq.s32.totalorder %v439, %v42
  %v441 = vsel %vm440, 1, 0
  %v442 = vcvt.s32.f32 %v441
  %v443 = vpack.c.bf16 %v442, %v442
  %v445 = vsel %vm89, %v443, 0
  %447 = vmatprep.subr.bf16.mxu0 0
  %448 = vmatpush1.bf16.msra.mxu0 %v76
  %449 = vmatprep.subr.bf16.mxu0 0
  %450 = vmatpush1.bf16.msra.mxu0 %v77
  %451 = vmatprep.subr.bf16.mxu0 0
  %452 = vmatpush1.bf16.msra.mxu0 %v78
  %453 = vmatprep.subr.bf16.mxu0 0
  %454 = vmatpush1.bf16.msra.mxu0 %v79
  %455 = vmatprep.subr.bf16.mxu0 0
  %456 = vmatpush1.bf16.msra.mxu0 %v80
  %457 = vmatprep.subr.bf16.mxu0 0
  %458 = vmatpush1.bf16.msra.mxu0 %v81
  %459 = vmatprep.subr.bf16.mxu0 0
  %460 = vmatpush1.bf16.msra.mxu0 %v95
  %461 = vmatprep.subr.bf16.mxu0 0
  %462 = vmatpush1.bf16.msra.mxu0 0
  %463 = vmatprep.subr.bf16.mxu0 0
  %464 = vmatpush1.bf16.msra.mxu0 0
  %465 = vmatprep.subr.bf16.mxu0 0
  %466 = vmatpush1.bf16.msra.mxu0 0
  %467 = vmatprep.subr.bf16.mxu0 0
  %468 = vmatpush1.bf16.msra.mxu0 0
  %469 = vmatprep.subr.bf16.mxu0 0
  %470 = vmatpush1.bf16.msra.mxu0 0
  %471 = vmatprep.subr.bf16.mxu0 0
  %472 = vmatpush1.bf16.msra.mxu0 0
  %473 = vmatprep.subr.bf16.mxu0 0
  %474 = vmatpush1.bf16.msra.mxu0 0
  %475 = vmatprep.subr.bf16.mxu0 0
  %476 = vmatpush1.bf16.msra.mxu0 0
  %477 = vmatprep.subr.bf16.mxu0 0
  %478 = vmatpush1.bf16.msra.mxu0 0
  %479 = vmatprep.mubr.bf16.mxu0 0
  %480 = vmatmul.mubr.bf16.gmra.mrb[0].mxu0 %v445
  %v481 = vpop.f32.mrb[0].mxu0
  %v482 = vadd.f32 0.0, %v481
  %v483 = vpop.f32.mrb[0].mxu0
  %v484 = vpop.f32.mrb[0].mxu0
  %v485 = vpop.f32.mrb[0].mxu0
  %486 = vdwg.mxu0
  %488 = vrot.lane.b32.xlu0 %v182, 32
  %v489 = vpop.permute.xlu0 %488
  %492 = vrot.lane.b32.xlu0 %v232, 64
  %v493 = vpop.permute.xlu0 %492
  %496 = vrot.lane.b32.xlu0 %v282, 96
  %v497 = vpop.permute.xlu0 %496
  %500 = vrot.lane.b32.xlu0 %v382, 32
  %v501 = vpop.permute.xlu0 %500
  %504 = vrot.lane.b32.xlu0 %v432, 64
  %v505 = vpop.permute.xlu0 %504
  %508 = vrot.lane.b32.xlu0 %v482, 96
  %v509 = vpop.permute.xlu0 %508
  %vm511 = vcmask 261120
  %v512 = vsel %vm511, %v132, %v489
  %vm513 = vcmask 523264
  %v514 = vsel %vm513, %v512, %v493
  %vm515 = vcmask 785408
  %v516 = vsel %vm515, %v514, %v497
  %v517 = vsel %vm511, %v332, %v501
  %v518 = vsel %vm513, %v517, %v505
  %v519 = vsel %vm515, %v518, %v509
  %v520 = vld [vmem:[%s6] ss:$8 sm:$0xf]
  %v521 = vld [vmem:[%s6] ss:$8 sm:$0xf0]
  %v522 = vor.u32 %v520, %v521
  %s523 = scalar_lea.vmem %s6, 1
  %v524 = vld [vmem:[%s523] ss:$8 sm:$0xf]
  %s525 = scalar_lea.vmem %s6, 2
  %v526 = vld [vmem:[%s525] ss:$8 sm:$0x3]
  %v527 = vld [vmem:[%s6 + $0x3] ss:$0 sm:$0xff]
  %v528 = vld [vmem:[%s6 + $0x4] ss:$0 sm:$0xff]
  %v529 = vld [vmem:[%s6 + $0x5] ss:$0 sm:$0xff]
  %v530 = vld [vmem:[%s6 + $0x6] ss:$0 sm:$0xff]
  %v531 = vld [vmem:[%s5] sm:$0xf]
  %v532 = vld [vmem:[%s5 + $0x4] sm:$0xf]
  %v533 = vld [vmem:[%s5 + $0x8] sm:$0xf]
  %v534 = vld [vmem:[%s5 + $0xc] sm:$0xf]
  %v535 = vld [vmem:[%s5 + $0x10] sm:$0xf]
  %v536 = vld [vmem:[%s5 + $0x14] sm:$0xf]
  %v537 = vld [vmem:[%s5 + $0x18] sm:$0xf]
  %v538 = vld [vmem:[%s5 + $0x1c] sm:$0xf]
  %v539 = vld [vmem:[%s5 + $0x20] sm:$0xf]
  %v540 = vld [vmem:[%s5 + $0x24] sm:$0xf]
  %v541 = vld [vmem:[%s5 + $0x28] sm:$0xf]
  %v542 = vld [vmem:[%s5 + $0x2c] sm:$0xf]
  %v543 = vld [vmem:[%s5 + $0x30] sm:$0xf]
  %v544 = vld [vmem:[%s5 + $0x34] sm:$0xf]
  %v545 = vld [vmem:[%s5 + $0x38] sm:$0xf]
  %v546 = vld [vmem:[%s5 + $0x3c] sm:$0xf]
  %v547 = vld [vmem:[%s5 + $0x40] sm:$0xf]
  %v548 = vld [vmem:[%s5 + $0x44] sm:$0xf]
  %v549 = vld [vmem:[%s5 + $0x48] sm:$0xf]
  %v550 = vld [vmem:[%s5 + $0x4c] sm:$0xf]
  %v551 = vld [vmem:[%s5 + $0x50] sm:$0xf]
  %v552 = vld [vmem:[%s5 + $0x54] sm:$0xf]
  %v553 = vld [vmem:[%s5 + $0x58] sm:$0xf]
  %v554 = vld [vmem:[%s5 + $0x5c] sm:$0xf]
  %v555 = vld [vmem:[%s5 + $0x60] sm:$0xf]
  %v556 = vld [vmem:[%s5 + $0x64] sm:$0xf]
  %v557 = vld [vmem:[%s5 + $0x68] sm:$0xf]
  %v558 = vld [vmem:[%s5 + $0x6c] sm:$0xf]
  %v559 = vld [vmem:[%s5 + $0x70] sm:$0xf]
  %v560 = vld [vmem:[%s5 + $0x74] sm:$0xf]
  %v561 = vld [vmem:[%s5 + $0x78] sm:$0xf]
  %v562 = vld [vmem:[%s5 + $0x7c] sm:$0xf]
  %v563 = vld [vmem:[%s5 + $0x80] sm:$0xf]
  %v564 = vld [vmem:[%s5 + $0x84] sm:$0xf]
  %v565 = vld [vmem:[%s5 + $0x88] sm:$0xf]
  %v566 = vld [vmem:[%s5 + $0x8c] sm:$0xf]
  %v567 = vld [vmem:[%s5 + $0x90] sm:$0xf]
  %v568 = vld [vmem:[%s5 + $0x94] sm:$0xf]
  %v569 = vld [vmem:[%s5 + $0x98] sm:$0xf]
  %v570 = vld [vmem:[%s5 + $0x9c] sm:$0xf]
  %v571 = vld [vmem:[%s5 + $0xa0] sm:$0xf]
  %v572 = vld [vmem:[%s5 + $0xa4] sm:$0xf]
  %v573 = vld [vmem:[%s5 + $0xa8] sm:$0xf]
  %v574 = vld [vmem:[%s5 + $0xac] sm:$0xf]
  %v575 = vld [vmem:[%s5 + $0xb0] sm:$0xf]
  %v576 = vld [vmem:[%s5 + $0xb4] sm:$0xf]
  %v577 = vld [vmem:[%s5 + $0xb8] sm:$0xf]
  %v578 = vld [vmem:[%s5 + $0xbc] sm:$0xf]
  %v579 = vld [vmem:[%s5 + $0xc0] sm:$0xf]
  %v580 = vld [vmem:[%s5 + $0xc4] sm:$0xf]
  %v581 = vld [vmem:[%s5 + $0xc8] sm:$0xf]
  %v582 = vld [vmem:[%s5 + $0xcc] sm:$0xf]
  %v583 = vld [vmem:[%s5 + $0xd0] sm:$0xf]
  %v584 = vld [vmem:[%s5 + $0xd4] sm:$0xf]
  %v585 = vld [vmem:[%s5 + $0xd8] sm:$0xf]
  %v586 = vld [vmem:[%s5 + $0xdc] sm:$0xf]
  %v587 = vld [vmem:[%s5 + $0xe0] sm:$0xf]
  %v588 = vld [vmem:[%s5 + $0xe4] sm:$0xf]
  %v589 = vld [vmem:[%s5 + $0xe8] sm:$0xf]
  %v590 = vld [vmem:[%s5 + $0xec] sm:$0xf]
  %v591 = vld [vmem:[%s5 + $0xf0] sm:$0xf]
  %v592 = vld [vmem:[%s5 + $0xf4] sm:$0xf]
  %v593 = vld [vmem:[%s5 + $0xf8] sm:$0xf]
  %v594 = vld [vmem:[%s5 + $0xfc] sm:$0xf]
  %v595 = vld [vmem:[%s5 + $0x100] sm:$0xf]
  %v596 = vld [vmem:[%s5 + $0x104] sm:$0xf]
  %v597 = vld [vmem:[%s5 + $0x108] sm:$0xf]
  %v598 = vld [vmem:[%s5 + $0x10c] sm:$0xf]
  %v599 = vld [vmem:[%s5 + $0x110] sm:$0xf]
  %v600 = vld [vmem:[%s5 + $0x114] sm:$0xf]
  %v601 = vld [vmem:[%s5 + $0x118] sm:$0xf]
  %v602 = vld [vmem:[%s5 + $0x11c] sm:$0xf]
  %v603 = vld [vmem:[%s5 + $0x120] sm:$0xf]
  %v604 = vld [vmem:[%s5 + $0x124] sm:$0xf]
  %v605 = vld [vmem:[%s5 + $0x128] sm:$0xf]
  %v606 = vld [vmem:[%s5 + $0x12c] sm:$0xf]
  %v607 = vld [vmem:[%s5 + $0x130] sm:$0xf]
  %v608 = vld [vmem:[%s5 + $0x134] sm:$0xf]
  %v609 = vld [vmem:[%s5 + $0x138] sm:$0xf]
  %v610 = vld [vmem:[%s5 + $0x13c] sm:$0xf]
  %v611 = vld [vmem:[%s2] sm:$0xff]
  %v612 = vld [vmem:[%s2 + $0x8] sm:$0xff]
  %v613 = vld [vmem:[%s2 + $0x10] sm:$0xff]
  %v614 = vld [vmem:[%s2 + $0x18] sm:$0xff]
  %v615 = vld [vmem:[%s2 + $0x20] sm:$0xff]
  %v616 = vld [vmem:[%s2 + $0x28] sm:$0xff]
  %v617 = vld [vmem:[%s2 + $0x30] sm:$0xff]
  %v618 = vld [vmem:[%s2 + $0x38] sm:$0xff]
  %v619 = vld [vmem:[%s2 + $0x40] sm:$0xff]
  %v620 = vld [vmem:[%s2 + $0x48] sm:$0xff]
  %v621 = vld [vmem:[%s2 + $0x50] sm:$0xff]
  %v622 = vld [vmem:[%s2 + $0x58] sm:$0xff]
  %v623 = vld [vmem:[%s2 + $0x60] sm:$0xff]
  %v624 = vld [vmem:[%s2 + $0x68] sm:$0xff]
  %v625 = vld [vmem:[%s2 + $0x70] sm:$0xff]
  %v626 = vld [vmem:[%s2 + $0x78] sm:$0xff]
  %v627 = vld [vmem:[%s2 + $0x80] sm:$0xff]
  %v628 = vld [vmem:[%s2 + $0x88] sm:$0xff]
  %v629 = vld [vmem:[%s2 + $0x90] sm:$0xff]
  %v630 = vld [vmem:[%s2 + $0x98] sm:$0xff]
  %v631 = vld [vmem:[%s2 + $0xa0] sm:$0xff]
  %v632 = vld [vmem:[%s2 + $0xa8] sm:$0xff]
  %v633 = vld [vmem:[%s2 + $0xb0] sm:$0xff]
  %v634 = vld [vmem:[%s2 + $0xb8] sm:$0xff]
  %v635 = vld [vmem:[%s2 + $0xc0] sm:$0xff]
  %v636 = vld [vmem:[%s2 + $0xc8] sm:$0xff]
  %v637 = vld [vmem:[%s2 + $0xd0] sm:$0xff]
  %v638 = vld [vmem:[%s2 + $0xd8] sm:$0xff]
  %v639 = vld [vmem:[%s2 + $0xe0] sm:$0xff]
  %v640 = vld [vmem:[%s2 + $0xe8] sm:$0xff]
  %v641 = vld [vmem:[%s2 + $0xf0] sm:$0xff]
  %v642 = vld [vmem:[%s2 + $0xf8] sm:$0xff]
  %v643 = vld [vmem:[%s2 + $0x100] sm:$0xff]
  %v644 = vld [vmem:[%s2 + $0x108] sm:$0xff]
  %v645 = vld [vmem:[%s2 + $0x110] sm:$0xff]
  %v646 = vld [vmem:[%s2 + $0x118] sm:$0xff]
  %v647 = vld [vmem:[%s2 + $0x120] sm:$0xff]
  %v648 = vld [vmem:[%s2 + $0x128] sm:$0xff]
  %v649 = vld [vmem:[%s2 + $0x130] sm:$0xff]
  %v650 = vld [vmem:[%s2 + $0x138] sm:$0xff]
  %v651 = vld [vmem:[%s2 + $0x140] sm:$0xff]
  %v652 = vld [vmem:[%s2 + $0x148] sm:$0xff]
  %v653 = vld [vmem:[%s2 + $0x150] sm:$0xff]
  %v654 = vld [vmem:[%s2 + $0x158] sm:$0xff]
  %v655 = vld [vmem:[%s2 + $0x160] sm:$0xff]
  %v656 = vld [vmem:[%s2 + $0x168] sm:$0xff]
  %v657 = vld [vmem:[%s2 + $0x170] sm:$0xff]
  %v658 = vld [vmem:[%s2 + $0x178] sm:$0xff]
  %v659 = vld [vmem:[%s2 + $0x180] sm:$0xff]
  %v660 = vld [vmem:[%s2 + $0x188] sm:$0xff]
  %v661 = vld [vmem:[%s2 + $0x190] sm:$0xff]
  %v662 = vld [vmem:[%s2 + $0x198] sm:$0xff]
  %v663 = vld [vmem:[%s2 + $0x1a0] sm:$0xff]
  %v664 = vld [vmem:[%s2 + $0x1a8] sm:$0xff]
  %v665 = vld [vmem:[%s2 + $0x1b0] sm:$0xff]
  %v666 = vld [vmem:[%s2 + $0x1b8] sm:$0xff]
  %v667 = vld [vmem:[%s2 + $0x1c0] sm:$0xff]
  %v668 = vld [vmem:[%s2 + $0x1c8] sm:$0xff]
  %v669 = vld [vmem:[%s2 + $0x1d0] sm:$0xff]
  %v670 = vld [vmem:[%s2 + $0x1d8] sm:$0xff]
  %v671 = vld [vmem:[%s2 + $0x1e0] sm:$0xff]
  %v672 = vld [vmem:[%s2 + $0x1e8] sm:$0xff]
  %v673 = vld [vmem:[%s2 + $0x1f0] sm:$0xff]
  %v674 = vld [vmem:[%s2 + $0x1f8] sm:$0xff]
  %v675 = vld [vmem:[%s2 + $0x200] sm:$0xff]
  %v676 = vld [vmem:[%s2 + $0x208] sm:$0xff]
  %v677 = vld [vmem:[%s2 + $0x210] sm:$0xff]
  %v678 = vld [vmem:[%s2 + $0x218] sm:$0xff]
  %v679 = vld [vmem:[%s2 + $0x220] sm:$0xff]
  %v680 = vld [vmem:[%s2 + $0x228] sm:$0xff]
  %v681 = vld [vmem:[%s2 + $0x230] sm:$0xff]
  %v682 = vld [vmem:[%s2 + $0x238] sm:$0xff]
  %v683 = vld [vmem:[%s2 + $0x240] sm:$0xff]
  %v684 = vld [vmem:[%s2 + $0x248] sm:$0xff]
  %v685 = vld [vmem:[%s2 + $0x250] sm:$0xff]
  %v686 = vld [vmem:[%s2 + $0x258] sm:$0xff]
  %v687 = vld [vmem:[%s2 + $0x260] sm:$0xff]
  %v688 = vld [vmem:[%s2 + $0x268] sm:$0xff]
  %v689 = vld [vmem:[%s2 + $0x270] sm:$0xff]
  %v690 = vld [vmem:[%s2 + $0x278] sm:$0xff]
  %v691 = vld [vmem:[%s2 + $0x280] sm:$0xff]
  %v692 = vld [vmem:[%s2 + $0x288] sm:$0xff]
  %v693 = vld [vmem:[%s2 + $0x290] sm:$0xff]
  %v694 = vld [vmem:[%s2 + $0x298] sm:$0xff]
  %v695 = vld [vmem:[%s2 + $0x2a0] sm:$0xff]
  %v696 = vld [vmem:[%s2 + $0x2a8] sm:$0xff]
  %v697 = vld [vmem:[%s2 + $0x2b0] sm:$0xff]
  %v698 = vld [vmem:[%s2 + $0x2b8] sm:$0xff]
  %v699 = vld [vmem:[%s2 + $0x2c0] sm:$0xff]
  %v700 = vld [vmem:[%s2 + $0x2c8] sm:$0xff]
  %v701 = vld [vmem:[%s2 + $0x2d0] sm:$0xff]
  %v702 = vld [vmem:[%s2 + $0x2d8] sm:$0xff]
  %v703 = vld [vmem:[%s2 + $0x2e0] sm:$0xff]
  %v704 = vld [vmem:[%s2 + $0x2e8] sm:$0xff]
  %v705 = vld [vmem:[%s2 + $0x2f0] sm:$0xff]
  %v706 = vld [vmem:[%s2 + $0x2f8] sm:$0xff]
  %v707 = vld [vmem:[%s2 + $0x300] sm:$0xff]
  %v708 = vld [vmem:[%s2 + $0x308] sm:$0xff]
  %v709 = vld [vmem:[%s2 + $0x310] sm:$0xff]
  %v710 = vld [vmem:[%s2 + $0x318] sm:$0xff]
  %v711 = vld [vmem:[%s2 + $0x320] sm:$0xff]
  %v712 = vld [vmem:[%s2 + $0x328] sm:$0xff]
  %v713 = vld [vmem:[%s2 + $0x330] sm:$0xff]
  %v714 = vld [vmem:[%s2 + $0x338] sm:$0xff]
  %v715 = vld [vmem:[%s2 + $0x340] sm:$0xff]
  %v716 = vld [vmem:[%s2 + $0x348] sm:$0xff]
  %v717 = vld [vmem:[%s2 + $0x350] sm:$0xff]
  %v718 = vld [vmem:[%s2 + $0x358] sm:$0xff]
  %v719 = vld [vmem:[%s2 + $0x360] sm:$0xff]
  %v720 = vld [vmem:[%s2 + $0x368] sm:$0xff]
  %v721 = vld [vmem:[%s2 + $0x370] sm:$0xff]
  %v722 = vld [vmem:[%s2 + $0x378] sm:$0xff]
  %v723 = vld [vmem:[%s2 + $0x380] sm:$0xff]
  %v724 = vld [vmem:[%s2 + $0x388] sm:$0xff]
  %v725 = vld [vmem:[%s2 + $0x390] sm:$0xff]
  %v726 = vld [vmem:[%s2 + $0x398] sm:$0xff]
  %v727 = vld [vmem:[%s2 + $0x3a0] sm:$0xff]
  %v728 = vld [vmem:[%s2 + $0x3a8] sm:$0xff]
  %v729 = vld [vmem:[%s2 + $0x3b0] sm:$0xff]
  %v730 = vld [vmem:[%s2 + $0x3b8] sm:$0xff]
  %v731 = vld [vmem:[%s2 + $0x3c0] sm:$0xff]
  %v732 = vld [vmem:[%s2 + $0x3c8] sm:$0xff]
  %v733 = vld [vmem:[%s2 + $0x3d0] sm:$0xff]
  %v734 = vld [vmem:[%s2 + $0x3d8] sm:$0xff]
  %v735 = vld [vmem:[%s2 + $0x3e0] sm:$0xff]
  %v736 = vld [vmem:[%s2 + $0x3e8] sm:$0xff]
  %v737 = vld [vmem:[%s2 + $0x3f0] sm:$0xff]
  %v738 = vld [vmem:[%s2 + $0x3f8] sm:$0xff]
  %v739 = vpack.c.bf16 %v516, %v516
  %v740 = vpack.c.bf16 %v519, %v519
  %v742 = vlaneseq
  %v743 = vshrl.u32 %v742, 7
  %v744 = vsub.s32 0, %v743
  %v745 = vrot.slane %v522, %v744
  %v746 = vlaneseq
  %v747 = vshrl.u32 %v746, 7
  %v748 = vsub.s32 1, %v747
  %v749 = vrot.slane %v522, %v748
  %v750 = vlaneseq
  %v751 = vshrl.u32 %v750, 7
  %v752 = vsub.s32 2, %v751
  %v753 = vrot.slane %v522, %v752
  %v754 = vlaneseq
  %v755 = vshrl.u32 %v754, 7
  %v756 = vsub.s32 3, %v755
  %v757 = vrot.slane %v522, %v756
  %v758 = vlaneseq
  %v759 = vshrl.u32 %v758, 7
  %v760 = vsub.s32 4, %v759
  %v761 = vrot.slane %v522, %v760
  %v762 = vlaneseq
  %v763 = vshrl.u32 %v762, 7
  %v764 = vsub.s32 5, %v763
  %v765 = vrot.slane %v522, %v764
  %v766 = vlaneseq
  %v767 = vshrl.u32 %v766, 7
  %v768 = vsub.s32 6, %v767
  %v769 = vrot.slane %v522, %v768
  %v770 = vlaneseq
  %v771 = vshrl.u32 %v770, 7
  %v772 = vsub.s32 7, %v771
  %v773 = vrot.slane %v522, %v772
  %v910 = vunpack.c.l.b16 %v611
  %v911 = vunpack.c.h.b16 %v611
  %v912 = vunpack.c.l.b16 %v612
  %v913 = vunpack.c.h.b16 %v612
  %v914 = vunpack.c.l.b16 %v613
  %v915 = vunpack.c.h.b16 %v613
  %v916 = vunpack.c.l.b16 %v614
  %v917 = vunpack.c.h.b16 %v614
  %v918 = vunpack.c.l.b16 %v615
  %v919 = vunpack.c.h.b16 %v615
  %v920 = vunpack.c.l.b16 %v616
  %v921 = vunpack.c.h.b16 %v616
  %v922 = vunpack.c.l.b16 %v617
  %v923 = vunpack.c.h.b16 %v617
  %v924 = vunpack.c.l.b16 %v618
  %v925 = vunpack.c.h.b16 %v618
  %v926 = vunpack.c.l.b16 %v619
  %v927 = vunpack.c.h.b16 %v619
  %v928 = vunpack.c.l.b16 %v620
  %v929 = vunpack.c.h.b16 %v620
  %v930 = vunpack.c.l.b16 %v621
  %v931 = vunpack.c.h.b16 %v621
  %v932 = vunpack.c.l.b16 %v622
  %v933 = vunpack.c.h.b16 %v622
  %v934 = vunpack.c.l.b16 %v623
  %v935 = vunpack.c.h.b16 %v623
  %v936 = vunpack.c.l.b16 %v624
  %v937 = vunpack.c.h.b16 %v624
  %v938 = vunpack.c.l.b16 %v625
  %v939 = vunpack.c.h.b16 %v625
  %v940 = vunpack.c.l.b16 %v626
  %v941 = vunpack.c.h.b16 %v626
  %v942 = vunpack.c.l.b16 %v627
  %v943 = vunpack.c.h.b16 %v627
  %v944 = vunpack.c.l.b16 %v628
  %v945 = vunpack.c.h.b16 %v628
  %v946 = vunpack.c.l.b16 %v629
  %v947 = vunpack.c.h.b16 %v629
  %v948 = vunpack.c.l.b16 %v630
  %v949 = vunpack.c.h.b16 %v630
  %v950 = vunpack.c.l.b16 %v631
  %v951 = vunpack.c.h.b16 %v631
  %v952 = vunpack.c.l.b16 %v632
  %v953 = vunpack.c.h.b16 %v632
  %v954 = vunpack.c.l.b16 %v633
  %v955 = vunpack.c.h.b16 %v633
  %v956 = vunpack.c.l.b16 %v634
  %v957 = vunpack.c.h.b16 %v634
  %v958 = vunpack.c.l.b16 %v635
  %v959 = vunpack.c.h.b16 %v635
  %v960 = vunpack.c.l.b16 %v636
  %v961 = vunpack.c.h.b16 %v636
  %v962 = vunpack.c.l.b16 %v637
  %v963 = vunpack.c.h.b16 %v637
  %v964 = vunpack.c.l.b16 %v638
  %v965 = vunpack.c.h.b16 %v638
  %v966 = vunpack.c.l.b16 %v639
  %v967 = vunpack.c.h.b16 %v639
  %v968 = vunpack.c.l.b16 %v640
  %v969 = vunpack.c.h.b16 %v640
  %v970 = vunpack.c.l.b16 %v641
  %v971 = vunpack.c.h.b16 %v641
  %v972 = vunpack.c.l.b16 %v642
  %v973 = vunpack.c.h.b16 %v642
  %v974 = vunpack.c.l.b16 %v643
  %v975 = vunpack.c.h.b16 %v643
  %v976 = vunpack.c.l.b16 %v644
  %v977 = vunpack.c.h.b16 %v644
  %v978 = vunpack.c.l.b16 %v645
  %v979 = vunpack.c.h.b16 %v645
  %v980 = vunpack.c.l.b16 %v646
  %v981 = vunpack.c.h.b16 %v646
  %v982 = vunpack.c.l.b16 %v647
  %v983 = vunpack.c.h.b16 %v647
  %v984 = vunpack.c.l.b16 %v648
  %v985 = vunpack.c.h.b16 %v648
  %v986 = vunpack.c.l.b16 %v649
  %v987 = vunpack.c.h.b16 %v649
  %v988 = vunpack.c.l.b16 %v650
  %v989 = vunpack.c.h.b16 %v650
  %v990 = vunpack.c.l.b16 %v651
  %v991 = vunpack.c.h.b16 %v651
  %v992 = vunpack.c.l.b16 %v652
  %v993 = vunpack.c.h.b16 %v652
  %v994 = vunpack.c.l.b16 %v653
  %v995 = vunpack.c.h.b16 %v653
  %v996 = vunpack.c.l.b16 %v654
  %v997 = vunpack.c.h.b16 %v654
  %v998 = vunpack.c.l.b16 %v655
  %v999 = vunpack.c.h.b16 %v655
  %v1000 = vunpack.c.l.b16 %v656
  %v1001 = vunpack.c.h.b16 %v656
  %v1002 = vunpack.c.l.b16 %v657
  %v1003 = vunpack.c.h.b16 %v657
  %v1004 = vunpack.c.l.b16 %v658
  %v1005 = vunpack.c.h.b16 %v658
  %v1006 = vunpack.c.l.b16 %v659
  %v1007 = vunpack.c.h.b16 %v659
  %v1008 = vunpack.c.l.b16 %v660
  %v1009 = vunpack.c.h.b16 %v660
  %v1010 = vunpack.c.l.b16 %v661
  %v1011 = vunpack.c.h.b16 %v661
  %v1012 = vunpack.c.l.b16 %v662
  %v1013 = vunpack.c.h.b16 %v662
  %v1014 = vunpack.c.l.b16 %v663
  %v1015 = vunpack.c.h.b16 %v663
  %v1016 = vunpack.c.l.b16 %v664
  %v1017 = vunpack.c.h.b16 %v664
  %v1018 = vunpack.c.l.b16 %v665
  %v1019 = vunpack.c.h.b16 %v665
  %v1020 = vunpack.c.l.b16 %v666
  %v1021 = vunpack.c.h.b16 %v666
  %v1022 = vunpack.c.l.b16 %v667
  %v1023 = vunpack.c.h.b16 %v667
  %v1024 = vunpack.c.l.b16 %v668
  %v1025 = vunpack.c.h.b16 %v668
  %v1026 = vunpack.c.l.b16 %v669
  %v1027 = vunpack.c.h.b16 %v669
  %v1028 = vunpack.c.l.b16 %v670
  %v1029 = vunpack.c.h.b16 %v670
  %v1030 = vunpack.c.l.b16 %v671
  %v1031 = vunpack.c.h.b16 %v671
  %v1032 = vunpack.c.l.b16 %v672
  %v1033 = vunpack.c.h.b16 %v672
  %v1034 = vunpack.c.l.b16 %v673
  %v1035 = vunpack.c.h.b16 %v673
  %v1036 = vunpack.c.l.b16 %v674
  %v1037 = vunpack.c.h.b16 %v674
  %v1038 = vunpack.c.l.b16 %v675
  %v1039 = vunpack.c.h.b16 %v675
  %v1040 = vunpack.c.l.b16 %v676
  %v1041 = vunpack.c.h.b16 %v676
  %v1042 = vunpack.c.l.b16 %v677
  %v1043 = vunpack.c.h.b16 %v677
  %v1044 = vunpack.c.l.b16 %v678
  %v1045 = vunpack.c.h.b16 %v678
  %v1046 = vunpack.c.l.b16 %v679
  %v1047 = vunpack.c.h.b16 %v679
  %v1048 = vunpack.c.l.b16 %v680
  %v1049 = vunpack.c.h.b16 %v680
  %v1050 = vunpack.c.l.b16 %v681
  %v1051 = vunpack.c.h.b16 %v681
  %v1052 = vunpack.c.l.b16 %v682
  %v1053 = vunpack.c.h.b16 %v682
  %v1054 = vunpack.c.l.b16 %v683
  %v1055 = vunpack.c.h.b16 %v683
  %v1056 = vunpack.c.l.b16 %v684
  %v1057 = vunpack.c.h.b16 %v684
  %v1058 = vunpack.c.l.b16 %v685
  %v1059 = vunpack.c.h.b16 %v685
  %v1060 = vunpack.c.l.b16 %v686
  %v1061 = vunpack.c.h.b16 %v686
  %v1062 = vunpack.c.l.b16 %v687
  %v1063 = vunpack.c.h.b16 %v687
  %v1064 = vunpack.c.l.b16 %v688
  %v1065 = vunpack.c.h.b16 %v688
  %v1066 = vunpack.c.l.b16 %v689
  %v1067 = vunpack.c.h.b16 %v689
  %v1068 = vunpack.c.l.b16 %v690
  %v1069 = vunpack.c.h.b16 %v690
  %v1070 = vunpack.c.l.b16 %v691
  %v1071 = vunpack.c.h.b16 %v691
  %v1072 = vunpack.c.l.b16 %v692
  %v1073 = vunpack.c.h.b16 %v692
  %v1074 = vunpack.c.l.b16 %v693
  %v1075 = vunpack.c.h.b16 %v693
  %v1076 = vunpack.c.l.b16 %v694
  %v1077 = vunpack.c.h.b16 %v694
  %v1078 = vunpack.c.l.b16 %v695
  %v1079 = vunpack.c.h.b16 %v695
  %v1080 = vunpack.c.l.b16 %v696
  %v1081 = vunpack.c.h.b16 %v696
  %v1082 = vunpack.c.l.b16 %v697
  %v1083 = vunpack.c.h.b16 %v697
  %v1084 = vunpack.c.l.b16 %v698
  %v1085 = vunpack.c.h.b16 %v698
  %v1086 = vunpack.c.l.b16 %v699
  %v1087 = vunpack.c.h.b16 %v699
  %v1088 = vunpack.c.l.b16 %v700
  %v1089 = vunpack.c.h.b16 %v700
  %v1090 = vunpack.c.l.b16 %v701
  %v1091 = vunpack.c.h.b16 %v701
  %v1092 = vunpack.c.l.b16 %v702
  %v1093 = vunpack.c.h.b16 %v702
  %v1094 = vunpack.c.l.b16 %v703
  %v1095 = vunpack.c.h.b16 %v703
  %v1096 = vunpack.c.l.b16 %v704
  %v1097 = vunpack.c.h.b16 %v704
  %v1098 = vunpack.c.l.b16 %v705
  %v1099 = vunpack.c.h.b16 %v705
  %v1100 = vunpack.c.l.b16 %v706
  %v1101 = vunpack.c.h.b16 %v706
  %v1102 = vunpack.c.l.b16 %v707
  %v1103 = vunpack.c.h.b16 %v707
  %v1104 = vunpack.c.l.b16 %v708
  %v1105 = vunpack.c.h.b16 %v708
  %v1106 = vunpack.c.l.b16 %v709
  %v1107 = vunpack.c.h.b16 %v709
  %v1108 = vunpack.c.l.b16 %v710
  %v1109 = vunpack.c.h.b16 %v710
  %v1110 = vunpack.c.l.b16 %v711
  %v1111 = vunpack.c.h.b16 %v711
  %v1112 = vunpack.c.l.b16 %v712
  %v1113 = vunpack.c.h.b16 %v712
  %v1114 = vunpack.c.l.b16 %v713
  %v1115 = vunpack.c.h.b16 %v713
  %v1116 = vunpack.c.l.b16 %v714
  %v1117 = vunpack.c.h.b16 %v714
  %v1118 = vunpack.c.l.b16 %v715
  %v1119 = vunpack.c.h.b16 %v715
  %v1120 = vunpack.c.l.b16 %v716
  %v1121 = vunpack.c.h.b16 %v716
  %v1122 = vunpack.c.l.b16 %v717
  %v1123 = vunpack.c.h.b16 %v717
  %v1124 = vunpack.c.l.b16 %v718
  %v1125 = vunpack.c.h.b16 %v718
  %v1126 = vunpack.c.l.b16 %v719
  %v1127 = vunpack.c.h.b16 %v719
  %v1128 = vunpack.c.l.b16 %v720
  %v1129 = vunpack.c.h.b16 %v720
  %v1130 = vunpack.c.l.b16 %v721
  %v1131 = vunpack.c.h.b16 %v721
  %v1132 = vunpack.c.l.b16 %v722
  %v1133 = vunpack.c.h.b16 %v722
  %v1134 = vunpack.c.l.b16 %v723
  %v1135 = vunpack.c.h.b16 %v723
  %v1136 = vunpack.c.l.b16 %v724
  %v1137 = vunpack.c.h.b16 %v724
  %v1138 = vunpack.c.l.b16 %v725
  %v1139 = vunpack.c.h.b16 %v725
  %v1140 = vunpack.c.l.b16 %v726
  %v1141 = vunpack.c.h.b16 %v726
  %v1142 = vunpack.c.l.b16 %v727
  %v1143 = vunpack.c.h.b16 %v727
  %v1144 = vunpack.c.l.b16 %v728
  %v1145 = vunpack.c.h.b16 %v728
  %v1146 = vunpack.c.l.b16 %v729
  %v1147 = vunpack.c.h.b16 %v729
  %v1148 = vunpack.c.l.b16 %v730
  %v1149 = vunpack.c.h.b16 %v730
  %v1150 = vunpack.c.l.b16 %v731
  %v1151 = vunpack.c.h.b16 %v731
  %v1152 = vunpack.c.l.b16 %v732
  %v1153 = vunpack.c.h.b16 %v732
  %v1154 = vunpack.c.l.b16 %v733
  %v1155 = vunpack.c.h.b16 %v733
  %v1156 = vunpack.c.l.b16 %v734
  %v1157 = vunpack.c.h.b16 %v734
  %v1158 = vunpack.c.l.b16 %v735
  %v1159 = vunpack.c.h.b16 %v735
  %v1160 = vunpack.c.l.b16 %v736
  %v1161 = vunpack.c.h.b16 %v736
  %v1162 = vunpack.c.l.b16 %v737
  %v1163 = vunpack.c.h.b16 %v737
  %v1164 = vunpack.c.l.b16 %v738
  %v1165 = vunpack.c.h.b16 %v738
  %v1166 = vpack.c.b16 %v918, %v910
  %v1167 = vpack.c.b16 %v919, %v911
  %v1168 = vpack.c.b16 %v920, %v912
  %v1169 = vpack.c.b16 %v921, %v913
  %v1170 = vpack.c.b16 %v922, %v914
  %v1171 = vpack.c.b16 %v923, %v915
  %v1172 = vpack.c.b16 %v924, %v916
  %v1173 = vpack.c.b16 %v925, %v917
  %v1174 = vpack.c.b16 %v934, %v926
  %v1175 = vpack.c.b16 %v935, %v927
  %v1176 = vpack.c.b16 %v936, %v928
  %v1177 = vpack.c.b16 %v937, %v929
  %v1178 = vpack.c.b16 %v938, %v930
  %v1179 = vpack.c.b16 %v939, %v931
  %v1180 = vpack.c.b16 %v940, %v932
  %v1181 = vpack.c.b16 %v941, %v933
  %v1182 = vpack.c.b16 %v950, %v942
  %v1183 = vpack.c.b16 %v951, %v943
  %v1184 = vpack.c.b16 %v952, %v944
  %v1185 = vpack.c.b16 %v953, %v945
  %v1186 = vpack.c.b16 %v954, %v946
  %v1187 = vpack.c.b16 %v955, %v947
  %v1188 = vpack.c.b16 %v956, %v948
  %v1189 = vpack.c.b16 %v957, %v949
  %v1190 = vpack.c.b16 %v966, %v958
  %v1191 = vpack.c.b16 %v967, %v959
  %v1192 = vpack.c.b16 %v968, %v960
  %v1193 = vpack.c.b16 %v969, %v961
  %v1194 = vpack.c.b16 %v970, %v962
  %v1195 = vpack.c.b16 %v971, %v963
  %v1196 = vpack.c.b16 %v972, %v964
  %v1197 = vpack.c.b16 %v973, %v965
  %v1198 = vpack.c.b16 %v982, %v974
  %v1199 = vpack.c.b16 %v983, %v975
  %v1200 = vpack.c.b16 %v984, %v976
  %v1201 = vpack.c.b16 %v985, %v977
  %v1202 = vpack.c.b16 %v986, %v978
  %v1203 = vpack.c.b16 %v987, %v979
  %v1204 = vpack.c.b16 %v988, %v980
  %v1205 = vpack.c.b16 %v989, %v981
  %v1206 = vpack.c.b16 %v998, %v990
  %v1207 = vpack.c.b16 %v999, %v991
  %v1208 = vpack.c.b16 %v1000, %v992
  %v1209 = vpack.c.b16 %v1001, %v993
  %v1210 = vpack.c.b16 %v1002, %v994
  %v1211 = vpack.c.b16 %v1003, %v995
  %v1212 = vpack.c.b16 %v1004, %v996
  %v1213 = vpack.c.b16 %v1005, %v997
  %v1214 = vpack.c.b16 %v1014, %v1006
  %v1215 = vpack.c.b16 %v1015, %v1007
  %v1216 = vpack.c.b16 %v1016, %v1008
  %v1217 = vpack.c.b16 %v1017, %v1009
  %v1218 = vpack.c.b16 %v1018, %v1010
  %v1219 = vpack.c.b16 %v1019, %v1011
  %v1220 = vpack.c.b16 %v1020, %v1012
  %v1221 = vpack.c.b16 %v1021, %v1013
  %v1222 = vpack.c.b16 %v1030, %v1022
  %v1223 = vpack.c.b16 %v1031, %v1023
  %v1224 = vpack.c.b16 %v1032, %v1024
  %v1225 = vpack.c.b16 %v1033, %v1025
  %v1226 = vpack.c.b16 %v1034, %v1026
  %v1227 = vpack.c.b16 %v1035, %v1027
  %v1228 = vpack.c.b16 %v1036, %v1028
  %v1229 = vpack.c.b16 %v1037, %v1029
  %v1230 = vpack.c.b16 %v1046, %v1038
  %v1231 = vpack.c.b16 %v1047, %v1039
  %v1232 = vpack.c.b16 %v1048, %v1040
  %v1233 = vpack.c.b16 %v1049, %v1041
  %v1234 = vpack.c.b16 %v1050, %v1042
  %v1235 = vpack.c.b16 %v1051, %v1043
  %v1236 = vpack.c.b16 %v1052, %v1044
  %v1237 = vpack.c.b16 %v1053, %v1045
  %v1238 = vpack.c.b16 %v1062, %v1054
  %v1239 = vpack.c.b16 %v1063, %v1055
  %v1240 = vpack.c.b16 %v1064, %v1056
  %v1241 = vpack.c.b16 %v1065, %v1057
  %v1242 = vpack.c.b16 %v1066, %v1058
  %v1243 = vpack.c.b16 %v1067, %v1059
  %v1244 = vpack.c.b16 %v1068, %v1060
  %v1245 = vpack.c.b16 %v1069, %v1061
  %v1246 = vpack.c.b16 %v1078, %v1070
  %v1247 = vpack.c.b16 %v1079, %v1071
  %v1248 = vpack.c.b16 %v1080, %v1072
  %v1249 = vpack.c.b16 %v1081, %v1073
  %v1250 = vpack.c.b16 %v1082, %v1074
  %v1251 = vpack.c.b16 %v1083, %v1075
  %v1252 = vpack.c.b16 %v1084, %v1076
  %v1253 = vpack.c.b16 %v1085, %v1077
  %v1254 = vpack.c.b16 %v1094, %v1086
  %v1255 = vpack.c.b16 %v1095, %v1087
  %v1256 = vpack.c.b16 %v1096, %v1088
  %v1257 = vpack.c.b16 %v1097, %v1089
  %v1258 = vpack.c.b16 %v1098, %v1090
  %v1259 = vpack.c.b16 %v1099, %v1091
  %v1260 = vpack.c.b16 %v1100, %v1092
  %v1261 = vpack.c.b16 %v1101, %v1093
  %v1262 = vpack.c.b16 %v1110, %v1102
  %v1263 = vpack.c.b16 %v1111, %v1103
  %v1264 = vpack.c.b16 %v1112, %v1104
  %v1265 = vpack.c.b16 %v1113, %v1105
  %v1266 = vpack.c.b16 %v1114, %v1106
  %v1267 = vpack.c.b16 %v1115, %v1107
  %v1268 = vpack.c.b16 %v1116, %v1108
  %v1269 = vpack.c.b16 %v1117, %v1109
  %v1270 = vpack.c.b16 %v1126, %v1118
  %v1271 = vpack.c.b16 %v1127, %v1119
  %v1272 = vpack.c.b16 %v1128, %v1120
  %v1273 = vpack.c.b16 %v1129, %v1121
  %v1274 = vpack.c.b16 %v1130, %v1122
  %v1275 = vpack.c.b16 %v1131, %v1123
  %v1276 = vpack.c.b16 %v1132, %v1124
  %v1277 = vpack.c.b16 %v1133, %v1125
  %v1278 = vpack.c.b16 %v1142, %v1134
  %v1279 = vpack.c.b16 %v1143, %v1135
  %v1280 = vpack.c.b16 %v1144, %v1136
  %v1281 = vpack.c.b16 %v1145, %v1137
  %v1282 = vpack.c.b16 %v1146, %v1138
  %v1283 = vpack.c.b16 %v1147, %v1139
  %v1284 = vpack.c.b16 %v1148, %v1140
  %v1285 = vpack.c.b16 %v1149, %v1141
  %v1286 = vpack.c.b16 %v1158, %v1150
  %v1287 = vpack.c.b16 %v1159, %v1151
  %v1288 = vpack.c.b16 %v1160, %v1152
  %v1289 = vpack.c.b16 %v1161, %v1153
  %v1290 = vpack.c.b16 %v1162, %v1154
  %v1291 = vpack.c.b16 %v1163, %v1155
  %v1292 = vpack.c.b16 %v1164, %v1156
  %v1293 = vpack.c.b16 %v1165, %v1157
  %1422 = vmatprep.subr.bf16.mxu0 %v1167
  %1423 = vmatpush1.bf16.msra.mxu0 %v1166
  %1424 = vmatprep.subr.bf16.mxu0 %v1175
  %1425 = vmatpush1.bf16.msra.mxu0 %v1174
  %1426 = vmatprep.subr.bf16.mxu0 %v1183
  %1427 = vmatpush1.bf16.msra.mxu0 %v1182
  %1428 = vmatprep.subr.bf16.mxu0 %v1191
  %1429 = vmatpush1.bf16.msra.mxu0 %v1190
  %1430 = vmatprep.subr.bf16.mxu0 %v1199
  %1431 = vmatpush1.bf16.msra.mxu0 %v1198
  %1432 = vmatprep.subr.bf16.mxu0 %v1207
  %1433 = vmatpush1.bf16.msra.mxu0 %v1206
  %1434 = vmatprep.subr.bf16.mxu0 %v1215
  %1435 = vmatpush1.bf16.msra.mxu0 %v1214
  %1436 = vmatprep.subr.bf16.mxu0 %v1223
  %1437 = vmatpush1.bf16.msra.mxu0 %v1222
  %1438 = vmatprep.subr.bf16.mxu0 %v1231
  %1439 = vmatpush1.bf16.msra.mxu0 %v1230
  %1440 = vmatprep.subr.bf16.mxu0 %v1239
  %1441 = vmatpush1.bf16.msra.mxu0 %v1238
  %1442 = vmatprep.subr.bf16.mxu0 %v1247
  %1443 = vmatpush1.bf16.msra.mxu0 %v1246
  %1444 = vmatprep.subr.bf16.mxu0 %v1255
  %1445 = vmatpush1.bf16.msra.mxu0 %v1254
  %1446 = vmatprep.subr.bf16.mxu0 %v1263
  %1447 = vmatpush1.bf16.msra.mxu0 %v1262
  %1448 = vmatprep.subr.bf16.mxu0 %v1271
  %1449 = vmatpush1.bf16.msra.mxu0 %v1270
  %1450 = vmatprep.subr.bf16.mxu0 %v1279
  %1451 = vmatpush1.bf16.msra.mxu0 %v1278
  %1452 = vmatprep.subr.bf16.mxu0 %v1287
  %1453 = vmatpush1.bf16.msra.mxu0 %v1286
  %1454 = vmatprep.mubr.bf16.mxu0 %v740
  %1455 = vmatmul.mubr.bf16.gmra.mrb[0].mxu0 %v739
  %v1456 = vpop.f32.mrb[0].mxu0
  %v1457 = vadd.f32 %v745, %v1456
  %v1458 = vpop.f32.mrb[0].mxu0
  %v1459 = vadd.f32 %v749, %v1458
  %v1460 = vpop.f32.mrb[0].mxu0
  %v1461 = vpop.f32.mrb[0].mxu0
  %1462 = vdwg.mxu0
  %1463 = vmatprep.subr.bf16.mxu0 %v1169
  %1464 = vmatpush1.bf16.msra.mxu0 %v1168
  %1465 = vmatprep.subr.bf16.mxu0 %v1177
  %1466 = vmatpush1.bf16.msra.mxu0 %v1176
  %1467 = vmatprep.subr.bf16.mxu0 %v1185
  %1468 = vmatpush1.bf16.msra.mxu0 %v1184
  %1469 = vmatprep.subr.bf16.mxu0 %v1193
  %1470 = vmatpush1.bf16.msra.mxu0 %v1192
  %1471 = vmatprep.subr.bf16.mxu0 %v1201
  %1472 = vmatpush1.bf16.msra.mxu0 %v1200
  %1473 = vmatprep.subr.bf16.mxu0 %v1209
  %1474 = vmatpush1.bf16.msra.mxu0 %v1208
  %1475 = vmatprep.subr.bf16.mxu0 %v1217
  %1476 = vmatpush1.bf16.msra.mxu0 %v1216
  %1477 = vmatprep.subr.bf16.mxu0 %v1225
  %1478 = vmatpush1.bf16.msra.mxu0 %v1224
  %1479 = vmatprep.subr.bf16.mxu0 %v1233
  %1480 = vmatpush1.bf16.msra.mxu0 %v1232
  %1481 = vmatprep.subr.bf16.mxu0 %v1241
  %1482 = vmatpush1.bf16.msra.mxu0 %v1240
  %1483 = vmatprep.subr.bf16.mxu0 %v1249
  %1484 = vmatpush1.bf16.msra.mxu0 %v1248
  %1485 = vmatprep.subr.bf16.mxu0 %v1257
  %1486 = vmatpush1.bf16.msra.mxu0 %v1256
  %1487 = vmatprep.subr.bf16.mxu0 %v1265
  %1488 = vmatpush1.bf16.msra.mxu0 %v1264
  %1489 = vmatprep.subr.bf16.mxu0 %v1273
  %1490 = vmatpush1.bf16.msra.mxu0 %v1272
  %1491 = vmatprep.subr.bf16.mxu0 %v1281
  %1492 = vmatpush1.bf16.msra.mxu0 %v1280
  %1493 = vmatprep.subr.bf16.mxu0 %v1289
  %1494 = vmatpush1.bf16.msra.mxu0 %v1288
  %1495 = vmatprep.mubr.bf16.mxu0 %v740
  %1496 = vmatmul.mubr.bf16.gmra.mrb[0].mxu0 %v739
  %v1497 = vpop.f32.mrb[0].mxu0
  %v1498 = vadd.f32 %v753, %v1497
  %v1499 = vpop.f32.mrb[0].mxu0
  %v1500 = vadd.f32 %v757, %v1499
  %v1501 = vpop.f32.mrb[0].mxu0
  %v1502 = vpop.f32.mrb[0].mxu0
  %1503 = vdwg.mxu0
  %1504 = vmatprep.subr.bf16.mxu0 %v1171
  %1505 = vmatpush1.bf16.msra.mxu0 %v1170
  %1506 = vmatprep.subr.bf16.mxu0 %v1179
  %1507 = vmatpush1.bf16.msra.mxu0 %v1178
  %1508 = vmatprep.subr.bf16.mxu0 %v1187
  %1509 = vmatpush1.bf16.msra.mxu0 %v1186
  %1510 = vmatprep.subr.bf16.mxu0 %v1195
  %1511 = vmatpush1.bf16.msra.mxu0 %v1194
  %1512 = vmatprep.subr.bf16.mxu0 %v1203
  %1513 = vmatpush1.bf16.msra.mxu0 %v1202
  %1514 = vmatprep.subr.bf16.mxu0 %v1211
  %1515 = vmatpush1.bf16.msra.mxu0 %v1210
  %1516 = vmatprep.subr.bf16.mxu0 %v1219
  %1517 = vmatpush1.bf16.msra.mxu0 %v1218
  %1518 = vmatprep.subr.bf16.mxu0 %v1227
  %1519 = vmatpush1.bf16.msra.mxu0 %v1226
  %1520 = vmatprep.subr.bf16.mxu0 %v1235
  %1521 = vmatpush1.bf16.msra.mxu0 %v1234
  %1522 = vmatprep.subr.bf16.mxu0 %v1243
  %1523 = vmatpush1.bf16.msra.mxu0 %v1242
  %1524 = vmatprep.subr.bf16.mxu0 %v1251
  %1525 = vmatpush1.bf16.msra.mxu0 %v1250
  %1526 = vmatprep.subr.bf16.mxu0 %v1259
  %1527 = vmatpush1.bf16.msra.mxu0 %v1258
  %1528 = vmatprep.subr.bf16.mxu0 %v1267
  %1529 = vmatpush1.bf16.msra.mxu0 %v1266
  %1530 = vmatprep.subr.bf16.mxu0 %v1275
  %1531 = vmatpush1.bf16.msra.mxu0 %v1274
  %1532 = vmatprep.subr.bf16.mxu0 %v1283
  %1533 = vmatpush1.bf16.msra.mxu0 %v1282
  %1534 = vmatprep.subr.bf16.mxu0 %v1291
  %1535 = vmatpush1.bf16.msra.mxu0 %v1290
  %1536 = vmatprep.mubr.bf16.mxu0 %v740
  %1537 = vmatmul.mubr.bf16.gmra.mrb[0].mxu0 %v739
  %v1538 = vpop.f32.mrb[0].mxu0
  %v1539 = vadd.f32 %v761, %v1538
  %v1540 = vpop.f32.mrb[0].mxu0
  %v1541 = vadd.f32 %v765, %v1540
  %v1542 = vpop.f32.mrb[0].mxu0
  %v1543 = vpop.f32.mrb[0].mxu0
  %1544 = vdwg.mxu0
  %1545 = vmatprep.subr.bf16.mxu0 %v1173
  %1546 = vmatpush1.bf16.msra.mxu0 %v1172
  %1547 = vmatprep.subr.bf16.mxu0 %v1181
  %1548 = vmatpush1.bf16.msra.mxu0 %v1180
  %1549 = vmatprep.subr.bf16.mxu0 %v1189
  %1550 = vmatpush1.bf16.msra.mxu0 %v1188
  %1551 = vmatprep.subr.bf16.mxu0 %v1197
  %1552 = vmatpush1.bf16.msra.mxu0 %v1196
  %1553 = vmatprep.subr.bf16.mxu0 %v1205
  %1554 = vmatpush1.bf16.msra.mxu0 %v1204
  %1555 = vmatprep.subr.bf16.mxu0 %v1213
  %1556 = vmatpush1.bf16.msra.mxu0 %v1212
  %1557 = vmatprep.subr.bf16.mxu0 %v1221
  %1558 = vmatpush1.bf16.msra.mxu0 %v1220
  %1559 = vmatprep.subr.bf16.mxu0 %v1229
  %1560 = vmatpush1.bf16.msra.mxu0 %v1228
  %1561 = vmatprep.subr.bf16.mxu0 %v1237
  %1562 = vmatpush1.bf16.msra.mxu0 %v1236
  %1563 = vmatprep.subr.bf16.mxu0 %v1245
  %1564 = vmatpush1.bf16.msra.mxu0 %v1244
  %1565 = vmatprep.subr.bf16.mxu0 %v1253
  %1566 = vmatpush1.bf16.msra.mxu0 %v1252
  %1567 = vmatprep.subr.bf16.mxu0 %v1261
  %1568 = vmatpush1.bf16.msra.mxu0 %v1260
  %1569 = vmatprep.subr.bf16.mxu0 %v1269
  %1570 = vmatpush1.bf16.msra.mxu0 %v1268
  %1571 = vmatprep.subr.bf16.mxu0 %v1277
  %1572 = vmatpush1.bf16.msra.mxu0 %v1276
  %1573 = vmatprep.subr.bf16.mxu0 %v1285
  %1574 = vmatpush1.bf16.msra.mxu0 %v1284
  %1575 = vmatprep.subr.bf16.mxu0 %v1293
  %1576 = vmatpush1.bf16.msra.mxu0 %v1292
  %1577 = vmatprep.mubr.bf16.mxu0 %v740
  %1578 = vmatmul.mubr.bf16.gmra.mrb[0].mxu0 %v739
  %v1579 = vpop.f32.mrb[0].mxu0
  %v1580 = vadd.f32 %v769, %v1579
  %v1581 = vpop.f32.mrb[0].mxu0
  %v1582 = vadd.f32 %v773, %v1581
  %v1583 = vpop.f32.mrb[0].mxu0
  %v1584 = vpop.f32.mrb[0].mxu0
  %1585 = vdwg.mxu0
  %v1586 = vtanh.pop %v1457
  %v1587 = vtanh.pop %v1459
  %v1588 = vtanh.pop %v1498
  %v1589 = vtanh.pop %v1500
  %v1590 = vtanh.pop %v1539
  %v1591 = vtanh.pop %v1541
  %v1592 = vtanh.pop %v1580
  %v1593 = vtanh.pop %v1582
  %v1594 = vld [vmem:[%s3] sm:$0xff]
  %v1595 = vld [vmem:[%s3 + $0x8] sm:$0xff]
  %v1596 = vld [vmem:[%s3 + $0x10] sm:$0xff]
  %v1597 = vld [vmem:[%s3 + $0x18] sm:$0xff]
  %v1598 = vld [vmem:[%s3 + $0x20] sm:$0xff]
  %v1599 = vld [vmem:[%s3 + $0x28] sm:$0xff]
  %v1600 = vld [vmem:[%s3 + $0x30] sm:$0xff]
  %v1601 = vld [vmem:[%s3 + $0x38] sm:$0xff]
  %v1602 = vld [vmem:[%s3 + $0x40] sm:$0xff]
  %v1603 = vld [vmem:[%s3 + $0x48] sm:$0xff]
  %v1604 = vld [vmem:[%s3 + $0x50] sm:$0xff]
  %v1605 = vld [vmem:[%s3 + $0x58] sm:$0xff]
  %v1606 = vld [vmem:[%s3 + $0x60] sm:$0xff]
  %v1607 = vld [vmem:[%s3 + $0x68] sm:$0xff]
  %v1608 = vld [vmem:[%s3 + $0x70] sm:$0xff]
  %v1609 = vld [vmem:[%s3 + $0x78] sm:$0xff]
  %v1610 = vld [vmem:[%s3 + $0x80] sm:$0xff]
  %v1611 = vld [vmem:[%s3 + $0x88] sm:$0xff]
  %v1612 = vld [vmem:[%s3 + $0x90] sm:$0xff]
  %v1613 = vld [vmem:[%s3 + $0x98] sm:$0xff]
  %v1614 = vld [vmem:[%s3 + $0xa0] sm:$0xff]
  %v1615 = vld [vmem:[%s3 + $0xa8] sm:$0xff]
  %v1616 = vld [vmem:[%s3 + $0xb0] sm:$0xff]
  %v1617 = vld [vmem:[%s3 + $0xb8] sm:$0xff]
  %v1618 = vld [vmem:[%s3 + $0xc0] sm:$0xff]
  %v1619 = vld [vmem:[%s3 + $0xc8] sm:$0xff]
  %v1620 = vld [vmem:[%s3 + $0xd0] sm:$0xff]
  %v1621 = vld [vmem:[%s3 + $0xd8] sm:$0xff]
  %v1622 = vld [vmem:[%s3 + $0xe0] sm:$0xff]
  %v1623 = vld [vmem:[%s3 + $0xe8] sm:$0xff]
  %v1624 = vld [vmem:[%s3 + $0xf0] sm:$0xff]
  %v1625 = vld [vmem:[%s3 + $0xf8] sm:$0xff]
  %v1626 = vld [vmem:[%s3 + $0x100] sm:$0xff]
  %v1627 = vld [vmem:[%s3 + $0x108] sm:$0xff]
  %v1628 = vld [vmem:[%s3 + $0x110] sm:$0xff]
  %v1629 = vld [vmem:[%s3 + $0x118] sm:$0xff]
  %v1630 = vld [vmem:[%s3 + $0x120] sm:$0xff]
  %v1631 = vld [vmem:[%s3 + $0x128] sm:$0xff]
  %v1632 = vld [vmem:[%s3 + $0x130] sm:$0xff]
  %v1633 = vld [vmem:[%s3 + $0x138] sm:$0xff]
  %v1634 = vld [vmem:[%s3 + $0x140] sm:$0xff]
  %v1635 = vld [vmem:[%s3 + $0x148] sm:$0xff]
  %v1636 = vld [vmem:[%s3 + $0x150] sm:$0xff]
  %v1637 = vld [vmem:[%s3 + $0x158] sm:$0xff]
  %v1638 = vld [vmem:[%s3 + $0x160] sm:$0xff]
  %v1639 = vld [vmem:[%s3 + $0x168] sm:$0xff]
  %v1640 = vld [vmem:[%s3 + $0x170] sm:$0xff]
  %v1641 = vld [vmem:[%s3 + $0x178] sm:$0xff]
  %v1642 = vld [vmem:[%s3 + $0x180] sm:$0xff]
  %v1643 = vld [vmem:[%s3 + $0x188] sm:$0xff]
  %v1644 = vld [vmem:[%s3 + $0x190] sm:$0xff]
  %v1645 = vld [vmem:[%s3 + $0x198] sm:$0xff]
  %v1646 = vld [vmem:[%s3 + $0x1a0] sm:$0xff]
  %v1647 = vld [vmem:[%s3 + $0x1a8] sm:$0xff]
  %v1648 = vld [vmem:[%s3 + $0x1b0] sm:$0xff]
  %v1649 = vld [vmem:[%s3 + $0x1b8] sm:$0xff]
  %v1650 = vld [vmem:[%s3 + $0x1c0] sm:$0xff]
  %v1651 = vld [vmem:[%s3 + $0x1c8] sm:$0xff]
  %v1652 = vld [vmem:[%s3 + $0x1d0] sm:$0xff]
  %v1653 = vld [vmem:[%s3 + $0x1d8] sm:$0xff]
  %v1654 = vld [vmem:[%s3 + $0x1e0] sm:$0xff]
  %v1655 = vld [vmem:[%s3 + $0x1e8] sm:$0xff]
  %v1656 = vld [vmem:[%s3 + $0x1f0] sm:$0xff]
  %v1657 = vld [vmem:[%s3 + $0x1f8] sm:$0xff]
  %v1658 = vld [vmem:[%s3 + $0x200] sm:$0xff]
  %v1659 = vld [vmem:[%s3 + $0x208] sm:$0xff]
  %v1660 = vld [vmem:[%s3 + $0x210] sm:$0xff]
  %v1661 = vld [vmem:[%s3 + $0x218] sm:$0xff]
  %v1662 = vld [vmem:[%s3 + $0x220] sm:$0xff]
  %v1663 = vld [vmem:[%s3 + $0x228] sm:$0xff]
  %v1664 = vld [vmem:[%s3 + $0x230] sm:$0xff]
  %v1665 = vld [vmem:[%s3 + $0x238] sm:$0xff]
  %v1666 = vld [vmem:[%s3 + $0x240] sm:$0xff]
  %v1667 = vld [vmem:[%s3 + $0x248] sm:$0xff]
  %v1668 = vld [vmem:[%s3 + $0x250] sm:$0xff]
  %v1669 = vld [vmem:[%s3 + $0x258] sm:$0xff]
  %v1670 = vld [vmem:[%s3 + $0x260] sm:$0xff]
  %v1671 = vld [vmem:[%s3 + $0x268] sm:$0xff]
  %v1672 = vld [vmem:[%s3 + $0x270] sm:$0xff]
  %v1673 = vld [vmem:[%s3 + $0x278] sm:$0xff]
  %v1674 = vld [vmem:[%s3 + $0x280] sm:$0xff]
  %v1675 = vld [vmem:[%s3 + $0x288] sm:$0xff]
  %v1676 = vld [vmem:[%s3 + $0x290] sm:$0xff]
  %v1677 = vld [vmem:[%s3 + $0x298] sm:$0xff]
  %v1678 = vld [vmem:[%s3 + $0x2a0] sm:$0xff]
  %v1679 = vld [vmem:[%s3 + $0x2a8] sm:$0xff]
  %v1680 = vld [vmem:[%s3 + $0x2b0] sm:$0xff]
  %v1681 = vld [vmem:[%s3 + $0x2b8] sm:$0xff]
  %v1682 = vld [vmem:[%s3 + $0x2c0] sm:$0xff]
  %v1683 = vld [vmem:[%s3 + $0x2c8] sm:$0xff]
  %v1684 = vld [vmem:[%s3 + $0x2d0] sm:$0xff]
  %v1685 = vld [vmem:[%s3 + $0x2d8] sm:$0xff]
  %v1686 = vld [vmem:[%s3 + $0x2e0] sm:$0xff]
  %v1687 = vld [vmem:[%s3 + $0x2e8] sm:$0xff]
  %v1688 = vld [vmem:[%s3 + $0x2f0] sm:$0xff]
  %v1689 = vld [vmem:[%s3 + $0x2f8] sm:$0xff]
  %v1690 = vld [vmem:[%s3 + $0x300] sm:$0xff]
  %v1691 = vld [vmem:[%s3 + $0x308] sm:$0xff]
  %v1692 = vld [vmem:[%s3 + $0x310] sm:$0xff]
  %v1693 = vld [vmem:[%s3 + $0x318] sm:$0xff]
  %v1694 = vld [vmem:[%s3 + $0x320] sm:$0xff]
  %v1695 = vld [vmem:[%s3 + $0x328] sm:$0xff]
  %v1696 = vld [vmem:[%s3 + $0x330] sm:$0xff]
  %v1697 = vld [vmem:[%s3 + $0x338] sm:$0xff]
  %v1698 = vld [vmem:[%s3 + $0x340] sm:$0xff]
  %v1699 = vld [vmem:[%s3 + $0x348] sm:$0xff]
  %v1700 = vld [vmem:[%s3 + $0x350] sm:$0xff]
  %v1701 = vld [vmem:[%s3 + $0x358] sm:$0xff]
  %v1702 = vld [vmem:[%s3 + $0x360] sm:$0xff]
  %v1703 = vld [vmem:[%s3 + $0x368] sm:$0xff]
  %v1704 = vld [vmem:[%s3 + $0x370] sm:$0xff]
  %v1705 = vld [vmem:[%s3 + $0x378] sm:$0xff]
  %v1706 = vld [vmem:[%s3 + $0x380] sm:$0xff]
  %v1707 = vld [vmem:[%s3 + $0x388] sm:$0xff]
  %v1708 = vld [vmem:[%s3 + $0x390] sm:$0xff]
  %v1709 = vld [vmem:[%s3 + $0x398] sm:$0xff]
  %v1710 = vld [vmem:[%s3 + $0x3a0] sm:$0xff]
  %v1711 = vld [vmem:[%s3 + $0x3a8] sm:$0xff]
  %v1712 = vld [vmem:[%s3 + $0x3b0] sm:$0xff]
  %v1713 = vld [vmem:[%s3 + $0x3b8] sm:$0xff]
  %v1714 = vld [vmem:[%s3 + $0x3c0] sm:$0xff]
  %v1715 = vld [vmem:[%s3 + $0x3c8] sm:$0xff]
  %v1716 = vld [vmem:[%s3 + $0x3d0] sm:$0xff]
  %v1717 = vld [vmem:[%s3 + $0x3d8] sm:$0xff]
  %v1718 = vld [vmem:[%s3 + $0x3e0] sm:$0xff]
  %v1719 = vld [vmem:[%s3 + $0x3e8] sm:$0xff]
  %v1720 = vld [vmem:[%s3 + $0x3f0] sm:$0xff]
  %v1721 = vld [vmem:[%s3 + $0x3f8] sm:$0xff]
  %v1722 = vld [vmem:[%s3 + $0x400] sm:$0xff]
  %v1723 = vld [vmem:[%s3 + $0x408] sm:$0xff]
  %v1724 = vld [vmem:[%s3 + $0x410] sm:$0xff]
  %v1725 = vld [vmem:[%s3 + $0x418] sm:$0xff]
  %v1726 = vld [vmem:[%s3 + $0x420] sm:$0xff]
  %v1727 = vld [vmem:[%s3 + $0x428] sm:$0xff]
  %v1728 = vld [vmem:[%s3 + $0x430] sm:$0xff]
  %v1729 = vld [vmem:[%s3 + $0x438] sm:$0xff]
  %v1730 = vld [vmem:[%s3 + $0x440] sm:$0xff]
  %v1731 = vld [vmem:[%s3 + $0x448] sm:$0xff]
  %v1732 = vld [vmem:[%s3 + $0x450] sm:$0xff]
  %v1733 = vld [vmem:[%s3 + $0x458] sm:$0xff]
  %v1734 = vld [vmem:[%s3 + $0x460] sm:$0xff]
  %v1735 = vld [vmem:[%s3 + $0x468] sm:$0xff]
  %v1736 = vld [vmem:[%s3 + $0x470] sm:$0xff]
  %v1737 = vld [vmem:[%s3 + $0x478] sm:$0xff]
  %v1738 = vld [vmem:[%s3 + $0x480] sm:$0xff]
  %v1739 = vld [vmem:[%s3 + $0x488] sm:$0xff]
  %v1740 = vld [vmem:[%s3 + $0x490] sm:$0xff]
  %v1741 = vld [vmem:[%s3 + $0x498] sm:$0xff]
  %v1742 = vld [vmem:[%s3 + $0x4a0] sm:$0xff]
  %v1743 = vld [vmem:[%s3 + $0x4a8] sm:$0xff]
  %v1744 = vld [vmem:[%s3 + $0x4b0] sm:$0xff]
  %v1745 = vld [vmem:[%s3 + $0x4b8] sm:$0xff]
  %v1746 = vld [vmem:[%s3 + $0x4c0] sm:$0xff]
  %v1747 = vld [vmem:[%s3 + $0x4c8] sm:$0xff]
  %v1748 = vld [vmem:[%s3 + $0x4d0] sm:$0xff]
  %v1749 = vld [vmem:[%s3 + $0x4d8] sm:$0xff]
  %v1750 = vld [vmem:[%s3 + $0x4e0] sm:$0xff]
  %v1751 = vld [vmem:[%s3 + $0x4e8] sm:$0xff]
  %v1752 = vld [vmem:[%s3 + $0x4f0] sm:$0xff]
  %v1753 = vld [vmem:[%s3 + $0x4f8] sm:$0xff]
  %v1754 = vld [vmem:[%s3 + $0x500] sm:$0xff]
  %v1755 = vld [vmem:[%s3 + $0x508] sm:$0xff]
  %v1756 = vld [vmem:[%s3 + $0x510] sm:$0xff]
  %v1757 = vld [vmem:[%s3 + $0x518] sm:$0xff]
  %v1758 = vld [vmem:[%s3 + $0x520] sm:$0xff]
  %v1759 = vld [vmem:[%s3 + $0x528] sm:$0xff]
  %v1760 = vld [vmem:[%s3 + $0x530] sm:$0xff]
  %v1761 = vld [vmem:[%s3 + $0x538] sm:$0xff]
  %v1762 = vld [vmem:[%s3 + $0x540] sm:$0xff]
  %v1763 = vld [vmem:[%s3 + $0x548] sm:$0xff]
  %v1764 = vld [vmem:[%s3 + $0x550] sm:$0xff]
  %v1765 = vld [vmem:[%s3 + $0x558] sm:$0xff]
  %v1766 = vld [vmem:[%s3 + $0x560] sm:$0xff]
  %v1767 = vld [vmem:[%s3 + $0x568] sm:$0xff]
  %v1768 = vld [vmem:[%s3 + $0x570] sm:$0xff]
  %v1769 = vld [vmem:[%s3 + $0x578] sm:$0xff]
  %v1770 = vld [vmem:[%s3 + $0x580] sm:$0xff]
  %v1771 = vld [vmem:[%s3 + $0x588] sm:$0xff]
  %v1772 = vld [vmem:[%s3 + $0x590] sm:$0xff]
  %v1773 = vld [vmem:[%s3 + $0x598] sm:$0xff]
  %v1774 = vld [vmem:[%s3 + $0x5a0] sm:$0xff]
  %v1775 = vld [vmem:[%s3 + $0x5a8] sm:$0xff]
  %v1776 = vld [vmem:[%s3 + $0x5b0] sm:$0xff]
  %v1777 = vld [vmem:[%s3 + $0x5b8] sm:$0xff]
  %v1778 = vld [vmem:[%s3 + $0x5c0] sm:$0xff]
  %v1779 = vld [vmem:[%s3 + $0x5c8] sm:$0xff]
  %v1780 = vld [vmem:[%s3 + $0x5d0] sm:$0xff]
  %v1781 = vld [vmem:[%s3 + $0x5d8] sm:$0xff]
  %v1782 = vld [vmem:[%s3 + $0x5e0] sm:$0xff]
  %v1783 = vld [vmem:[%s3 + $0x5e8] sm:$0xff]
  %v1784 = vld [vmem:[%s3 + $0x5f0] sm:$0xff]
  %v1785 = vld [vmem:[%s3 + $0x5f8] sm:$0xff]
  %v1786 = vld [vmem:[%s3 + $0x600] sm:$0xff]
  %v1787 = vld [vmem:[%s3 + $0x608] sm:$0xff]
  %v1788 = vld [vmem:[%s3 + $0x610] sm:$0xff]
  %v1789 = vld [vmem:[%s3 + $0x618] sm:$0xff]
  %v1790 = vld [vmem:[%s3 + $0x620] sm:$0xff]
  %v1791 = vld [vmem:[%s3 + $0x628] sm:$0xff]
  %v1792 = vld [vmem:[%s3 + $0x630] sm:$0xff]
  %v1793 = vld [vmem:[%s3 + $0x638] sm:$0xff]
  %v1794 = vld [vmem:[%s3 + $0x640] sm:$0xff]
  %v1795 = vld [vmem:[%s3 + $0x648] sm:$0xff]
  %v1796 = vld [vmem:[%s3 + $0x650] sm:$0xff]
  %v1797 = vld [vmem:[%s3 + $0x658] sm:$0xff]
  %v1798 = vld [vmem:[%s3 + $0x660] sm:$0xff]
  %v1799 = vld [vmem:[%s3 + $0x668] sm:$0xff]
  %v1800 = vld [vmem:[%s3 + $0x670] sm:$0xff]
  %v1801 = vld [vmem:[%s3 + $0x678] sm:$0xff]
  %v1802 = vld [vmem:[%s3 + $0x680] sm:$0xff]
  %v1803 = vld [vmem:[%s3 + $0x688] sm:$0xff]
  %v1804 = vld [vmem:[%s3 + $0x690] sm:$0xff]
  %v1805 = vld [vmem:[%s3 + $0x698] sm:$0xff]
  %v1806 = vld [vmem:[%s3 + $0x6a0] sm:$0xff]
  %v1807 = vld [vmem:[%s3 + $0x6a8] sm:$0xff]
  %v1808 = vld [vmem:[%s3 + $0x6b0] sm:$0xff]
  %v1809 = vld [vmem:[%s3 + $0x6b8] sm:$0xff]
  %v1810 = vld [vmem:[%s3 + $0x6c0] sm:$0xff]
  %v1811 = vld [vmem:[%s3 + $0x6c8] sm:$0xff]
  %v1812 = vld [vmem:[%s3 + $0x6d0] sm:$0xff]
  %v1813 = vld [vmem:[%s3 + $0x6d8] sm:$0xff]
  %v1814 = vld [vmem:[%s3 + $0x6e0] sm:$0xff]
  %v1815 = vld [vmem:[%s3 + $0x6e8] sm:$0xff]
  %v1816 = vld [vmem:[%s3 + $0x6f0] sm:$0xff]
  %v1817 = vld [vmem:[%s3 + $0x6f8] sm:$0xff]
  %v1818 = vld [vmem:[%s3 + $0x700] sm:$0xff]
  %v1819 = vld [vmem:[%s3 + $0x708] sm:$0xff]
  %v1820 = vld [vmem:[%s3 + $0x710] sm:$0xff]
  %v1821 = vld [vmem:[%s3 + $0x718] sm:$0xff]
  %v1822 = vld [vmem:[%s3 + $0x720] sm:$0xff]
  %v1823 = vld [vmem:[%s3 + $0x728] sm:$0xff]
  %v1824 = vld [vmem:[%s3 + $0x730] sm:$0xff]
  %v1825 = vld [vmem:[%s3 + $0x738] sm:$0xff]
  %v1826 = vld [vmem:[%s3 + $0x740] sm:$0xff]
  %v1827 = vld [vmem:[%s3 + $0x748] sm:$0xff]
  %v1828 = vld [vmem:[%s3 + $0x750] sm:$0xff]
  %v1829 = vld [vmem:[%s3 + $0x758] sm:$0xff]
  %v1830 = vld [vmem:[%s3 + $0x760] sm:$0xff]
  %v1831 = vld [vmem:[%s3 + $0x768] sm:$0xff]
  %v1832 = vld [vmem:[%s3 + $0x770] sm:$0xff]
  %v1833 = vld [vmem:[%s3 + $0x778] sm:$0xff]
  %v1834 = vld [vmem:[%s3 + $0x780] sm:$0xff]
  %v1835 = vld [vmem:[%s3 + $0x788] sm:$0xff]
  %v1836 = vld [vmem:[%s3 + $0x790] sm:$0xff]
  %v1837 = vld [vmem:[%s3 + $0x798] sm:$0xff]
  %v1838 = vld [vmem:[%s3 + $0x7a0] sm:$0xff]
  %v1839 = vld [vmem:[%s3 + $0x7a8] sm:$0xff]
  %v1840 = vld [vmem:[%s3 + $0x7b0] sm:$0xff]
  %v1841 = vld [vmem:[%s3 + $0x7b8] sm:$0xff]
  %v1842 = vld [vmem:[%s3 + $0x7c0] sm:$0xff]
  %v1843 = vld [vmem:[%s3 + $0x7c8] sm:$0xff]
  %v1844 = vld [vmem:[%s3 + $0x7d0] sm:$0xff]
  %v1845 = vld [vmem:[%s3 + $0x7d8] sm:$0xff]
  %v1846 = vld [vmem:[%s3 + $0x7e0] sm:$0xff]
  %v1847 = vld [vmem:[%s3 + $0x7e8] sm:$0xff]
  %v1848 = vld [vmem:[%s3 + $0x7f0] sm:$0xff]
  %v1849 = vld [vmem:[%s3 + $0x7f8] sm:$0xff]
  %v1850 = vpack.c.bf16 %v1586, %v1586
  %v1851 = vpack.c.bf16 %v1587, %v1587
  %v1852 = vpack.c.bf16 %v1588, %v1588
  %v1853 = vpack.c.bf16 %v1589, %v1589
  %v1854 = vpack.c.bf16 %v1590, %v1590
  %v1855 = vpack.c.bf16 %v1591, %v1591
  %v1856 = vpack.c.bf16 %v1592, %v1592
  %v1857 = vpack.c.bf16 %v1593, %v1593
  %v1859 = vlaneseq
  %v1860 = vshrl.u32 %v1859, 7
  %v1861 = vsub.s32 0, %v1860
  %v1862 = vrot.slane %v524, %v1861
  %v1863 = vlaneseq
  %v1864 = vshrl.u32 %v1863, 7
  %v1865 = vsub.s32 1, %v1864
  %v1866 = vrot.slane %v524, %v1865
  %v1867 = vlaneseq
  %v1868 = vshrl.u32 %v1867, 7
  %v1869 = vsub.s32 2, %v1868
  %v1870 = vrot.slane %v524, %v1869
  %v1871 = vlaneseq
  %v1872 = vshrl.u32 %v1871, 7
  %v1873 = vsub.s32 3, %v1872
  %v1874 = vrot.slane %v524, %v1873
  %v2135 = vunpack.c.l.b16 %v1594
  %v2136 = vunpack.c.h.b16 %v1594
  %v2137 = vunpack.c.l.b16 %v1595
  %v2138 = vunpack.c.h.b16 %v1595
  %v2139 = vunpack.c.l.b16 %v1596
  %v2140 = vunpack.c.h.b16 %v1596
  %v2141 = vunpack.c.l.b16 %v1597
  %v2142 = vunpack.c.h.b16 %v1597
  %v2143 = vunpack.c.l.b16 %v1598
  %v2144 = vunpack.c.h.b16 %v1598
  %v2145 = vunpack.c.l.b16 %v1599
  %v2146 = vunpack.c.h.b16 %v1599
  %v2147 = vunpack.c.l.b16 %v1600
  %v2148 = vunpack.c.h.b16 %v1600
  %v2149 = vunpack.c.l.b16 %v1601
  %v2150 = vunpack.c.h.b16 %v1601
  %v2151 = vunpack.c.l.b16 %v1602
  %v2152 = vunpack.c.h.b16 %v1602
  %v2153 = vunpack.c.l.b16 %v1603
  %v2154 = vunpack.c.h.b16 %v1603
  %v2155 = vunpack.c.l.b16 %v1604
  %v2156 = vunpack.c.h.b16 %v1604
  %v2157 = vunpack.c.l.b16 %v1605
  %v2158 = vunpack.c.h.b16 %v1605
  %v2159 = vunpack.c.l.b16 %v1606
  %v2160 = vunpack.c.h.b16 %v1606
  %v2161 = vunpack.c.l.b16 %v1607
  %v2162 = vunpack.c.h.b16 %v1607
  %v2163 = vunpack.c.l.b16 %v1608
  %v2164 = vunpack.c.h.b16 %v1608
  %v2165 = vunpack.c.l.b16 %v1609
  %v2166 = vunpack.c.h.b16 %v1609
  %v2167 = vunpack.c.l.b16 %v1610
  %v2168 = vunpack.c.h.b16 %v1610
  %v2169 = vunpack.c.l.b16 %v1611
  %v2170 = vunpack.c.h.b16 %v1611
  %v2171 = vunpack.c.l.b16 %v1612
  %v2172 = vunpack.c.h.b16 %v1612
  %v2173 = vunpack.c.l.b16 %v1613
  %v2174 = vunpack.c.h.b16 %v1613
  %v2175 = vunpack.c.l.b16 %v1614
  %v2176 = vunpack.c.h.b16 %v1614
  %v2177 = vunpack.c.l.b16 %v1615
  %v2178 = vunpack.c.h.b16 %v1615
  %v2179 = vunpack.c.l.b16 %v1616
  %v2180 = vunpack.c.h.b16 %v1616
  %v2181 = vunpack.c.l.b16 %v1617
  %v2182 = vunpack.c.h.b16 %v1617
  %v2183 = vunpack.c.l.b16 %v1618
  %v2184 = vunpack.c.h.b16 %v1618
  %v2185 = vunpack.c.l.b16 %v1619
  %v2186 = vunpack.c.h.b16 %v1619
  %v2187 = vunpack.c.l.b16 %v1620
  %v2188 = vunpack.c.h.b16 %v1620
  %v2189 = vunpack.c.l.b16 %v1621
  %v2190 = vunpack.c.h.b16 %v1621
  %v2191 = vunpack.c.l.b16 %v1622
  %v2192 = vunpack.c.h.b16 %v1622
  %v2193 = vunpack.c.l.b16 %v1623
  %v2194 = vunpack.c.h.b16 %v1623
  %v2195 = vunpack.c.l.b16 %v1624
  %v2196 = vunpack.c.h.b16 %v1624
  %v2197 = vunpack.c.l.b16 %v1625
  %v2198 = vunpack.c.h.b16 %v1625
  %v2199 = vunpack.c.l.b16 %v1626
  %v2200 = vunpack.c.h.b16 %v1626
  %v2201 = vunpack.c.l.b16 %v1627
  %v2202 = vunpack.c.h.b16 %v1627
  %v2203 = vunpack.c.l.b16 %v1628
  %v2204 = vunpack.c.h.b16 %v1628
  %v2205 = vunpack.c.l.b16 %v1629
  %v2206 = vunpack.c.h.b16 %v1629
  %v2207 = vunpack.c.l.b16 %v1630
  %v2208 = vunpack.c.h.b16 %v1630
  %v2209 = vunpack.c.l.b16 %v1631
  %v2210 = vunpack.c.h.b16 %v1631
  %v2211 = vunpack.c.l.b16 %v1632
  %v2212 = vunpack.c.h.b16 %v1632
  %v2213 = vunpack.c.l.b16 %v1633
  %v2214 = vunpack.c.h.b16 %v1633
  %v2215 = vunpack.c.l.b16 %v1634
  %v2216 = vunpack.c.h.b16 %v1634
  %v2217 = vunpack.c.l.b16 %v1635
  %v2218 = vunpack.c.h.b16 %v1635
  %v2219 = vunpack.c.l.b16 %v1636
  %v2220 = vunpack.c.h.b16 %v1636
  %v2221 = vunpack.c.l.b16 %v1637
  %v2222 = vunpack.c.h.b16 %v1637
  %v2223 = vunpack.c.l.b16 %v1638
  %v2224 = vunpack.c.h.b16 %v1638
  %v2225 = vunpack.c.l.b16 %v1639
  %v2226 = vunpack.c.h.b16 %v1639
  %v2227 = vunpack.c.l.b16 %v1640
  %v2228 = vunpack.c.h.b16 %v1640
  %v2229 = vunpack.c.l.b16 %v1641
  %v2230 = vunpack.c.h.b16 %v1641
  %v2231 = vunpack.c.l.b16 %v1642
  %v2232 = vunpack.c.h.b16 %v1642
  %v2233 = vunpack.c.l.b16 %v1643
  %v2234 = vunpack.c.h.b16 %v1643
  %v2235 = vunpack.c.l.b16 %v1644
  %v2236 = vunpack.c.h.b16 %v1644
  %v2237 = vunpack.c.l.b16 %v1645
  %v2238 = vunpack.c.h.b16 %v1645
  %v2239 = vunpack.c.l.b16 %v1646
  %v2240 = vunpack.c.h.b16 %v1646
  %v2241 = vunpack.c.l.b16 %v1647
  %v2242 = vunpack.c.h.b16 %v1647
  %v2243 = vunpack.c.l.b16 %v1648
  %v2244 = vunpack.c.h.b16 %v1648
  %v2245 = vunpack.c.l.b16 %v1649
  %v2246 = vunpack.c.h.b16 %v1649
  %v2247 = vunpack.c.l.b16 %v1650
  %v2248 = vunpack.c.h.b16 %v1650
  %v2249 = vunpack.c.l.b16 %v1651
  %v2250 = vunpack.c.h.b16 %v1651
  %v2251 = vunpack.c.l.b16 %v1652
  %v2252 = vunpack.c.h.b16 %v1652
  %v2253 = vunpack.c.l.b16 %v1653
  %v2254 = vunpack.c.h.b16 %v1653
  %v2255 = vunpack.c.l.b16 %v1654
  %v2256 = vunpack.c.h.b16 %v1654
  %v2257 = vunpack.c.l.b16 %v1655
  %v2258 = vunpack.c.h.b16 %v1655
  %v2259 = vunpack.c.l.b16 %v1656
  %v2260 = vunpack.c.h.b16 %v1656
  %v2261 = vunpack.c.l.b16 %v1657
  %v2262 = vunpack.c.h.b16 %v1657
  %v2263 = vunpack.c.l.b16 %v1658
  %v2264 = vunpack.c.h.b16 %v1658
  %v2265 = vunpack.c.l.b16 %v1659
  %v2266 = vunpack.c.h.b16 %v1659
  %v2267 = vunpack.c.l.b16 %v1660
  %v2268 = vunpack.c.h.b16 %v1660
  %v2269 = vunpack.c.l.b16 %v1661
  %v2270 = vunpack.c.h.b16 %v1661
  %v2271 = vunpack.c.l.b16 %v1662
  %v2272 = vunpack.c.h.b16 %v1662
  %v2273 = vunpack.c.l.b16 %v1663
  %v2274 = vunpack.c.h.b16 %v1663
  %v2275 = vunpack.c.l.b16 %v1664
  %v2276 = vunpack.c.h.b16 %v1664
  %v2277 = vunpack.c.l.b16 %v1665
  %v2278 = vunpack.c.h.b16 %v1665
  %v2279 = vunpack.c.l.b16 %v1666
  %v2280 = vunpack.c.h.b16 %v1666
  %v2281 = vunpack.c.l.b16 %v1667
  %v2282 = vunpack.c.h.b16 %v1667
  %v2283 = vunpack.c.l.b16 %v1668
  %v2284 = vunpack.c.h.b16 %v1668
  %v2285 = vunpack.c.l.b16 %v1669
  %v2286 = vunpack.c.h.b16 %v1669
  %v2287 = vunpack.c.l.b16 %v1670
  %v2288 = vunpack.c.h.b16 %v1670
  %v2289 = vunpack.c.l.b16 %v1671
  %v2290 = vunpack.c.h.b16 %v1671
  %v2291 = vunpack.c.l.b16 %v1672
  %v2292 = vunpack.c.h.b16 %v1672
  %v2293 = vunpack.c.l.b16 %v1673
  %v2294 = vunpack.c.h.b16 %v1673
  %v2295 = vunpack.c.l.b16 %v1674
  %v2296 = vunpack.c.h.b16 %v1674
  %v2297 = vunpack.c.l.b16 %v1675
  %v2298 = vunpack.c.h.b16 %v1675
  %v2299 = vunpack.c.l.b16 %v1676
  %v2300 = vunpack.c.h.b16 %v1676
  %v2301 = vunpack.c.l.b16 %v1677
  %v2302 = vunpack.c.h.b16 %v1677
  %v2303 = vunpack.c.l.b16 %v1678
  %v2304 = vunpack.c.h.b16 %v1678
  %v2305 = vunpack.c.l.b16 %v1679
  %v2306 = vunpack.c.h.b16 %v1679
  %v2307 = vunpack.c.l.b16 %v1680
  %v2308 = vunpack.c.h.b16 %v1680
  %v2309 = vunpack.c.l.b16 %v1681
  %v2310 = vunpack.c.h.b16 %v1681
  %v2311 = vunpack.c.l.b16 %v1682
  %v2312 = vunpack.c.h.b16 %v1682
  %v2313 = vunpack.c.l.b16 %v1683
  %v2314 = vunpack.c.h.b16 %v1683
  %v2315 = vunpack.c.l.b16 %v1684
  %v2316 = vunpack.c.h.b16 %v1684
  %v2317 = vunpack.c.l.b16 %v1685
  %v2318 = vunpack.c.h.b16 %v1685
  %v2319 = vunpack.c.l.b16 %v1686
  %v2320 = vunpack.c.h.b16 %v1686
  %v2321 = vunpack.c.l.b16 %v1687
  %v2322 = vunpack.c.h.b16 %v1687
  %v2323 = vunpack.c.l.b16 %v1688
  %v2324 = vunpack.c.h.b16 %v1688
  %v2325 = vunpack.c.l.b16 %v1689
  %v2326 = vunpack.c.h.b16 %v1689
  %v2327 = vunpack.c.l.b16 %v1690
  %v2328 = vunpack.c.h.b16 %v1690
  %v2329 = vunpack.c.l.b16 %v1691
  %v2330 = vunpack.c.h.b16 %v1691
  %v2331 = vunpack.c.l.b16 %v1692
  %v2332 = vunpack.c.h.b16 %v1692
  %v2333 = vunpack.c.l.b16 %v1693
  %v2334 = vunpack.c.h.b16 %v1693
  %v2335 = vunpack.c.l.b16 %v1694
  %v2336 = vunpack.c.h.b16 %v1694
  %v2337 = vunpack.c.l.b16 %v1695
  %v2338 = vunpack.c.h.b16 %v1695
  %v2339 = vunpack.c.l.b16 %v1696
  %v2340 = vunpack.c.h.b16 %v1696
  %v2341 = vunpack.c.l.b16 %v1697
  %v2342 = vunpack.c.h.b16 %v1697
  %v2343 = vunpack.c.l.b16 %v1698
  %v2344 = vunpack.c.h.b16 %v1698
  %v2345 = vunpack.c.l.b16 %v1699
  %v2346 = vunpack.c.h.b16 %v1699
  %v2347 = vunpack.c.l.b16 %v1700
  %v2348 = vunpack.c.h.b16 %v1700
  %v2349 = vunpack.c.l.b16 %v1701
  %v2350 = vunpack.c.h.b16 %v1701
  %v2351 = vunpack.c.l.b16 %v1702
  %v2352 = vunpack.c.h.b16 %v1702
  %v2353 = vunpack.c.l.b16 %v1703
  %v2354 = vunpack.c.h.b16 %v1703
  %v2355 = vunpack.c.l.b16 %v1704
  %v2356 = vunpack.c.h.b16 %v1704
  %v2357 = vunpack.c.l.b16 %v1705
  %v2358 = vunpack.c.h.b16 %v1705
  %v2359 = vunpack.c.l.b16 %v1706
  %v2360 = vunpack.c.h.b16 %v1706
  %v2361 = vunpack.c.l.b16 %v1707
  %v2362 = vunpack.c.h.b16 %v1707
  %v2363 = vunpack.c.l.b16 %v1708
  %v2364 = vunpack.c.h.b16 %v1708
  %v2365 = vunpack.c.l.b16 %v1709
  %v2366 = vunpack.c.h.b16 %v1709
  %v2367 = vunpack.c.l.b16 %v1710
  %v2368 = vunpack.c.h.b16 %v1710
  %v2369 = vunpack.c.l.b16 %v1711
  %v2370 = vunpack.c.h.b16 %v1711
  %v2371 = vunpack.c.l.b16 %v1712
  %v2372 = vunpack.c.h.b16 %v1712
  %v2373 = vunpack.c.l.b16 %v1713
  %v2374 = vunpack.c.h.b16 %v1713
  %v2375 = vunpack.c.l.b16 %v1714
  %v2376 = vunpack.c.h.b16 %v1714
  %v2377 = vunpack.c.l.b16 %v1715
  %v2378 = vunpack.c.h.b16 %v1715
  %v2379 = vunpack.c.l.b16 %v1716
  %v2380 = vunpack.c.h.b16 %v1716
  %v2381 = vunpack.c.l.b16 %v1717
  %v2382 = vunpack.c.h.b16 %v1717
  %v2383 = vunpack.c.l.b16 %v1718
  %v2384 = vunpack.c.h.b16 %v1718
  %v2385 = vunpack.c.l.b16 %v1719
  %v2386 = vunpack.c.h.b16 %v1719
  %v2387 = vunpack.c.l.b16 %v1720
  %v2388 = vunpack.c.h.b16 %v1720
  %v2389 = vunpack.c.l.b16 %v1721
  %v2390 = vunpack.c.h.b16 %v1721
  %v2391 = vunpack.c.l.b16 %v1722
  %v2392 = vunpack.c.h.b16 %v1722
  %v2393 = vunpack.c.l.b16 %v1723
  %v2394 = vunpack.c.h.b16 %v1723
  %v2395 = vunpack.c.l.b16 %v1724
  %v2396 = vunpack.c.h.b16 %v1724
  %v2397 = vunpack.c.l.b16 %v1725
  %v2398 = vunpack.c.h.b16 %v1725
  %v2399 = vunpack.c.l.b16 %v1726
  %v2400 = vunpack.c.h.b16 %v1726
  %v2401 = vunpack.c.l.b16 %v1727
  %v2402 = vunpack.c.h.b16 %v1727
  %v2403 = vunpack.c.l.b16 %v1728
  %v2404 = vunpack.c.h.b16 %v1728
  %v2405 = vunpack.c.l.b16 %v1729
  %v2406 = vunpack.c.h.b16 %v1729
  %v2407 = vunpack.c.l.b16 %v1730
  %v2408 = vunpack.c.h.b16 %v1730
  %v2409 = vunpack.c.l.b16 %v1731
  %v2410 = vunpack.c.h.b16 %v1731
  %v2411 = vunpack.c.l.b16 %v1732
  %v2412 = vunpack.c.h.b16 %v1732
  %v2413 = vunpack.c.l.b16 %v1733
  %v2414 = vunpack.c.h.b16 %v1733
  %v2415 = vunpack.c.l.b16 %v1734
  %v2416 = vunpack.c.h.b16 %v1734
  %v2417 = vunpack.c.l.b16 %v1735
  %v2418 = vunpack.c.h.b16 %v1735
  %v2419 = vunpack.c.l.b16 %v1736
  %v2420 = vunpack.c.h.b16 %v1736
  %v2421 = vunpack.c.l.b16 %v1737
  %v2422 = vunpack.c.h.b16 %v1737
  %v2423 = vunpack.c.l.b16 %v1738
  %v2424 = vunpack.c.h.b16 %v1738
  %v2425 = vunpack.c.l.b16 %v1739
  %v2426 = vunpack.c.h.b16 %v1739
  %v2427 = vunpack.c.l.b16 %v1740
  %v2428 = vunpack.c.h.b16 %v1740
  %v2429 = vunpack.c.l.b16 %v1741
  %v2430 = vunpack.c.h.b16 %v1741
  %v2431 = vunpack.c.l.b16 %v1742
  %v2432 = vunpack.c.h.b16 %v1742
  %v2433 = vunpack.c.l.b16 %v1743
  %v2434 = vunpack.c.h.b16 %v1743
  %v2435 = vunpack.c.l.b16 %v1744
  %v2436 = vunpack.c.h.b16 %v1744
  %v2437 = vunpack.c.l.b16 %v1745
  %v2438 = vunpack.c.h.b16 %v1745
  %v2439 = vunpack.c.l.b16 %v1746
  %v2440 = vunpack.c.h.b16 %v1746
  %v2441 = vunpack.c.l.b16 %v1747
  %v2442 = vunpack.c.h.b16 %v1747
  %v2443 = vunpack.c.l.b16 %v1748
  %v2444 = vunpack.c.h.b16 %v1748
  %v2445 = vunpack.c.l.b16 %v1749
  %v2446 = vunpack.c.h.b16 %v1749
  %v2447 = vunpack.c.l.b16 %v1750
  %v2448 = vunpack.c.h.b16 %v1750
  %v2449 = vunpack.c.l.b16 %v1751
  %v2450 = vunpack.c.h.b16 %v1751
  %v2451 = vunpack.c.l.b16 %v1752
  %v2452 = vunpack.c.h.b16 %v1752
  %v2453 = vunpack.c.l.b16 %v1753
  %v2454 = vunpack.c.h.b16 %v1753
  %v2455 = vunpack.c.l.b16 %v1754
  %v2456 = vunpack.c.h.b16 %v1754
  %v2457 = vunpack.c.l.b16 %v1755
  %v2458 = vunpack.c.h.b16 %v1755
  %v2459 = vunpack.c.l.b16 %v1756
  %v2460 = vunpack.c.h.b16 %v1756
  %v2461 = vunpack.c.l.b16 %v1757
  %v2462 = vunpack.c.h.b16 %v1757
  %v2463 = vunpack.c.l.b16 %v1758
  %v2464 = vunpack.c.h.b16 %v1758
  %v2465 = vunpack.c.l.b16 %v1759
  %v2466 = vunpack.c.h.b16 %v1759
  %v2467 = vunpack.c.l.b16 %v1760
  %v2468 = vunpack.c.h.b16 %v1760
  %v2469 = vunpack.c.l.b16 %v1761
  %v2470 = vunpack.c.h.b16 %v1761
  %v2471 = vunpack.c.l.b16 %v1762
  %v2472 = vunpack.c.h.b16 %v1762
  %v2473 = vunpack.c.l.b16 %v1763
  %v2474 = vunpack.c.h.b16 %v1763
  %v2475 = vunpack.c.l.b16 %v1764
  %v2476 = vunpack.c.h.b16 %v1764
  %v2477 = vunpack.c.l.b16 %v1765
  %v2478 = vunpack.c.h.b16 %v1765
  %v2479 = vunpack.c.l.b16 %v1766
  %v2480 = vunpack.c.h.b16 %v1766
  %v2481 = vunpack.c.l.b16 %v1767
  %v2482 = vunpack.c.h.b16 %v1767
  %v2483 = vunpack.c.l.b16 %v1768
  %v2484 = vunpack.c.h.b16 %v1768
  %v2485 = vunpack.c.l.b16 %v1769
  %v2486 = vunpack.c.h.b16 %v1769
  %v2487 = vunpack.c.l.b16 %v1770
  %v2488 = vunpack.c.h.b16 %v1770
  %v2489 = vunpack.c.l.b16 %v1771
  %v2490 = vunpack.c.h.b16 %v1771
  %v2491 = vunpack.c.l.b16 %v1772
  %v2492 = vunpack.c.h.b16 %v1772
  %v2493 = vunpack.c.l.b16 %v1773
  %v2494 = vunpack.c.h.b16 %v1773
  %v2495 = vunpack.c.l.b16 %v1774
  %v2496 = vunpack.c.h.b16 %v1774
  %v2497 = vunpack.c.l.b16 %v1775
  %v2498 = vunpack.c.h.b16 %v1775
  %v2499 = vunpack.c.l.b16 %v1776
  %v2500 = vunpack.c.h.b16 %v1776
  %v2501 = vunpack.c.l.b16 %v1777
  %v2502 = vunpack.c.h.b16 %v1777
  %v2503 = vunpack.c.l.b16 %v1778
  %v2504 = vunpack.c.h.b16 %v1778
  %v2505 = vunpack.c.l.b16 %v1779
  %v2506 = vunpack.c.h.b16 %v1779
  %v2507 = vunpack.c.l.b16 %v1780
  %v2508 = vunpack.c.h.b16 %v1780
  %v2509 = vunpack.c.l.b16 %v1781
  %v2510 = vunpack.c.h.b16 %v1781
  %v2511 = vunpack.c.l.b16 %v1782
  %v2512 = vunpack.c.h.b16 %v1782
  %v2513 = vunpack.c.l.b16 %v1783
  %v2514 = vunpack.c.h.b16 %v1783
  %v2515 = vunpack.c.l.b16 %v1784
  %v2516 = vunpack.c.h.b16 %v1784
  %v2517 = vunpack.c.l.b16 %v1785
  %v2518 = vunpack.c.h.b16 %v1785
  %v2519 = vunpack.c.l.b16 %v1786
  %v2520 = vunpack.c.h.b16 %v1786
  %v2521 = vunpack.c.l.b16 %v1787
  %v2522 = vunpack.c.h.b16 %v1787
  %v2523 = vunpack.c.l.b16 %v1788
  %v2524 = vunpack.c.h.b16 %v1788
  %v2525 = vunpack.c.l.b16 %v1789
  %v2526 = vunpack.c.h.b16 %v1789
  %v2527 = vunpack.c.l.b16 %v1790
  %v2528 = vunpack.c.h.b16 %v1790
  %v2529 = vunpack.c.l.b16 %v1791
  %v2530 = vunpack.c.h.b16 %v1791
  %v2531 = vunpack.c.l.b16 %v1792
  %v2532 = vunpack.c.h.b16 %v1792
  %v2533 = vunpack.c.l.b16 %v1793
  %v2534 = vunpack.c.h.b16 %v1793
  %v2535 = vunpack.c.l.b16 %v1794
  %v2536 = vunpack.c.h.b16 %v1794
  %v2537 = vunpack.c.l.b16 %v1795
  %v2538 = vunpack.c.h.b16 %v1795
  %v2539 = vunpack.c.l.b16 %v1796
  %v2540 = vunpack.c.h.b16 %v1796
  %v2541 = vunpack.c.l.b16 %v1797
  %v2542 = vunpack.c.h.b16 %v1797
  %v2543 = vunpack.c.l.b16 %v1798
  %v2544 = vunpack.c.h.b16 %v1798
  %v2545 = vunpack.c.l.b16 %v1799
  %v2546 = vunpack.c.h.b16 %v1799
  %v2547 = vunpack.c.l.b16 %v1800
  %v2548 = vunpack.c.h.b16 %v1800
  %v2549 = vunpack.c.l.b16 %v1801
  %v2550 = vunpack.c.h.b16 %v1801
  %v2551 = vunpack.c.l.b16 %v1802
  %v2552 = vunpack.c.h.b16 %v1802
  %v2553 = vunpack.c.l.b16 %v1803
  %v2554 = vunpack.c.h.b16 %v1803
  %v2555 = vunpack.c.l.b16 %v1804
  %v2556 = vunpack.c.h.b16 %v1804
  %v2557 = vunpack.c.l.b16 %v1805
  %v2558 = vunpack.c.h.b16 %v1805
  %v2559 = vunpack.c.l.b16 %v1806
  %v2560 = vunpack.c.h.b16 %v1806
  %v2561 = vunpack.c.l.b16 %v1807
  %v2562 = vunpack.c.h.b16 %v1807
  %v2563 = vunpack.c.l.b16 %v1808
  %v2564 = vunpack.c.h.b16 %v1808
  %v2565 = vunpack.c.l.b16 %v1809
  %v2566 = vunpack.c.h.b16 %v1809
  %v2567 = vunpack.c.l.b16 %v1810
  %v2568 = vunpack.c.h.b16 %v1810
  %v2569 = vunpack.c.l.b16 %v1811
  %v2570 = vunpack.c.h.b16 %v1811
  %v2571 = vunpack.c.l.b16 %v1812
  %v2572 = vunpack.c.h.b16 %v1812
  %v2573 = vunpack.c.l.b16 %v1813
  %v2574 = vunpack.c.h.b16 %v1813
  %v2575 = vunpack.c.l.b16 %v1814
  %v2576 = vunpack.c.h.b16 %v1814
  %v2577 = vunpack.c.l.b16 %v1815
  %v2578 = vunpack.c.h.b16 %v1815
  %v2579 = vunpack.c.l.b16 %v1816
  %v2580 = vunpack.c.h.b16 %v1816
  %v2581 = vunpack.c.l.b16 %v1817
  %v2582 = vunpack.c.h.b16 %v1817
  %v2583 = vunpack.c.l.b16 %v1818
  %v2584 = vunpack.c.h.b16 %v1818
  %v2585 = vunpack.c.l.b16 %v1819
  %v2586 = vunpack.c.h.b16 %v1819
  %v2587 = vunpack.c.l.b16 %v1820
  %v2588 = vunpack.c.h.b16 %v1820
  %v2589 = vunpack.c.l.b16 %v1821
  %v2590 = vunpack.c.h.b16 %v1821
  %v2591 = vunpack.c.l.b16 %v1822
  %v2592 = vunpack.c.h.b16 %v1822
  %v2593 = vunpack.c.l.b16 %v1823
  %v2594 = vunpack.c.h.b16 %v1823
  %v2595 = vunpack.c.l.b16 %v1824
  %v2596 = vunpack.c.h.b16 %v1824
  %v2597 = vunpack.c.l.b16 %v1825
  %v2598 = vunpack.c.h.b16 %v1825
  %v2599 = vunpack.c.l.b16 %v1826
  %v2600 = vunpack.c.h.b16 %v1826
  %v2601 = vunpack.c.l.b16 %v1827
  %v2602 = vunpack.c.h.b16 %v1827
  %v2603 = vunpack.c.l.b16 %v1828
  %v2604 = vunpack.c.h.b16 %v1828
  %v2605 = vunpack.c.l.b16 %v1829
  %v2606 = vunpack.c.h.b16 %v1829
  %v2607 = vunpack.c.l.b16 %v1830
  %v2608 = vunpack.c.h.b16 %v1830
  %v2609 = vunpack.c.l.b16 %v1831
  %v2610 = vunpack.c.h.b16 %v1831
  %v2611 = vunpack.c.l.b16 %v1832
  %v2612 = vunpack.c.h.b16 %v1832
  %v2613 = vunpack.c.l.b16 %v1833
  %v2614 = vunpack.c.h.b16 %v1833
  %v2615 = vunpack.c.l.b16 %v1834
  %v2616 = vunpack.c.h.b16 %v1834
  %v2617 = vunpack.c.l.b16 %v1835
  %v2618 = vunpack.c.h.b16 %v1835
  %v2619 = vunpack.c.l.b16 %v1836
  %v2620 = vunpack.c.h.b16 %v1836
  %v2621 = vunpack.c.l.b16 %v1837
  %v2622 = vunpack.c.h.b16 %v1837
  %v2623 = vunpack.c.l.b16 %v1838
  %v2624 = vunpack.c.h.b16 %v1838
  %v2625 = vunpack.c.l.b16 %v1839
  %v2626 = vunpack.c.h.b16 %v1839
  %v2627 = vunpack.c.l.b16 %v1840
  %v2628 = vunpack.c.h.b16 %v1840
  %v2629 = vunpack.c.l.b16 %v1841
  %v2630 = vunpack.c.h.b16 %v1841
  %v2631 = vunpack.c.l.b16 %v1842
  %v2632 = vunpack.c.h.b16 %v1842
  %v2633 = vunpack.c.l.b16 %v1843
  %v2634 = vunpack.c.h.b16 %v1843
  %v2635 = vunpack.c.l.b16 %v1844
  %v2636 = vunpack.c.h.b16 %v1844
  %v2637 = vunpack.c.l.b16 %v1845
  %v2638 = vunpack.c.h.b16 %v1845
  %v2639 = vunpack.c.l.b16 %v1846
  %v2640 = vunpack.c.h.b16 %v1846
  %v2641 = vunpack.c.l.b16 %v1847
  %v2642 = vunpack.c.h.b16 %v1847
  %v2643 = vunpack.c.l.b16 %v1848
  %v2644 = vunpack.c.h.b16 %v1848
  %v2645 = vunpack.c.l.b16 %v1849
  %v2646 = vunpack.c.h.b16 %v1849
  %v2647 = vpack.c.b16 %v2139, %v2135
  %v2648 = vpack.c.b16 %v2140, %v2136
  %v2649 = vpack.c.b16 %v2141, %v2137
  %v2650 = vpack.c.b16 %v2142, %v2138
  %v2651 = vpack.c.b16 %v2147, %v2143
  %v2652 = vpack.c.b16 %v2148, %v2144
  %v2653 = vpack.c.b16 %v2149, %v2145
  %v2654 = vpack.c.b16 %v2150, %v2146
  %v2655 = vpack.c.b16 %v2155, %v2151
  %v2656 = vpack.c.b16 %v2156, %v2152
  %v2657 = vpack.c.b16 %v2157, %v2153
  %v2658 = vpack.c.b16 %v2158, %v2154
  %v2659 = vpack.c.b16 %v2163, %v2159
  %v2660 = vpack.c.b16 %v2164, %v2160
  %v2661 = vpack.c.b16 %v2165, %v2161
  %v2662 = vpack.c.b16 %v2166, %v2162
  %v2663 = vpack.c.b16 %v2171, %v2167
  %v2664 = vpack.c.b16 %v2172, %v2168
  %v2665 = vpack.c.b16 %v2173, %v2169
  %v2666 = vpack.c.b16 %v2174, %v2170
  %v2667 = vpack.c.b16 %v2179, %v2175
  %v2668 = vpack.c.b16 %v2180, %v2176
  %v2669 = vpack.c.b16 %v2181, %v2177
  %v2670 = vpack.c.b16 %v2182, %v2178
  %v2671 = vpack.c.b16 %v2187, %v2183
  %v2672 = vpack.c.b16 %v2188, %v2184
  %v2673 = vpack.c.b16 %v2189, %v2185
  %v2674 = vpack.c.b16 %v2190, %v2186
  %v2675 = vpack.c.b16 %v2195, %v2191
  %v2676 = vpack.c.b16 %v2196, %v2192
  %v2677 = vpack.c.b16 %v2197, %v2193
  %v2678 = vpack.c.b16 %v2198, %v2194
  %v2679 = vpack.c.b16 %v2203, %v2199
  %v2680 = vpack.c.b16 %v2204, %v2200
  %v2681 = vpack.c.b16 %v2205, %v2201
  %v2682 = vpack.c.b16 %v2206, %v2202
  %v2683 = vpack.c.b16 %v2211, %v2207
  %v2684 = vpack.c.b16 %v2212, %v2208
  %v2685 = vpack.c.b16 %v2213, %v2209
  %v2686 = vpack.c.b16 %v2214, %v2210
  %v2687 = vpack.c.b16 %v2219, %v2215
  %v2688 = vpack.c.b16 %v2220, %v2216
  %v2689 = vpack.c.b16 %v2221, %v2217
  %v2690 = vpack.c.b16 %v2222, %v2218
  %v2691 = vpack.c.b16 %v2227, %v2223
  %v2692 = vpack.c.b16 %v2228, %v2224
  %v2693 = vpack.c.b16 %v2229, %v2225
  %v2694 = vpack.c.b16 %v2230, %v2226
  %v2695 = vpack.c.b16 %v2235, %v2231
  %v2696 = vpack.c.b16 %v2236, %v2232
  %v2697 = vpack.c.b16 %v2237, %v2233
  %v2698 = vpack.c.b16 %v2238, %v2234
  %v2699 = vpack.c.b16 %v2243, %v2239
  %v2700 = vpack.c.b16 %v2244, %v2240
  %v2701 = vpack.c.b16 %v2245, %v2241
  %v2702 = vpack.c.b16 %v2246, %v2242
  %v2703 = vpack.c.b16 %v2251, %v2247
  %v2704 = vpack.c.b16 %v2252, %v2248
  %v2705 = vpack.c.b16 %v2253, %v2249
  %v2706 = vpack.c.b16 %v2254, %v2250
  %v2707 = vpack.c.b16 %v2259, %v2255
  %v2708 = vpack.c.b16 %v2260, %v2256
  %v2709 = vpack.c.b16 %v2261, %v2257
  %v2710 = vpack.c.b16 %v2262, %v2258
  %v2711 = vpack.c.b16 %v2267, %v2263
  %v2712 = vpack.c.b16 %v2268, %v2264
  %v2713 = vpack.c.b16 %v2269, %v2265
  %v2714 = vpack.c.b16 %v2270, %v2266
  %v2715 = vpack.c.b16 %v2275, %v2271
  %v2716 = vpack.c.b16 %v2276, %v2272
  %v2717 = vpack.c.b16 %v2277, %v2273
  %v2718 = vpack.c.b16 %v2278, %v2274
  %v2719 = vpack.c.b16 %v2283, %v2279
  %v2720 = vpack.c.b16 %v2284, %v2280
  %v2721 = vpack.c.b16 %v2285, %v2281
  %v2722 = vpack.c.b16 %v2286, %v2282
  %v2723 = vpack.c.b16 %v2291, %v2287
  %v2724 = vpack.c.b16 %v2292, %v2288
  %v2725 = vpack.c.b16 %v2293, %v2289
  %v2726 = vpack.c.b16 %v2294, %v2290
  %v2727 = vpack.c.b16 %v2299, %v2295
  %v2728 = vpack.c.b16 %v2300, %v2296
  %v2729 = vpack.c.b16 %v2301, %v2297
  %v2730 = vpack.c.b16 %v2302, %v2298
  %v2731 = vpack.c.b16 %v2307, %v2303
  %v2732 = vpack.c.b16 %v2308, %v2304
  %v2733 = vpack.c.b16 %v2309, %v2305
  %v2734 = vpack.c.b16 %v2310, %v2306
  %v2735 = vpack.c.b16 %v2315, %v2311
  %v2736 = vpack.c.b16 %v2316, %v2312
  %v2737 = vpack.c.b16 %v2317, %v2313
  %v2738 = vpack.c.b16 %v2318, %v2314
  %v2739 = vpack.c.b16 %v2323, %v2319
  %v2740 = vpack.c.b16 %v2324, %v2320
  %v2741 = vpack.c.b16 %v2325, %v2321
  %v2742 = vpack.c.b16 %v2326, %v2322
  %v2743 = vpack.c.b16 %v2331, %v2327
  %v2744 = vpack.c.b16 %v2332, %v2328
  %v2745 = vpack.c.b16 %v2333, %v2329
  %v2746 = vpack.c.b16 %v2334, %v2330
  %v2747 = vpack.c.b16 %v2339, %v2335
  %v2748 = vpack.c.b16 %v2340, %v2336
  %v2749 = vpack.c.b16 %v2341, %v2337
  %v2750 = vpack.c.b16 %v2342, %v2338
  %v2751 = vpack.c.b16 %v2347, %v2343
  %v2752 = vpack.c.b16 %v2348, %v2344
  %v2753 = vpack.c.b16 %v2349, %v2345
  %v2754 = vpack.c.b16 %v2350, %v2346
  %v2755 = vpack.c.b16 %v2355, %v2351
  %v2756 = vpack.c.b16 %v2356, %v2352
  %v2757 = vpack.c.b16 %v2357, %v2353
  %v2758 = vpack.c.b16 %v2358, %v2354
  %v2759 = vpack.c.b16 %v2363, %v2359
  %v2760 = vpack.c.b16 %v2364, %v2360
  %v2761 = vpack.c.b16 %v2365, %v2361
  %v2762 = vpack.c.b16 %v2366, %v2362
  %v2763 = vpack.c.b16 %v2371, %v2367
  %v2764 = vpack.c.b16 %v2372, %v2368
  %v2765 = vpack.c.b16 %v2373, %v2369
  %v2766 = vpack.c.b16 %v2374, %v2370
  %v2767 = vpack.c.b16 %v2379, %v2375
  %v2768 = vpack.c.b16 %v2380, %v2376
  %v2769 = vpack.c.b16 %v2381, %v2377
  %v2770 = vpack.c.b16 %v2382, %v2378
  %v2771 = vpack.c.b16 %v2387, %v2383
  %v2772 = vpack.c.b16 %v2388, %v2384
  %v2773 = vpack.c.b16 %v2389, %v2385
  %v2774 = vpack.c.b16 %v2390, %v2386
  %v2775 = vpack.c.b16 %v2395, %v2391
  %v2776 = vpack.c.b16 %v2396, %v2392
  %v2777 = vpack.c.b16 %v2397, %v2393
  %v2778 = vpack.c.b16 %v2398, %v2394
  %v2779 = vpack.c.b16 %v2403, %v2399
  %v2780 = vpack.c.b16 %v2404, %v2400
  %v2781 = vpack.c.b16 %v2405, %v2401
  %v2782 = vpack.c.b16 %v2406, %v2402
  %v2783 = vpack.c.b16 %v2411, %v2407
  %v2784 = vpack.c.b16 %v2412, %v2408
  %v2785 = vpack.c.b16 %v2413, %v2409
  %v2786 = vpack.c.b16 %v2414, %v2410
  %v2787 = vpack.c.b16 %v2419, %v2415
  %v2788 = vpack.c.b16 %v2420, %v2416
  %v2789 = vpack.c.b16 %v2421, %v2417
  %v2790 = vpack.c.b16 %v2422, %v2418
  %v2791 = vpack.c.b16 %v2427, %v2423
  %v2792 = vpack.c.b16 %v2428, %v2424
  %v2793 = vpack.c.b16 %v2429, %v2425
  %v2794 = vpack.c.b16 %v2430, %v2426
  %v2795 = vpack.c.b16 %v2435, %v2431
  %v2796 = vpack.c.b16 %v2436, %v2432
  %v2797 = vpack.c.b16 %v2437, %v2433
  %v2798 = vpack.c.b16 %v2438, %v2434
  %v2799 = vpack.c.b16 %v2443, %v2439
  %v2800 = vpack.c.b16 %v2444, %v2440
  %v2801 = vpack.c.b16 %v2445, %v2441
  %v2802 = vpack.c.b16 %v2446, %v2442
  %v2803 = vpack.c.b16 %v2451, %v2447
  %v2804 = vpack.c.b16 %v2452, %v2448
  %v2805 = vpack.c.b16 %v2453, %v2449
  %v2806 = vpack.c.b16 %v2454, %v2450
  %v2807 = vpack.c.b16 %v2459, %v2455
  %v2808 = vpack.c.b16 %v2460, %v2456
  %v2809 = vpack.c.b16 %v2461, %v2457
  %v2810 = vpack.c.b16 %v2462, %v2458
  %v2811 = vpack.c.b16 %v2467, %v2463
  %v2812 = vpack.c.b16 %v2468, %v2464
  %v2813 = vpack.c.b16 %v2469, %v2465
  %v2814 = vpack.c.b16 %v2470, %v2466
  %v2815 = vpack.c.b16 %v2475, %v2471
  %v2816 = vpack.c.b16 %v2476, %v2472
  %v2817 = vpack.c.b16 %v2477, %v2473
  %v2818 = vpack.c.b16 %v2478, %v2474
  %v2819 = vpack.c.b16 %v2483, %v2479
  %v2820 = vpack.c.b16 %v2484, %v2480
  %v2821 = vpack.c.b16 %v2485, %v2481
  %v2822 = vpack.c.b16 %v2486, %v2482
  %v2823 = vpack.c.b16 %v2491, %v2487
  %v2824 = vpack.c.b16 %v2492, %v2488
  %v2825 = vpack.c.b16 %v2493, %v2489
  %v2826 = vpack.c.b16 %v2494, %v2490
  %v2827 = vpack.c.b16 %v2499, %v2495
  %v2828 = vpack.c.b16 %v2500, %v2496
  %v2829 = vpack.c.b16 %v2501, %v2497
  %v2830 = vpack.c.b16 %v2502, %v2498
  %v2831 = vpack.c.b16 %v2507, %v2503
  %v2832 = vpack.c.b16 %v2508, %v2504
  %v2833 = vpack.c.b16 %v2509, %v2505
  %v2834 = vpack.c.b16 %v2510, %v2506
  %v2835 = vpack.c.b16 %v2515, %v2511
  %v2836 = vpack.c.b16 %v2516, %v2512
  %v2837 = vpack.c.b16 %v2517, %v2513
  %v2838 = vpack.c.b16 %v2518, %v2514
  %v2839 = vpack.c.b16 %v2523, %v2519
  %v2840 = vpack.c.b16 %v2524, %v2520
  %v2841 = vpack.c.b16 %v2525, %v2521
  %v2842 = vpack.c.b16 %v2526, %v2522
  %v2843 = vpack.c.b16 %v2531, %v2527
  %v2844 = vpack.c.b16 %v2532, %v2528
  %v2845 = vpack.c.b16 %v2533, %v2529
  %v2846 = vpack.c.b16 %v2534, %v2530
  %v2847 = vpack.c.b16 %v2539, %v2535
  %v2848 = vpack.c.b16 %v2540, %v2536
  %v2849 = vpack.c.b16 %v2541, %v2537
  %v2850 = vpack.c.b16 %v2542, %v2538
  %v2851 = vpack.c.b16 %v2547, %v2543
  %v2852 = vpack.c.b16 %v2548, %v2544
  %v2853 = vpack.c.b16 %v2549, %v2545
  %v2854 = vpack.c.b16 %v2550, %v2546
  %v2855 = vpack.c.b16 %v2555, %v2551
  %v2856 = vpack.c.b16 %v2556, %v2552
  %v2857 = vpack.c.b16 %v2557, %v2553
  %v2858 = vpack.c.b16 %v2558, %v2554
  %v2859 = vpack.c.b16 %v2563, %v2559
  %v2860 = vpack.c.b16 %v2564, %v2560
  %v2861 = vpack.c.b16 %v2565, %v2561
  %v2862 = vpack.c.b16 %v2566, %v2562
  %v2863 = vpack.c.b16 %v2571, %v2567
  %v2864 = vpack.c.b16 %v2572, %v2568
  %v2865 = vpack.c.b16 %v2573, %v2569
  %v2866 = vpack.c.b16 %v2574, %v2570
  %v2867 = vpack.c.b16 %v2579, %v2575
  %v2868 = vpack.c.b16 %v2580, %v2576
  %v2869 = vpack.c.b16 %v2581, %v2577
  %v2870 = vpack.c.b16 %v2582, %v2578
  %v2871 = vpack.c.b16 %v2587, %v2583
  %v2872 = vpack.c.b16 %v2588, %v2584
  %v2873 = vpack.c.b16 %v2589, %v2585
  %v2874 = vpack.c.b16 %v2590, %v2586
  %v2875 = vpack.c.b16 %v2595, %v2591
  %v2876 = vpack.c.b16 %v2596, %v2592
  %v2877 = vpack.c.b16 %v2597, %v2593
  %v2878 = vpack.c.b16 %v2598, %v2594
  %v2879 = vpack.c.b16 %v2603, %v2599
  %v2880 = vpack.c.b16 %v2604, %v2600
  %v2881 = vpack.c.b16 %v2605, %v2601
  %v2882 = vpack.c.b16 %v2606, %v2602
  %v2883 = vpack.c.b16 %v2611, %v2607
  %v2884 = vpack.c.b16 %v2612, %v2608
  %v2885 = vpack.c.b16 %v2613, %v2609
  %v2886 = vpack.c.b16 %v2614, %v2610
  %v2887 = vpack.c.b16 %v2619, %v2615
  %v2888 = vpack.c.b16 %v2620, %v2616
  %v2889 = vpack.c.b16 %v2621, %v2617
  %v2890 = vpack.c.b16 %v2622, %v2618
  %v2891 = vpack.c.b16 %v2627, %v2623
  %v2892 = vpack.c.b16 %v2628, %v2624
  %v2893 = vpack.c.b16 %v2629, %v2625
  %v2894 = vpack.c.b16 %v2630, %v2626
  %v2895 = vpack.c.b16 %v2635, %v2631
  %v2896 = vpack.c.b16 %v2636, %v2632
  %v2897 = vpack.c.b16 %v2637, %v2633
  %v2898 = vpack.c.b16 %v2638, %v2634
  %v2899 = vpack.c.b16 %v2643, %v2639
  %v2900 = vpack.c.b16 %v2644, %v2640
  %v2901 = vpack.c.b16 %v2645, %v2641
  %v2902 = vpack.c.b16 %v2646, %v2642
  %3159 = vmatprep.subr.bf16.mxu0 %v2648
  %3160 = vmatpush1.bf16.msra.mxu0 %v2647
  %3161 = vmatprep.subr.bf16.mxu0 %v2652
  %3162 = vmatpush1.bf16.msra.mxu0 %v2651
  %3163 = vmatprep.subr.bf16.mxu0 %v2656
  %3164 = vmatpush1.bf16.msra.mxu0 %v2655
  %3165 = vmatprep.subr.bf16.mxu0 %v2660
  %3166 = vmatpush1.bf16.msra.mxu0 %v2659
  %3167 = vmatprep.subr.bf16.mxu0 %v2664
  %3168 = vmatpush1.bf16.msra.mxu0 %v2663
  %3169 = vmatprep.subr.bf16.mxu0 %v2668
  %3170 = vmatpush1.bf16.msra.mxu0 %v2667
  %3171 = vmatprep.subr.bf16.mxu0 %v2672
  %3172 = vmatpush1.bf16.msra.mxu0 %v2671
  %3173 = vmatprep.subr.bf16.mxu0 %v2676
  %3174 = vmatpush1.bf16.msra.mxu0 %v2675
  %3175 = vmatprep.subr.bf16.mxu0 %v2680
  %3176 = vmatpush1.bf16.msra.mxu0 %v2679
  %3177 = vmatprep.subr.bf16.mxu0 %v2684
  %3178 = vmatpush1.bf16.msra.mxu0 %v2683
  %3179 = vmatprep.subr.bf16.mxu0 %v2688
  %3180 = vmatpush1.bf16.msra.mxu0 %v2687
  %3181 = vmatprep.subr.bf16.mxu0 %v2692
  %3182 = vmatpush1.bf16.msra.mxu0 %v2691
  %3183 = vmatprep.subr.bf16.mxu0 %v2696
  %3184 = vmatpush1.bf16.msra.mxu0 %v2695
  %3185 = vmatprep.subr.bf16.mxu0 %v2700
  %3186 = vmatpush1.bf16.msra.mxu0 %v2699
  %3187 = vmatprep.subr.bf16.mxu0 %v2704
  %3188 = vmatpush1.bf16.msra.mxu0 %v2703
  %3189 = vmatprep.subr.bf16.mxu0 %v2708
  %3190 = vmatpush1.bf16.msra.mxu0 %v2707
  %3191 = vmatprep.mubr.bf16.mxu0 %v1851
  %3192 = vmatmul.mubr.bf16.gmra.mrb[0].mxu0 %v1850
  %v3193 = vpop.f32.mrb[0].mxu0
  %v3194 = vadd.f32 %v1862, %v3193
  %v3195 = vpop.f32.mrb[0].mxu0
  %v3196 = vadd.f32 %v1866, %v3195
  %v3197 = vpop.f32.mrb[0].mxu0
  %v3198 = vpop.f32.mrb[0].mxu0
  %3199 = vdwg.mxu0
  %3200 = vmatprep.subr.bf16.mxu0 %v2712
  %3201 = vmatpush1.bf16.msra.mxu0 %v2711
  %3202 = vmatprep.subr.bf16.mxu0 %v2716
  %3203 = vmatpush1.bf16.msra.mxu0 %v2715
  %3204 = vmatprep.subr.bf16.mxu0 %v2720
  %3205 = vmatpush1.bf16.msra.mxu0 %v2719
  %3206 = vmatprep.subr.bf16.mxu0 %v2724
  %3207 = vmatpush1.bf16.msra.mxu0 %v2723
  %3208 = vmatprep.subr.bf16.mxu0 %v2728
  %3209 = vmatpush1.bf16.msra.mxu0 %v2727
  %3210 = vmatprep.subr.bf16.mxu0 %v2732
  %3211 = vmatpush1.bf16.msra.mxu0 %v2731
  %3212 = vmatprep.subr.bf16.mxu0 %v2736
  %3213 = vmatpush1.bf16.msra.mxu0 %v2735
  %3214 = vmatprep.subr.bf16.mxu0 %v2740
  %3215 = vmatpush1.bf16.msra.mxu0 %v2739
  %3216 = vmatprep.subr.bf16.mxu0 %v2744
  %3217 = vmatpush1.bf16.msra.mxu0 %v2743
  %3218 = vmatprep.subr.bf16.mxu0 %v2748
  %3219 = vmatpush1.bf16.msra.mxu0 %v2747
  %3220 = vmatprep.subr.bf16.mxu0 %v2752
  %3221 = vmatpush1.bf16.msra.mxu0 %v2751
  %3222 = vmatprep.subr.bf16.mxu0 %v2756
  %3223 = vmatpush1.bf16.msra.mxu0 %v2755
  %3224 = vmatprep.subr.bf16.mxu0 %v2760
  %3225 = vmatpush1.bf16.msra.mxu0 %v2759
  %3226 = vmatprep.subr.bf16.mxu0 %v2764
  %3227 = vmatpush1.bf16.msra.mxu0 %v2763
  %3228 = vmatprep.subr.bf16.mxu0 %v2768
  %3229 = vmatpush1.bf16.msra.mxu0 %v2767
  %3230 = vmatprep.subr.bf16.mxu0 %v2772
  %3231 = vmatpush1.bf16.msra.mxu0 %v2771
  %3232 = vmatprep.mubr.bf16.mxu0 %v1853
  %3233 = vmatmul.mubr.bf16.gmra.mrb[0].mxu0 %v1852
  %v3234 = vpop.f32.mrb[0].mxu0
  %v3235 = vadd.f32 %v3194, %v3234
  %v3236 = vpop.f32.mrb[0].mxu0
  %v3237 = vadd.f32 %v3196, %v3236
  %v3238 = vpop.f32.mrb[0].mxu0
  %v3239 = vpop.f32.mrb[0].mxu0
  %3240 = vdwg.mxu0
  %3241 = vmatprep.subr.bf16.mxu0 %v2776
  %3242 = vmatpush1.bf16.msra.mxu0 %v2775
  %3243 = vmatprep.subr.bf16.mxu0 %v2780
  %3244 = vmatpush1.bf16.msra.mxu0 %v2779
  %3245 = vmatprep.subr.bf16.mxu0 %v2784
  %3246 = vmatpush1.bf16.msra.mxu0 %v2783
  %3247 = vmatprep.subr.bf16.mxu0 %v2788
  %3248 = vmatpush1.bf16.msra.mxu0 %v2787
  %3249 = vmatprep.subr.bf16.mxu0 %v2792
  %3250 = vmatpush1.bf16.msra.mxu0 %v2791
  %3251 = vmatprep.subr.bf16.mxu0 %v2796
  %3252 = vmatpush1.bf16.msra.mxu0 %v2795
  %3253 = vmatprep.subr.bf16.mxu0 %v2800
  %3254 = vmatpush1.bf16.msra.mxu0 %v2799
  %3255 = vmatprep.subr.bf16.mxu0 %v2804
  %3256 = vmatpush1.bf16.msra.mxu0 %v2803
  %3257 = vmatprep.subr.bf16.mxu0 %v2808
  %3258 = vmatpush1.bf16.msra.mxu0 %v2807
  %3259 = vmatprep.subr.bf16.mxu0 %v2812
  %3260 = vmatpush1.bf16.msra.mxu0 %v2811
  %3261 = vmatprep.subr.bf16.mxu0 %v2816
  %3262 = vmatpush1.bf16.msra.mxu0 %v2815
  %3263 = vmatprep.subr.bf16.mxu0 %v2820
  %3264 = vmatpush1.bf16.msra.mxu0 %v2819
  %3265 = vmatprep.subr.bf16.mxu0 %v2824
  %3266 = vmatpush1.bf16.msra.mxu0 %v2823
  %3267 = vmatprep.subr.bf16.mxu0 %v2828
  %3268 = vmatpush1.bf16.msra.mxu0 %v2827
  %3269 = vmatprep.subr.bf16.mxu0 %v2832
  %3270 = vmatpush1.bf16.msra.mxu0 %v2831
  %3271 = vmatprep.subr.bf16.mxu0 %v2836
  %3272 = vmatpush1.bf16.msra.mxu0 %v2835
  %3273 = vmatprep.mubr.bf16.mxu0 %v1855
  %3274 = vmatmul.mubr.bf16.gmra.mrb[0].mxu0 %v1854
  %v3275 = vpop.f32.mrb[0].mxu0
  %v3276 = vadd.f32 %v3235, %v3275
  %v3277 = vpop.f32.mrb[0].mxu0
  %v3278 = vadd.f32 %v3237, %v3277
  %v3279 = vpop.f32.mrb[0].mxu0
  %v3280 = vpop.f32.mrb[0].mxu0
  %3281 = vdwg.mxu0
  %3282 = vmatprep.subr.bf16.mxu0 %v2840
  %3283 = vmatpush1.bf16.msra.mxu0 %v2839
  %3284 = vmatprep.subr.bf16.mxu0 %v2844
  %3285 = vmatpush1.bf16.msra.mxu0 %v2843
  %3286 = vmatprep.subr.bf16.mxu0 %v2848
  %3287 = vmatpush1.bf16.msra.mxu0 %v2847
  %3288 = vmatprep.subr.bf16.mxu0 %v2852
  %3289 = vmatpush1.bf16.msra.mxu0 %v2851
  %3290 = vmatprep.subr.bf16.mxu0 %v2856
  %3291 = vmatpush1.bf16.msra.mxu0 %v2855
  %3292 = vmatprep.subr.bf16.mxu0 %v2860
  %3293 = vmatpush1.bf16.msra.mxu0 %v2859
  %3294 = vmatprep.subr.bf16.mxu0 %v2864
  %3295 = vmatpush1.bf16.msra.mxu0 %v2863
  %3296 = vmatprep.subr.bf16.mxu0 %v2868
  %3297 = vmatpush1.bf16.msra.mxu0 %v2867
  %3298 = vmatprep.subr.bf16.mxu0 %v2872
  %3299 = vmatpush1.bf16.msra.mxu0 %v2871
  %3300 = vmatprep.subr.bf16.mxu0 %v2876
  %3301 = vmatpush1.bf16.msra.mxu0 %v2875
  %3302 = vmatprep.subr.bf16.mxu0 %v2880
  %3303 = vmatpush1.bf16.msra.mxu0 %v2879
  %3304 = vmatprep.subr.bf16.mxu0 %v2884
  %3305 = vmatpush1.bf16.msra.mxu0 %v2883
  %3306 = vmatprep.subr.bf16.mxu0 %v2888
  %3307 = vmatpush1.bf16.msra.mxu0 %v2887
  %3308 = vmatprep.subr.bf16.mxu0 %v2892
  %3309 = vmatpush1.bf16.msra.mxu0 %v2891
  %3310 = vmatprep.subr.bf16.mxu0 %v2896
  %3311 = vmatpush1.bf16.msra.mxu0 %v2895
  %3312 = vmatprep.subr.bf16.mxu0 %v2900
  %3313 = vmatpush1.bf16.msra.mxu0 %v2899
  %3314 = vmatprep.mubr.bf16.mxu0 %v1857
  %3315 = vmatmul.mubr.bf16.gmra.mrb[0].mxu0 %v1856
  %v3316 = vpop.f32.mrb[0].mxu0
  %v3317 = vadd.f32 %v3276, %v3316
  %v3318 = vpop.f32.mrb[0].mxu0
  %v3319 = vadd.f32 %v3278, %v3318
  %v3320 = vpop.f32.mrb[0].mxu0
  %v3321 = vpop.f32.mrb[0].mxu0
  %3322 = vdwg.mxu0
  %3323 = vmatprep.subr.bf16.mxu0 %v2650
  %3324 = vmatpush1.bf16.msra.mxu0 %v2649
  %3325 = vmatprep.subr.bf16.mxu0 %v2654
  %3326 = vmatpush1.bf16.msra.mxu0 %v2653
  %3327 = vmatprep.subr.bf16.mxu0 %v2658
  %3328 = vmatpush1.bf16.msra.mxu0 %v2657
  %3329 = vmatprep.subr.bf16.mxu0 %v2662
  %3330 = vmatpush1.bf16.msra.mxu0 %v2661
  %3331 = vmatprep.subr.bf16.mxu0 %v2666
  %3332 = vmatpush1.bf16.msra.mxu0 %v2665
  %3333 = vmatprep.subr.bf16.mxu0 %v2670
  %3334 = vmatpush1.bf16.msra.mxu0 %v2669
  %3335 = vmatprep.subr.bf16.mxu0 %v2674
  %3336 = vmatpush1.bf16.msra.mxu0 %v2673
  %3337 = vmatprep.subr.bf16.mxu0 %v2678
  %3338 = vmatpush1.bf16.msra.mxu0 %v2677
  %3339 = vmatprep.subr.bf16.mxu0 %v2682
  %3340 = vmatpush1.bf16.msra.mxu0 %v2681
  %3341 = vmatprep.subr.bf16.mxu0 %v2686
  %3342 = vmatpush1.bf16.msra.mxu0 %v2685
  %3343 = vmatprep.subr.bf16.mxu0 %v2690
  %3344 = vmatpush1.bf16.msra.mxu0 %v2689
  %3345 = vmatprep.subr.bf16.mxu0 %v2694
  %3346 = vmatpush1.bf16.msra.mxu0 %v2693
  %3347 = vmatprep.subr.bf16.mxu0 %v2698
  %3348 = vmatpush1.bf16.msra.mxu0 %v2697
  %3349 = vmatprep.subr.bf16.mxu0 %v2702
  %3350 = vmatpush1.bf16.msra.mxu0 %v2701
  %3351 = vmatprep.subr.bf16.mxu0 %v2706
  %3352 = vmatpush1.bf16.msra.mxu0 %v2705
  %3353 = vmatprep.subr.bf16.mxu0 %v2710
  %3354 = vmatpush1.bf16.msra.mxu0 %v2709
  %3355 = vmatprep.mubr.bf16.mxu0 %v1851
  %3356 = vmatmul.mubr.bf16.gmra.mrb[0].mxu0 %v1850
  %v3357 = vpop.f32.mrb[0].mxu0
  %v3358 = vadd.f32 %v1870, %v3357
  %v3359 = vpop.f32.mrb[0].mxu0
  %v3360 = vadd.f32 %v1874, %v3359
  %v3361 = vpop.f32.mrb[0].mxu0
  %v3362 = vpop.f32.mrb[0].mxu0
  %3363 = vdwg.mxu0
  %3364 = vmatprep.subr.bf16.mxu0 %v2714
  %3365 = vmatpush1.bf16.msra.mxu0 %v2713
  %3366 = vmatprep.subr.bf16.mxu0 %v2718
  %3367 = vmatpush1.bf16.msra.mxu0 %v2717
  %3368 = vmatprep.subr.bf16.mxu0 %v2722
  %3369 = vmatpush1.bf16.msra.mxu0 %v2721
  %3370 = vmatprep.subr.bf16.mxu0 %v2726
  %3371 = vmatpush1.bf16.msra.mxu0 %v2725
  %3372 = vmatprep.subr.bf16.mxu0 %v2730
  %3373 = vmatpush1.bf16.msra.mxu0 %v2729
  %3374 = vmatprep.subr.bf16.mxu0 %v2734
  %3375 = vmatpush1.bf16.msra.mxu0 %v2733
  %3376 = vmatprep.subr.bf16.mxu0 %v2738
  %3377 = vmatpush1.bf16.msra.mxu0 %v2737
  %3378 = vmatprep.subr.bf16.mxu0 %v2742
  %3379 = vmatpush1.bf16.msra.mxu0 %v2741
  %3380 = vmatprep.subr.bf16.mxu0 %v2746
  %3381 = vmatpush1.bf16.msra.mxu0 %v2745
  %3382 = vmatprep.subr.bf16.mxu0 %v2750
  %3383 = vmatpush1.bf16.msra.mxu0 %v2749
  %3384 = vmatprep.subr.bf16.mxu0 %v2754
  %3385 = vmatpush1.bf16.msra.mxu0 %v2753
  %3386 = vmatprep.subr.bf16.mxu0 %v2758
  %3387 = vmatpush1.bf16.msra.mxu0 %v2757
  %3388 = vmatprep.subr.bf16.mxu0 %v2762
  %3389 = vmatpush1.bf16.msra.mxu0 %v2761
  %3390 = vmatprep.subr.bf16.mxu0 %v2766
  %3391 = vmatpush1.bf16.msra.mxu0 %v2765
  %3392 = vmatprep.subr.bf16.mxu0 %v2770
  %3393 = vmatpush1.bf16.msra.mxu0 %v2769
  %3394 = vmatprep.subr.bf16.mxu0 %v2774
  %3395 = vmatpush1.bf16.msra.mxu0 %v2773
  %3396 = vmatprep.mubr.bf16.mxu0 %v1853
  %3397 = vmatmul.mubr.bf16.gmra.mrb[0].mxu0 %v1852
  %v3398 = vpop.f32.mrb[0].mxu0
  %v3399 = vadd.f32 %v3358, %v3398
  %v3400 = vpop.f32.mrb[0].mxu0
  %v3401 = vadd.f32 %v3360, %v3400
  %v3402 = vpop.f32.mrb[0].mxu0
  %v3403 = vpop.f32.mrb[0].mxu0
  %3404 = vdwg.mxu0
  %3405 = vmatprep.subr.bf16.mxu0 %v2778
  %3406 = vmatpush1.bf16.msra.mxu0 %v2777
  %3407 = vmatprep.subr.bf16.mxu0 %v2782
  %3408 = vmatpush1.bf16.msra.mxu0 %v2781
  %3409 = vmatprep.subr.bf16.mxu0 %v2786
  %3410 = vmatpush1.bf16.msra.mxu0 %v2785
  %3411 = vmatprep.subr.bf16.mxu0 %v2790
  %3412 = vmatpush1.bf16.msra.mxu0 %v2789
  %3413 = vmatprep.subr.bf16.mxu0 %v2794
  %3414 = vmatpush1.bf16.msra.mxu0 %v2793
  %3415 = vmatprep.subr.bf16.mxu0 %v2798
  %3416 = vmatpush1.bf16.msra.mxu0 %v2797
  %3417 = vmatprep.subr.bf16.mxu0 %v2802
  %3418 = vmatpush1.bf16.msra.mxu0 %v2801
  %3419 = vmatprep.subr.bf16.mxu0 %v2806
  %3420 = vmatpush1.bf16.msra.mxu0 %v2805
  %3421 = vmatprep.subr.bf16.mxu0 %v2810
  %3422 = vmatpush1.bf16.msra.mxu0 %v2809
  %3423 = vmatprep.subr.bf16.mxu0 %v2814
  %3424 = vmatpush1.bf16.msra.mxu0 %v2813
  %3425 = vmatprep.subr.bf16.mxu0 %v2818
  %3426 = vmatpush1.bf16.msra.mxu0 %v2817
  %3427 = vmatprep.subr.bf16.mxu0 %v2822
  %3428 = vmatpush1.bf16.msra.mxu0 %v2821
  %3429 = vmatprep.subr.bf16.mxu0 %v2826
  %3430 = vmatpush1.bf16.msra.mxu0 %v2825
  %3431 = vmatprep.subr.bf16.mxu0 %v2830
  %3432 = vmatpush1.bf16.msra.mxu0 %v2829
  %3433 = vmatprep.subr.bf16.mxu0 %v2834
  %3434 = vmatpush1.bf16.msra.mxu0 %v2833
  %3435 = vmatprep.subr.bf16.mxu0 %v2838
  %3436 = vmatpush1.bf16.msra.mxu0 %v2837
  %3437 = vmatprep.mubr.bf16.mxu0 %v1855
  %3438 = vmatmul.mubr.bf16.gmra.mrb[0].mxu0 %v1854
  %v3439 = vpop.f32.mrb[0].mxu0
  %v3440 = vadd.f32 %v3399, %v3439
  %v3441 = vpop.f32.mrb[0].mxu0
  %v3442 = vadd.f32 %v3401, %v3441
  %v3443 = vpop.f32.mrb[0].mxu0
  %v3444 = vpop.f32.mrb[0].mxu0
  %3445 = vdwg.mxu0
  %3446 = vmatprep.subr.bf16.mxu0 %v2842
  %3447 = vmatpush1.bf16.msra.mxu0 %v2841
  %3448 = vmatprep.subr.bf16.mxu0 %v2846
  %3449 = vmatpush1.bf16.msra.mxu0 %v2845
  %3450 = vmatprep.subr.bf16.mxu0 %v2850
  %3451 = vmatpush1.bf16.msra.mxu0 %v2849
  %3452 = vmatprep.subr.bf16.mxu0 %v2854
  %3453 = vmatpush1.bf16.msra.mxu0 %v2853
  %3454 = vmatprep.subr.bf16.mxu0 %v2858
  %3455 = vmatpush1.bf16.msra.mxu0 %v2857
  %3456 = vmatprep.subr.bf16.mxu0 %v2862
  %3457 = vmatpush1.bf16.msra.mxu0 %v2861
  %3458 = vmatprep.subr.bf16.mxu0 %v2866
  %3459 = vmatpush1.bf16.msra.mxu0 %v2865
  %3460 = vmatprep.subr.bf16.mxu0 %v2870
  %3461 = vmatpush1.bf16.msra.mxu0 %v2869
  %3462 = vmatprep.subr.bf16.mxu0 %v2874
  %3463 = vmatpush1.bf16.msra.mxu0 %v2873
  %3464 = vmatprep.subr.bf16.mxu0 %v2878
  %3465 = vmatpush1.bf16.msra.mxu0 %v2877
  %3466 = vmatprep.subr.bf16.mxu0 %v2882
  %3467 = vmatpush1.bf16.msra.mxu0 %v2881
  %3468 = vmatprep.subr.bf16.mxu0 %v2886
  %3469 = vmatpush1.bf16.msra.mxu0 %v2885
  %3470 = vmatprep.subr.bf16.mxu0 %v2890
  %3471 = vmatpush1.bf16.msra.mxu0 %v2889
  %3472 = vmatprep.subr.bf16.mxu0 %v2894
  %3473 = vmatpush1.bf16.msra.mxu0 %v2893
  %3474 = vmatprep.subr.bf16.mxu0 %v2898
  %3475 = vmatpush1.bf16.msra.mxu0 %v2897
  %3476 = vmatprep.subr.bf16.mxu0 %v2902
  %3477 = vmatpush1.bf16.msra.mxu0 %v2901
  %3478 = vmatprep.mubr.bf16.mxu0 %v1857
  %3479 = vmatmul.mubr.bf16.gmra.mrb[0].mxu0 %v1856
  %v3480 = vpop.f32.mrb[0].mxu0
  %v3481 = vadd.f32 %v3440, %v3480
  %v3482 = vpop.f32.mrb[0].mxu0
  %v3483 = vadd.f32 %v3442, %v3482
  %v3484 = vpop.f32.mrb[0].mxu0
  %v3485 = vpop.f32.mrb[0].mxu0
  %3486 = vdwg.mxu0
  %v3487 = vtanh.pop %v3317
  %v3488 = vtanh.pop %v3319
  %v3489 = vtanh.pop %v3481
  %v3490 = vtanh.pop %v3483
  %v3491 = vld [vmem:[%s4] sm:$0xff]
  %v3492 = vld [vmem:[%s4 + $0x8] sm:$0xff]
  %v3493 = vld [vmem:[%s4 + $0x10] sm:$0xff]
  %v3494 = vld [vmem:[%s4 + $0x18] sm:$0xff]
  %v3495 = vld [vmem:[%s4 + $0x20] sm:$0xff]
  %v3496 = vld [vmem:[%s4 + $0x28] sm:$0xff]
  %v3497 = vld [vmem:[%s4 + $0x30] sm:$0xff]
  %v3498 = vld [vmem:[%s4 + $0x38] sm:$0xff]
  %v3499 = vld [vmem:[%s4 + $0x40] sm:$0xff]
  %v3500 = vld [vmem:[%s4 + $0x48] sm:$0xff]
  %v3501 = vld [vmem:[%s4 + $0x50] sm:$0xff]
  %v3502 = vld [vmem:[%s4 + $0x58] sm:$0xff]
  %v3503 = vld [vmem:[%s4 + $0x60] sm:$0xff]
  %v3504 = vld [vmem:[%s4 + $0x68] sm:$0xff]
  %v3505 = vld [vmem:[%s4 + $0x70] sm:$0xff]
  %v3506 = vld [vmem:[%s4 + $0x78] sm:$0xff]
  %v3507 = vld [vmem:[%s4 + $0x80] sm:$0xff]
  %v3508 = vld [vmem:[%s4 + $0x88] sm:$0xff]
  %v3509 = vld [vmem:[%s4 + $0x90] sm:$0xff]
  %v3510 = vld [vmem:[%s4 + $0x98] sm:$0xff]
  %v3511 = vld [vmem:[%s4 + $0xa0] sm:$0xff]
  %v3512 = vld [vmem:[%s4 + $0xa8] sm:$0xff]
  %v3513 = vld [vmem:[%s4 + $0xb0] sm:$0xff]
  %v3514 = vld [vmem:[%s4 + $0xb8] sm:$0xff]
  %v3515 = vld [vmem:[%s4 + $0xc0] sm:$0xff]
  %v3516 = vld [vmem:[%s4 + $0xc8] sm:$0xff]
  %v3517 = vld [vmem:[%s4 + $0xd0] sm:$0xff]
  %v3518 = vld [vmem:[%s4 + $0xd8] sm:$0xff]
  %v3519 = vld [vmem:[%s4 + $0xe0] sm:$0xff]
  %v3520 = vld [vmem:[%s4 + $0xe8] sm:$0xff]
  %v3521 = vld [vmem:[%s4 + $0xf0] sm:$0xff]
  %v3522 = vld [vmem:[%s4 + $0xf8] sm:$0xff]
  %v3523 = vld [vmem:[%s4 + $0x100] sm:$0xff]
  %v3524 = vld [vmem:[%s4 + $0x108] sm:$0xff]
  %v3525 = vld [vmem:[%s4 + $0x110] sm:$0xff]
  %v3526 = vld [vmem:[%s4 + $0x118] sm:$0xff]
  %v3527 = vld [vmem:[%s4 + $0x120] sm:$0xff]
  %v3528 = vld [vmem:[%s4 + $0x128] sm:$0xff]
  %v3529 = vld [vmem:[%s4 + $0x130] sm:$0xff]
  %v3530 = vld [vmem:[%s4 + $0x138] sm:$0xff]
  %v3531 = vld [vmem:[%s4 + $0x140] sm:$0xff]
  %v3532 = vld [vmem:[%s4 + $0x148] sm:$0xff]
  %v3533 = vld [vmem:[%s4 + $0x150] sm:$0xff]
  %v3534 = vld [vmem:[%s4 + $0x158] sm:$0xff]
  %v3535 = vld [vmem:[%s4 + $0x160] sm:$0xff]
  %v3536 = vld [vmem:[%s4 + $0x168] sm:$0xff]
  %v3537 = vld [vmem:[%s4 + $0x170] sm:$0xff]
  %v3538 = vld [vmem:[%s4 + $0x178] sm:$0xff]
  %v3539 = vld [vmem:[%s4 + $0x180] sm:$0xff]
  %v3540 = vld [vmem:[%s4 + $0x188] sm:$0xff]
  %v3541 = vld [vmem:[%s4 + $0x190] sm:$0xff]
  %v3542 = vld [vmem:[%s4 + $0x198] sm:$0xff]
  %v3543 = vld [vmem:[%s4 + $0x1a0] sm:$0xff]
  %v3544 = vld [vmem:[%s4 + $0x1a8] sm:$0xff]
  %v3545 = vld [vmem:[%s4 + $0x1b0] sm:$0xff]
  %v3546 = vld [vmem:[%s4 + $0x1b8] sm:$0xff]
  %v3547 = vld [vmem:[%s4 + $0x1c0] sm:$0xff]
  %v3548 = vld [vmem:[%s4 + $0x1c8] sm:$0xff]
  %v3549 = vld [vmem:[%s4 + $0x1d0] sm:$0xff]
  %v3550 = vld [vmem:[%s4 + $0x1d8] sm:$0xff]
  %v3551 = vld [vmem:[%s4 + $0x1e0] sm:$0xff]
  %v3552 = vld [vmem:[%s4 + $0x1e8] sm:$0xff]
  %v3553 = vld [vmem:[%s4 + $0x1f0] sm:$0xff]
  %v3554 = vld [vmem:[%s4 + $0x1f8] sm:$0xff]
  %v3555 = vpack.c.bf16 %v3487, %v3487
  %v3556 = vpack.c.bf16 %v3488, %v3488
  %v3557 = vpack.c.bf16 %v3489, %v3489
  %v3558 = vpack.c.bf16 %v3490, %v3490
  %v3560 = vlaneseq
  %v3561 = vshrl.u32 %v3560, 7
  %v3562 = vsub.s32 0, %v3561
  %v3563 = vrot.slane %v526, %v3562
  %v3564 = vlaneseq
  %v3565 = vshrl.u32 %v3564, 7
  %v3566 = vsub.s32 1, %v3565
  %v3567 = vrot.slane %v526, %v3566
  %v3634 = vunpack.c.l.b16 %v3491
  %v3635 = vunpack.c.h.b16 %v3491
  %v3636 = vunpack.c.l.b16 %v3492
  %v3637 = vunpack.c.h.b16 %v3492
  %v3638 = vunpack.c.l.b16 %v3493
  %v3639 = vunpack.c.h.b16 %v3493
  %v3640 = vunpack.c.l.b16 %v3494
  %v3641 = vunpack.c.h.b16 %v3494
  %v3642 = vunpack.c.l.b16 %v3495
  %v3643 = vunpack.c.h.b16 %v3495
  %v3644 = vunpack.c.l.b16 %v3496
  %v3645 = vunpack.c.h.b16 %v3496
  %v3646 = vunpack.c.l.b16 %v3497
  %v3647 = vunpack.c.h.b16 %v3497
  %v3648 = vunpack.c.l.b16 %v3498
  %v3649 = vunpack.c.h.b16 %v3498
  %v3650 = vunpack.c.l.b16 %v3499
  %v3651 = vunpack.c.h.b16 %v3499
  %v3652 = vunpack.c.l.b16 %v3500
  %v3653 = vunpack.c.h.b16 %v3500
  %v3654 = vunpack.c.l.b16 %v3501
  %v3655 = vunpack.c.h.b16 %v3501
  %v3656 = vunpack.c.l.b16 %v3502
  %v3657 = vunpack.c.h.b16 %v3502
  %v3658 = vunpack.c.l.b16 %v3503
  %v3659 = vunpack.c.h.b16 %v3503
  %v3660 = vunpack.c.l.b16 %v3504
  %v3661 = vunpack.c.h.b16 %v3504
  %v3662 = vunpack.c.l.b16 %v3505
  %v3663 = vunpack.c.h.b16 %v3505
  %v3664 = vunpack.c.l.b16 %v3506
  %v3665 = vunpack.c.h.b16 %v3506
  %v3666 = vunpack.c.l.b16 %v3507
  %v3667 = vunpack.c.h.b16 %v3507
  %v3668 = vunpack.c.l.b16 %v3508
  %v3669 = vunpack.c.h.b16 %v3508
  %v3670 = vunpack.c.l.b16 %v3509
  %v3671 = vunpack.c.h.b16 %v3509
  %v3672 = vunpack.c.l.b16 %v3510
  %v3673 = vunpack.c.h.b16 %v3510
  %v3674 = vunpack.c.l.b16 %v3511
  %v3675 = vunpack.c.h.b16 %v3511
  %v3676 = vunpack.c.l.b16 %v3512
  %v3677 = vunpack.c.h.b16 %v3512
  %v3678 = vunpack.c.l.b16 %v3513
  %v3679 = vunpack.c.h.b16 %v3513
  %v3680 = vunpack.c.l.b16 %v3514
  %v3681 = vunpack.c.h.b16 %v3514
  %v3682 = vunpack.c.l.b16 %v3515
  %v3683 = vunpack.c.h.b16 %v3515
  %v3684 = vunpack.c.l.b16 %v3516
  %v3685 = vunpack.c.h.b16 %v3516
  %v3686 = vunpack.c.l.b16 %v3517
  %v3687 = vunpack.c.h.b16 %v3517
  %v3688 = vunpack.c.l.b16 %v3518
  %v3689 = vunpack.c.h.b16 %v3518
  %v3690 = vunpack.c.l.b16 %v3519
  %v3691 = vunpack.c.h.b16 %v3519
  %v3692 = vunpack.c.l.b16 %v3520
  %v3693 = vunpack.c.h.b16 %v3520
  %v3694 = vunpack.c.l.b16 %v3521
  %v3695 = vunpack.c.h.b16 %v3521
  %v3696 = vunpack.c.l.b16 %v3522
  %v3697 = vunpack.c.h.b16 %v3522
  %v3698 = vunpack.c.l.b16 %v3523
  %v3699 = vunpack.c.h.b16 %v3523
  %v3700 = vunpack.c.l.b16 %v3524
  %v3701 = vunpack.c.h.b16 %v3524
  %v3702 = vunpack.c.l.b16 %v3525
  %v3703 = vunpack.c.h.b16 %v3525
  %v3704 = vunpack.c.l.b16 %v3526
  %v3705 = vunpack.c.h.b16 %v3526
  %v3706 = vunpack.c.l.b16 %v3527
  %v3707 = vunpack.c.h.b16 %v3527
  %v3708 = vunpack.c.l.b16 %v3528
  %v3709 = vunpack.c.h.b16 %v3528
  %v3710 = vunpack.c.l.b16 %v3529
  %v3711 = vunpack.c.h.b16 %v3529
  %v3712 = vunpack.c.l.b16 %v3530
  %v3713 = vunpack.c.h.b16 %v3530
  %v3714 = vunpack.c.l.b16 %v3531
  %v3715 = vunpack.c.h.b16 %v3531
  %v3716 = vunpack.c.l.b16 %v3532
  %v3717 = vunpack.c.h.b16 %v3532
  %v3718 = vunpack.c.l.b16 %v3533
  %v3719 = vunpack.c.h.b16 %v3533
  %v3720 = vunpack.c.l.b16 %v3534
  %v3721 = vunpack.c.h.b16 %v3534
  %v3722 = vunpack.c.l.b16 %v3535
  %v3723 = vunpack.c.h.b16 %v3535
  %v3724 = vunpack.c.l.b16 %v3536
  %v3725 = vunpack.c.h.b16 %v3536
  %v3726 = vunpack.c.l.b16 %v3537
  %v3727 = vunpack.c.h.b16 %v3537
  %v3728 = vunpack.c.l.b16 %v3538
  %v3729 = vunpack.c.h.b16 %v3538
  %v3730 = vunpack.c.l.b16 %v3539
  %v3731 = vunpack.c.h.b16 %v3539
  %v3732 = vunpack.c.l.b16 %v3540
  %v3733 = vunpack.c.h.b16 %v3540
  %v3734 = vunpack.c.l.b16 %v3541
  %v3735 = vunpack.c.h.b16 %v3541
  %v3736 = vunpack.c.l.b16 %v3542
  %v3737 = vunpack.c.h.b16 %v3542
  %v3738 = vunpack.c.l.b16 %v3543
  %v3739 = vunpack.c.h.b16 %v3543
  %v3740 = vunpack.c.l.b16 %v3544
  %v3741 = vunpack.c.h.b16 %v3544
  %v3742 = vunpack.c.l.b16 %v3545
  %v3743 = vunpack.c.h.b16 %v3545
  %v3744 = vunpack.c.l.b16 %v3546
  %v3745 = vunpack.c.h.b16 %v3546
  %v3746 = vunpack.c.l.b16 %v3547
  %v3747 = vunpack.c.h.b16 %v3547
  %v3748 = vunpack.c.l.b16 %v3548
  %v3749 = vunpack.c.h.b16 %v3548
  %v3750 = vunpack.c.l.b16 %v3549
  %v3751 = vunpack.c.h.b16 %v3549
  %v3752 = vunpack.c.l.b16 %v3550
  %v3753 = vunpack.c.h.b16 %v3550
  %v3754 = vunpack.c.l.b16 %v3551
  %v3755 = vunpack.c.h.b16 %v3551
  %v3756 = vunpack.c.l.b16 %v3552
  %v3757 = vunpack.c.h.b16 %v3552
  %v3758 = vunpack.c.l.b16 %v3553
  %v3759 = vunpack.c.h.b16 %v3553
  %v3760 = vunpack.c.l.b16 %v3554
  %v3761 = vunpack.c.h.b16 %v3554
  %v3762 = vpack.c.b16 %v3636, %v3634
  %v3763 = vpack.c.b16 %v3637, %v3635
  %v3764 = vpack.c.b16 %v3640, %v3638
  %v3765 = vpack.c.b16 %v3641, %v3639
  %v3766 = vpack.c.b16 %v3644, %v3642
  %v3767 = vpack.c.b16 %v3645, %v3643
  %v3768 = vpack.c.b16 %v3648, %v3646
  %v3769 = vpack.c.b16 %v3649, %v3647
  %v3770 = vpack.c.b16 %v3652, %v3650
  %v3771 = vpack.c.b16 %v3653, %v3651
  %v3772 = vpack.c.b16 %v3656, %v3654
  %v3773 = vpack.c.b16 %v3657, %v3655
  %v3774 = vpack.c.b16 %v3660, %v3658
  %v3775 = vpack.c.b16 %v3661, %v3659
  %v3776 = vpack.c.b16 %v3664, %v3662
  %v3777 = vpack.c.b16 %v3665, %v3663
  %v3778 = vpack.c.b16 %v3668, %v3666
  %v3779 = vpack.c.b16 %v3669, %v3667
  %v3780 = vpack.c.b16 %v3672, %v3670
  %v3781 = vpack.c.b16 %v3673, %v3671
  %v3782 = vpack.c.b16 %v3676, %v3674
  %v3783 = vpack.c.b16 %v3677, %v3675
  %v3784 = vpack.c.b16 %v3680, %v3678
  %v3785 = vpack.c.b16 %v3681, %v3679
  %v3786 = vpack.c.b16 %v3684, %v3682
  %v3787 = vpack.c.b16 %v3685, %v3683
  %v3788 = vpack.c.b16 %v3688, %v3686
  %v3789 = vpack.c.b16 %v3689, %v3687
  %v3790 = vpack.c.b16 %v3692, %v3690
  %v3791 = vpack.c.b16 %v3693, %v3691
  %v3792 = vpack.c.b16 %v3696, %v3694
  %v3793 = vpack.c.b16 %v3697, %v3695
  %v3794 = vpack.c.b16 %v3700, %v3698
  %v3795 = vpack.c.b16 %v3701, %v3699
  %v3796 = vpack.c.b16 %v3704, %v3702
  %v3797 = vpack.c.b16 %v3705, %v3703
  %v3798 = vpack.c.b16 %v3708, %v3706
  %v3799 = vpack.c.b16 %v3709, %v3707
  %v3800 = vpack.c.b16 %v3712, %v3710
  %v3801 = vpack.c.b16 %v3713, %v3711
  %v3802 = vpack.c.b16 %v3716, %v3714
  %v3803 = vpack.c.b16 %v3717, %v3715
  %v3804 = vpack.c.b16 %v3720, %v3718
  %v3805 = vpack.c.b16 %v3721, %v3719
  %v3806 = vpack.c.b16 %v3724, %v3722
  %v3807 = vpack.c.b16 %v3725, %v3723
  %v3808 = vpack.c.b16 %v3728, %v3726
  %v3809 = vpack.c.b16 %v3729, %v3727
  %v3810 = vpack.c.b16 %v3732, %v3730
  %v3811 = vpack.c.b16 %v3733, %v3731
  %v3812 = vpack.c.b16 %v3736, %v3734
  %v3813 = vpack.c.b16 %v3737, %v3735
  %v3814 = vpack.c.b16 %v3740, %v3738
  %v3815 = vpack.c.b16 %v3741, %v3739
  %v3816 = vpack.c.b16 %v3744, %v3742
  %v3817 = vpack.c.b16 %v3745, %v3743
  %v3818 = vpack.c.b16 %v3748, %v3746
  %v3819 = vpack.c.b16 %v3749, %v3747
  %v3820 = vpack.c.b16 %v3752, %v3750
  %v3821 = vpack.c.b16 %v3753, %v3751
  %v3822 = vpack.c.b16 %v3756, %v3754
  %v3823 = vpack.c.b16 %v3757, %v3755
  %v3824 = vpack.c.b16 %v3760, %v3758
  %v3825 = vpack.c.b16 %v3761, %v3759
  %3890 = vmatprep.subr.bf16.mxu0 %v3763
  %3891 = vmatpush1.bf16.msra.mxu0 %v3762
  %3892 = vmatprep.subr.bf16.mxu0 %v3765
  %3893 = vmatpush1.bf16.msra.mxu0 %v3764
  %3894 = vmatprep.subr.bf16.mxu0 %v3767
  %3895 = vmatpush1.bf16.msra.mxu0 %v3766
  %3896 = vmatprep.subr.bf16.mxu0 %v3769
  %3897 = vmatpush1.bf16.msra.mxu0 %v3768
  %3898 = vmatprep.subr.bf16.mxu0 %v3771
  %3899 = vmatpush1.bf16.msra.mxu0 %v3770
  %3900 = vmatprep.subr.bf16.mxu0 %v3773
  %3901 = vmatpush1.bf16.msra.mxu0 %v3772
  %3902 = vmatprep.subr.bf16.mxu0 %v3775
  %3903 = vmatpush1.bf16.msra.mxu0 %v3774
  %3904 = vmatprep.subr.bf16.mxu0 %v3777
  %3905 = vmatpush1.bf16.msra.mxu0 %v3776
  %3906 = vmatprep.subr.bf16.mxu0 %v3779
  %3907 = vmatpush1.bf16.msra.mxu0 %v3778
  %3908 = vmatprep.subr.bf16.mxu0 %v3781
  %3909 = vmatpush1.bf16.msra.mxu0 %v3780
  %3910 = vmatprep.subr.bf16.mxu0 %v3783
  %3911 = vmatpush1.bf16.msra.mxu0 %v3782
  %3912 = vmatprep.subr.bf16.mxu0 %v3785
  %3913 = vmatpush1.bf16.msra.mxu0 %v3784
  %3914 = vmatprep.subr.bf16.mxu0 %v3787
  %3915 = vmatpush1.bf16.msra.mxu0 %v3786
  %3916 = vmatprep.subr.bf16.mxu0 %v3789
  %3917 = vmatpush1.bf16.msra.mxu0 %v3788
  %3918 = vmatprep.subr.bf16.mxu0 %v3791
  %3919 = vmatpush1.bf16.msra.mxu0 %v3790
  %3920 = vmatprep.subr.bf16.mxu0 %v3793
  %3921 = vmatpush1.bf16.msra.mxu0 %v3792
  %3922 = vmatprep.mubr.bf16.mxu0 %v3556
  %3923 = vmatmul.mubr.bf16.gmra.mrb[0].mxu0 %v3555
  %v3924 = vpop.f32.mrb[0].mxu0
  %v3925 = vadd.f32 %v3563, %v3924
  %v3926 = vpop.f32.mrb[0].mxu0
  %v3927 = vadd.f32 %v3567, %v3926
  %v3928 = vpop.f32.mrb[0].mxu0
  %v3929 = vpop.f32.mrb[0].mxu0
  %3930 = vdwg.mxu0
  %3931 = vmatprep.subr.bf16.mxu0 %v3795
  %3932 = vmatpush1.bf16.msra.mxu0 %v3794
  %3933 = vmatprep.subr.bf16.mxu0 %v3797
  %3934 = vmatpush1.bf16.msra.mxu0 %v3796
  %3935 = vmatprep.subr.bf16.mxu0 %v3799
  %3936 = vmatpush1.bf16.msra.mxu0 %v3798
  %3937 = vmatprep.subr.bf16.mxu0 %v3801
  %3938 = vmatpush1.bf16.msra.mxu0 %v3800
  %3939 = vmatprep.subr.bf16.mxu0 %v3803
  %3940 = vmatpush1.bf16.msra.mxu0 %v3802
  %3941 = vmatprep.subr.bf16.mxu0 %v3805
  %3942 = vmatpush1.bf16.msra.mxu0 %v3804
  %3943 = vmatprep.subr.bf16.mxu0 %v3807
  %3944 = vmatpush1.bf16.msra.mxu0 %v3806
  %3945 = vmatprep.subr.bf16.mxu0 %v3809
  %3946 = vmatpush1.bf16.msra.mxu0 %v3808
  %3947 = vmatprep.subr.bf16.mxu0 %v3811
  %3948 = vmatpush1.bf16.msra.mxu0 %v3810
  %3949 = vmatprep.subr.bf16.mxu0 %v3813
  %3950 = vmatpush1.bf16.msra.mxu0 %v3812
  %3951 = vmatprep.subr.bf16.mxu0 %v3815
  %3952 = vmatpush1.bf16.msra.mxu0 %v3814
  %3953 = vmatprep.subr.bf16.mxu0 %v3817
  %3954 = vmatpush1.bf16.msra.mxu0 %v3816
  %3955 = vmatprep.subr.bf16.mxu0 %v3819
  %3956 = vmatpush1.bf16.msra.mxu0 %v3818
  %3957 = vmatprep.subr.bf16.mxu0 %v3821
  %3958 = vmatpush1.bf16.msra.mxu0 %v3820
  %3959 = vmatprep.subr.bf16.mxu0 %v3823
  %3960 = vmatpush1.bf16.msra.mxu0 %v3822
  %3961 = vmatprep.subr.bf16.mxu0 %v3825
  %3962 = vmatpush1.bf16.msra.mxu0 %v3824
  %3963 = vmatprep.mubr.bf16.mxu0 %v3558
  %3964 = vmatmul.mubr.bf16.gmra.mrb[0].mxu0 %v3557
  %v3965 = vpop.f32.mrb[0].mxu0
  %v3966 = vadd.f32 %v3925, %v3965
  %v3967 = vpop.f32.mrb[0].mxu0
  %v3968 = vadd.f32 %v3927, %v3967
  %v3969 = vpop.f32.mrb[0].mxu0
  %v3970 = vpop.f32.mrb[0].mxu0
  %3971 = vdwg.mxu0
  %v3972 = vtanh.pop %v3966
  %v3973 = vtanh.pop %v3968
  %v3974 = vpack.c.bf16 %v3972, %v3972
  %v3975 = vpack.c.bf16 %v3973, %v3973
  %v4008 = vunpack.c.l.b16 %v531
  %v4009 = vunpack.c.l.b16 %v532
  %v4010 = vunpack.c.l.b16 %v533
  %v4011 = vunpack.c.l.b16 %v534
  %v4012 = vunpack.c.l.b16 %v535
  %v4013 = vunpack.c.l.b16 %v536
  %v4014 = vunpack.c.l.b16 %v537
  %v4015 = vunpack.c.l.b16 %v538
  %v4016 = vunpack.c.l.b16 %v539
  %v4017 = vunpack.c.l.b16 %v540
  %v4018 = vunpack.c.l.b16 %v541
  %v4019 = vunpack.c.l.b16 %v542
  %v4020 = vunpack.c.l.b16 %v543
  %v4021 = vunpack.c.l.b16 %v544
  %v4022 = vunpack.c.l.b16 %v545
  %v4023 = vunpack.c.l.b16 %v546
  %v4024 = vunpack.c.l.b16 %v547
  %v4025 = vunpack.c.l.b16 %v548
  %v4026 = vunpack.c.l.b16 %v549
  %v4027 = vunpack.c.l.b16 %v550
  %v4028 = vunpack.c.l.b16 %v551
  %v4029 = vunpack.c.l.b16 %v552
  %v4030 = vunpack.c.l.b16 %v553
  %v4031 = vunpack.c.l.b16 %v554
  %v4032 = vunpack.c.l.b16 %v555
  %v4033 = vunpack.c.l.b16 %v556
  %v4034 = vunpack.c.l.b16 %v557
  %v4035 = vunpack.c.l.b16 %v558
  %v4036 = vunpack.c.l.b16 %v559
  %v4037 = vunpack.c.l.b16 %v560
  %v4038 = vunpack.c.l.b16 %v561
  %v4039 = vunpack.c.l.b16 %v562
  %v4040 = vpack.c.b16 %v4009, %v4008
  %v4041 = vpack.c.b16 %v4011, %v4010
  %v4042 = vpack.c.b16 %v4013, %v4012
  %v4043 = vpack.c.b16 %v4015, %v4014
  %v4044 = vpack.c.b16 %v4017, %v4016
  %v4045 = vpack.c.b16 %v4019, %v4018
  %v4046 = vpack.c.b16 %v4021, %v4020
  %v4047 = vpack.c.b16 %v4023, %v4022
  %v4048 = vpack.c.b16 %v4025, %v4024
  %v4049 = vpack.c.b16 %v4027, %v4026
  %v4050 = vpack.c.b16 %v4029, %v4028
  %v4051 = vpack.c.b16 %v4031, %v4030
  %v4052 = vpack.c.b16 %v4033, %v4032
  %v4053 = vpack.c.b16 %v4035, %v4034
  %v4054 = vpack.c.b16 %v4037, %v4036
  %v4055 = vpack.c.b16 %v4039, %v4038
  %4072 = vmatprep.subr.bf16.mxu0 0
  %4073 = vmatpush1.bf16.msra.mxu0 %v4040
  %4074 = vmatprep.subr.bf16.mxu0 0
  %4075 = vmatpush1.bf16.msra.mxu0 %v4041
  %4076 = vmatprep.subr.bf16.mxu0 0
  %4077 = vmatpush1.bf16.msra.mxu0 %v4042
  %4078 = vmatprep.subr.bf16.mxu0 0
  %4079 = vmatpush1.bf16.msra.mxu0 %v4043
  %4080 = vmatprep.subr.bf16.mxu0 0
  %4081 = vmatpush1.bf16.msra.mxu0 %v4044
  %4082 = vmatprep.subr.bf16.mxu0 0
  %4083 = vmatpush1.bf16.msra.mxu0 %v4045
  %4084 = vmatprep.subr.bf16.mxu0 0
  %4085 = vmatpush1.bf16.msra.mxu0 %v4046
  %4086 = vmatprep.subr.bf16.mxu0 0
  %4087 = vmatpush1.bf16.msra.mxu0 %v4047
  %4088 = vmatprep.subr.bf16.mxu0 0
  %4089 = vmatpush1.bf16.msra.mxu0 %v4048
  %4090 = vmatprep.subr.bf16.mxu0 0
  %4091 = vmatpush1.bf16.msra.mxu0 %v4049
  %4092 = vmatprep.subr.bf16.mxu0 0
  %4093 = vmatpush1.bf16.msra.mxu0 %v4050
  %4094 = vmatprep.subr.bf16.mxu0 0
  %4095 = vmatpush1.bf16.msra.mxu0 %v4051
  %4096 = vmatprep.subr.bf16.mxu0 0
  %4097 = vmatpush1.bf16.msra.mxu0 %v4052
  %4098 = vmatprep.subr.bf16.mxu0 0
  %4099 = vmatpush1.bf16.msra.mxu0 %v4053
  %4100 = vmatprep.subr.bf16.mxu0 0
  %4101 = vmatpush1.bf16.msra.mxu0 %v4054
  %4102 = vmatprep.subr.bf16.mxu0 0
  %4103 = vmatpush1.bf16.msra.mxu0 %v4055
  %4104 = vmatprep.mubr.bf16.mxu0 %v3975
  %4105 = vmatmul.mubr.bf16.gmra.mrb[0].mxu0 %v3974
  %v4106 = vpop.f32.mrb[0].mxu0
  %v4107 = vadd.f32 %v527, %v4106
  %v4108 = vpop.f32.mrb[0].mxu0
  %v4109 = vpop.f32.mrb[0].mxu0
  %v4110 = vpop.f32.mrb[0].mxu0
  %4111 = vdwg.mxu0
  %v4112 = vtanh.pop %v4107
  %v4113 = vpack.c.bf16 %v4112, %v4112
  %v4130 = vunpack.c.l.b16 %v563
  %v4131 = vunpack.c.l.b16 %v564
  %v4132 = vunpack.c.l.b16 %v565
  %v4133 = vunpack.c.l.b16 %v566
  %v4134 = vunpack.c.l.b16 %v567
  %v4135 = vunpack.c.l.b16 %v568
  %v4136 = vunpack.c.l.b16 %v569
  %v4137 = vunpack.c.l.b16 %v570
  %v4138 = vunpack.c.l.b16 %v571
  %v4139 = vunpack.c.l.b16 %v572
  %v4140 = vunpack.c.l.b16 %v573
  %v4141 = vunpack.c.l.b16 %v574
  %v4142 = vunpack.c.l.b16 %v575
  %v4143 = vunpack.c.l.b16 %v576
  %v4144 = vunpack.c.l.b16 %v577
  %v4145 = vunpack.c.l.b16 %v578
  %v4146 = vpack.c.b16 %v4131, %v4130
  %v4147 = vpack.c.b16 %v4133, %v4132
  %v4148 = vpack.c.b16 %v4135, %v4134
  %v4149 = vpack.c.b16 %v4137, %v4136
  %v4150 = vpack.c.b16 %v4139, %v4138
  %v4151 = vpack.c.b16 %v4141, %v4140
  %v4152 = vpack.c.b16 %v4143, %v4142
  %v4153 = vpack.c.b16 %v4145, %v4144
  %4162 = vmatprep.subr.bf16.mxu0 0
  %4163 = vmatpush1.bf16.msra.mxu0 %v4146
  %4164 = vmatprep.subr.bf16.mxu0 0
  %4165 = vmatpush1.bf16.msra.mxu0 %v4147
  %4166 = vmatprep.subr.bf16.mxu0 0
  %4167 = vmatpush1.bf16.msra.mxu0 %v4148
  %4168 = vmatprep.subr.bf16.mxu0 0
  %4169 = vmatpush1.bf16.msra.mxu0 %v4149
  %4170 = vmatprep.subr.bf16.mxu0 0
  %4171 = vmatpush1.bf16.msra.mxu0 %v4150
  %4172 = vmatprep.subr.bf16.mxu0 0
  %4173 = vmatpush1.bf16.msra.mxu0 %v4151
  %4174 = vmatprep.subr.bf16.mxu0 0
  %4175 = vmatpush1.bf16.msra.mxu0 %v4152
  %4176 = vmatprep.subr.bf16.mxu0 0
  %4177 = vmatpush1.bf16.msra.mxu0 %v4153
  %4178 = vmatprep.subr.bf16.mxu0 0
  %4179 = vmatpush1.bf16.msra.mxu0 0
  %4180 = vmatprep.subr.bf16.mxu0 0
  %4181 = vmatpush1.bf16.msra.mxu0 0
  %4182 = vmatprep.subr.bf16.mxu0 0
  %4183 = vmatpush1.bf16.msra.mxu0 0
  %4184 = vmatprep.subr.bf16.mxu0 0
  %4185 = vmatpush1.bf16.msra.mxu0 0
  %4186 = vmatprep.subr.bf16.mxu0 0
  %4187 = vmatpush1.bf16.msra.mxu0 0
  %4188 = vmatprep.subr.bf16.mxu0 0
  %4189 = vmatpush1.bf16.msra.mxu0 0
  %4190 = vmatprep.subr.bf16.mxu0 0
  %4191 = vmatpush1.bf16.msra.mxu0 0
  %4192 = vmatprep.subr.bf16.mxu0 0
  %4193 = vmatpush1.bf16.msra.mxu0 0
  %4194 = vmatprep.mubr.bf16.mxu0 0
  %4195 = vmatmul.mubr.bf16.gmra.mrb[0].mxu0 %v4113
  %v4196 = vpop.f32.mrb[0].mxu0
  %v4197 = vadd.f32 %v528, %v4196
  %v4198 = vpop.f32.mrb[0].mxu0
  %v4199 = vpop.f32.mrb[0].mxu0
  %v4200 = vpop.f32.mrb[0].mxu0
  %4201 = vdwg.mxu0
  %v4202 = vtanh.pop %v4197
  %v4203 = vpack.c.bf16 %v4202, %v4202
  %v4220 = vunpack.c.l.b16 %v579
  %v4221 = vunpack.c.l.b16 %v580
  %v4222 = vunpack.c.l.b16 %v581
  %v4223 = vunpack.c.l.b16 %v582
  %v4224 = vunpack.c.l.b16 %v583
  %v4225 = vunpack.c.l.b16 %v584
  %v4226 = vunpack.c.l.b16 %v585
  %v4227 = vunpack.c.l.b16 %v586
  %v4228 = vunpack.c.l.b16 %v587
  %v4229 = vunpack.c.l.b16 %v588
  %v4230 = vunpack.c.l.b16 %v589
  %v4231 = vunpack.c.l.b16 %v590
  %v4232 = vunpack.c.l.b16 %v591
  %v4233 = vunpack.c.l.b16 %v592
  %v4234 = vunpack.c.l.b16 %v593
  %v4235 = vunpack.c.l.b16 %v594
  %v4236 = vpack.c.b16 %v4221, %v4220
  %v4237 = vpack.c.b16 %v4223, %v4222
  %v4238 = vpack.c.b16 %v4225, %v4224
  %v4239 = vpack.c.b16 %v4227, %v4226
  %v4240 = vpack.c.b16 %v4229, %v4228
  %v4241 = vpack.c.b16 %v4231, %v4230
  %v4242 = vpack.c.b16 %v4233, %v4232
  %v4243 = vpack.c.b16 %v4235, %v4234
  %4252 = vmatprep.subr.bf16.mxu0 0
  %4253 = vmatpush1.bf16.msra.mxu0 %v4236
  %4254 = vmatprep.subr.bf16.mxu0 0
  %4255 = vmatpush1.bf16.msra.mxu0 %v4237
  %4256 = vmatprep.subr.bf16.mxu0 0
  %4257 = vmatpush1.bf16.msra.mxu0 %v4238
  %4258 = vmatprep.subr.bf16.mxu0 0
  %4259 = vmatpush1.bf16.msra.mxu0 %v4239
  %4260 = vmatprep.subr.bf16.mxu0 0
  %4261 = vmatpush1.bf16.msra.mxu0 %v4240
  %4262 = vmatprep.subr.bf16.mxu0 0
  %4263 = vmatpush1.bf16.msra.mxu0 %v4241
  %4264 = vmatprep.subr.bf16.mxu0 0
  %4265 = vmatpush1.bf16.msra.mxu0 %v4242
  %4266 = vmatprep.subr.bf16.mxu0 0
  %4267 = vmatpush1.bf16.msra.mxu0 %v4243
  %4268 = vmatprep.subr.bf16.mxu0 0
  %4269 = vmatpush1.bf16.msra.mxu0 0
  %4270 = vmatprep.subr.bf16.mxu0 0
  %4271 = vmatpush1.bf16.msra.mxu0 0
  %4272 = vmatprep.subr.bf16.mxu0 0
  %4273 = vmatpush1.bf16.msra.mxu0 0
  %4274 = vmatprep.subr.bf16.mxu0 0
  %4275 = vmatpush1.bf16.msra.mxu0 0
  %4276 = vmatprep.subr.bf16.mxu0 0
  %4277 = vmatpush1.bf16.msra.mxu0 0
  %4278 = vmatprep.subr.bf16.mxu0 0
  %4279 = vmatpush1.bf16.msra.mxu0 0
  %4280 = vmatprep.subr.bf16.mxu0 0
  %4281 = vmatpush1.bf16.msra.mxu0 0
  %4282 = vmatprep.subr.bf16.mxu0 0
  %4283 = vmatpush1.bf16.msra.mxu0 0
  %4284 = vmatprep.mubr.bf16.mxu0 0
  %4285 = vmatmul.mubr.bf16.gmra.mrb[0].mxu0 %v4203
  %v4286 = vpop.f32.mrb[0].mxu0
  %v4287 = vadd.f32 %v529, %v4286
  %v4288 = vpop.f32.mrb[0].mxu0
  %v4289 = vpop.f32.mrb[0].mxu0
  %v4290 = vpop.f32.mrb[0].mxu0
  %4291 = vdwg.mxu0
  %v4292 = vtanh.pop %v4287
  %v4293 = vpack.c.bf16 %v4292, %v4292
  %v4310 = vunpack.c.l.b16 %v595
  %v4311 = vunpack.c.l.b16 %v596
  %v4312 = vunpack.c.l.b16 %v597
  %v4313 = vunpack.c.l.b16 %v598
  %v4314 = vunpack.c.l.b16 %v599
  %v4315 = vunpack.c.l.b16 %v600
  %v4316 = vunpack.c.l.b16 %v601
  %v4317 = vunpack.c.l.b16 %v602
  %v4318 = vunpack.c.l.b16 %v603
  %v4319 = vunpack.c.l.b16 %v604
  %v4320 = vunpack.c.l.b16 %v605
  %v4321 = vunpack.c.l.b16 %v606
  %v4322 = vunpack.c.l.b16 %v607
  %v4323 = vunpack.c.l.b16 %v608
  %v4324 = vunpack.c.l.b16 %v609
  %v4325 = vunpack.c.l.b16 %v610
  %v4326 = vpack.c.b16 %v4311, %v4310
  %v4327 = vpack.c.b16 %v4313, %v4312
  %v4328 = vpack.c.b16 %v4315, %v4314
  %v4329 = vpack.c.b16 %v4317, %v4316
  %v4330 = vpack.c.b16 %v4319, %v4318
  %v4331 = vpack.c.b16 %v4321, %v4320
  %v4332 = vpack.c.b16 %v4323, %v4322
  %v4333 = vpack.c.b16 %v4325, %v4324
  %4342 = vmatprep.subr.bf16.mxu0 0
  %4343 = vmatpush1.bf16.msra.mxu0 %v4326
  %4344 = vmatprep.subr.bf16.mxu0 0
  %4345 = vmatpush1.bf16.msra.mxu0 %v4327
  %4346 = vmatprep.subr.bf16.mxu0 0
  %4347 = vmatpush1.bf16.msra.mxu0 %v4328
  %4348 = vmatprep.subr.bf16.mxu0 0
  %4349 = vmatpush1.bf16.msra.mxu0 %v4329
  %4350 = vmatprep.subr.bf16.mxu0 0
  %4351 = vmatpush1.bf16.msra.mxu0 %v4330
  %4352 = vmatprep.subr.bf16.mxu0 0
  %4353 = vmatpush1.bf16.msra.mxu0 %v4331
  %4354 = vmatprep.subr.bf16.mxu0 0
  %4355 = vmatpush1.bf16.msra.mxu0 %v4332
  %4356 = vmatprep.subr.bf16.mxu0 0
  %4357 = vmatpush1.bf16.msra.mxu0 %v4333
  %4358 = vmatprep.subr.bf16.mxu0 0
  %4359 = vmatpush1.bf16.msra.mxu0 0
  %4360 = vmatprep.subr.bf16.mxu0 0
  %4361 = vmatpush1.bf16.msra.mxu0 0
  %4362 = vmatprep.subr.bf16.mxu0 0
  %4363 = vmatpush1.bf16.msra.mxu0 0
  %4364 = vmatprep.subr.bf16.mxu0 0
  %4365 = vmatpush1.bf16.msra.mxu0 0
  %4366 = vmatprep.subr.bf16.mxu0 0
  %4367 = vmatpush1.bf16.msra.mxu0 0
  %4368 = vmatprep.subr.bf16.mxu0 0
  %4369 = vmatpush1.bf16.msra.mxu0 0
  %4370 = vmatprep.subr.bf16.mxu0 0
  %4371 = vmatpush1.bf16.msra.mxu0 0
  %4372 = vmatprep.subr.bf16.mxu0 0
  %4373 = vmatpush1.bf16.msra.mxu0 0
  %4374 = vmatprep.mubr.bf16.mxu0 0
  %4375 = vmatmul.mubr.bf16.gmra.mrb[0].mxu0 %v4293
  %v4376 = vpop.f32.mrb[0].mxu0
  %v4377 = vadd.f32 %v530, %v4376
  %v4378 = vpop.f32.mrb[0].mxu0
  %v4379 = vpop.f32.mrb[0].mxu0
  %v4380 = vpop.f32.mrb[0].mxu0
  %4381 = vdwg.mxu0
  %v4382 = vxor.u32 %v4377, 2147483648
  %v4383 = vmul.f32 %v4382, 1.442695
  %v4384 = vpow.pop %v4383
  %v4385 = vadd.f32 %v4384, 1.0
  %v4386 = vrcp.pop %v4385
  %v4387 = vmul.f32 1.0, %v4386
  %4388 = vst [vmem:[%s7] sm:$0xff] %v4387
  // Predicated region
  $region30: #{_lambda_.1} parent=0 // pred_check
    _
  $region31: #{_lambda_.1} parent=0 // pred_check_branch
    %4390 = sbr.rel (0) target = $region33
  $region32: #{_lambda_.1} parent=0 // pred_region
    _
  $region33: #{_lambda_.1} parent=0 // pred_fallthru
    _
  // Predicated region
  $region34: #{_lambda_.1} parent=0 // pred_check
    _
  $region35: #{_lambda_.1} parent=0 // pred_check_branch
    %4392 = sbr.rel (0) target = $region37
  $region36: #{_lambda_.1} parent=0 // pred_region
    _
  $region37: #{_lambda_.1} parent=0 // pred_fallthru
    _

</llo_original>
